<compile_context>
chip_gen: v7x
topology: tpu7x:2x2x1
jax: 0.10.0
libtpu: 0.0.40
codegen_flags: <defaults>
</compile_context>

<pallas_src>
import jax
import jax.numpy as jnp
from jax import lax
from jax.experimental import pallas as pl
from jax.experimental.pallas import tpu as pltpu

# ------------------------- model hyper-params (tiny Flan-T5) -------------------------
B = 2          # batch
S_ENC = 8      # encoder (prompt) sequence length   (max_length=256 in the original)
S_DEC = 8      # decoder (label) sequence length    (max_length=10 in the original)
D = 32         # d_model
H = 2          # num heads
DK = 16        # head dim (d_kv)
HDK = H * DK   # 32
DFF = 64       # feed-forward dim (gated GELU, Flan-T5 style)
V = 128        # vocab size
REL_BUCKETS = 32
REL_MAX_DIST = 128
LN_EPS = 1e-6


# ------------------------------- fused Pallas kernel ----------------------------------

def _fused_t5_kernel(
    # per-batch inputs
    ids_ref, mask_ref, dec_in_ref, lab_ref,
    # shared position-bias tables
    enc_rel_ref, dec_rel_ref,
    # shared weights (VMEM-resident across the grid)
    emb_ref,
    e_sa_ln_ref, e_wqkv_t_ref, e_wo_ref,
    e_ff_ln_ref, e_wi_t_ref, e_wof_ref,
    e_final_ln_ref,
    d_sa_ln_ref, d_sa_wqkv_t_ref, d_sa_wo_ref,
    d_ca_ln_ref, d_ca_wq_t_ref, d_ca_wkv_t_ref, d_ca_wo_ref,
    d_ff_ln_ref, d_wi_t_ref, d_wof_ref,
    d_final_ln_ref,
    lm_ref,
    # outputs
    logits_ref, nll_ref,
):
    f32 = jnp.float32
    s_enc = ids_ref.shape[1]
    s_dec = dec_in_ref.shape[1]
    vocab = emb_ref.shape[0]
    hdk = e_wo_ref.shape[0]
    dk = hdk // H
    dff = e_wof_ref.shape[0]

    def rmsnorm(x, w_ref):
        # T5 LayerNorm: no mean subtraction, no bias, f32 math.
        var = jnp.mean(x * x, axis=-1, keepdims=True)
        return x * lax.rsqrt(var + LN_EPS) * w_ref[...]

    def softmax(s):
        s = s - jnp.max(s, axis=-1, keepdims=True)
        e = jnp.exp(s)
        # divide -> EUP reciprocal (co-issues for free next to the VALU work)
        return e * pl.reciprocal(jnp.sum(e, axis=-1, keepdims=True), approx=True)

    def attention(q_t, k_t, v_t, wo, bias_fn):
        # q_t: (H*dk, Nq), k_t/v_t: (H*dk, Nk), wo: (H*dk, D).  T5: no 1/sqrt(dk) scaling.
        out = None
        for h in range(H):
            lo, hi = h * dk, (h + 1) * dk
            qh = lax.slice_in_dim(q_t, lo, hi, axis=0).T          # (Nq, dk)
            kh = lax.slice_in_dim(k_t, lo, hi, axis=0)            # (dk, Nk)
            vh = lax.slice_in_dim(v_t, lo, hi, axis=0).T          # (Nk, dk)
            s = jnp.dot(qh, kh, preferred_element_type=f32) + bias_fn(h)
            ctx = jnp.dot(softmax(s), vh, preferred_element_type=f32)          # (Nq, dk)
            woh = lax.slice_in_dim(wo, lo, hi, axis=0)            # (dk, D)
            contrib = jnp.dot(ctx, woh, preferred_element_type=f32)            # (Nq, D)
            out = contrib if out is None else out + contrib
        return out

    def gated_ff(x_norm, wi_t_ref, wof_ref):
        # Flan-T5 gated-GELU MLP: gelu_new(x @ wi0) * (x @ wi1) @ wo, wi0/wi1 merged.
        h_t = jnp.dot(wi_t_ref[...], x_norm.T, preferred_element_type=f32)     # (2*dff, N)
        hg = jax.nn.gelu(lax.slice_in_dim(h_t, 0, dff, axis=0), approximate=True)
        hl = lax.slice_in_dim(h_t, dff, 2 * dff, axis=0)
        return jnp.dot((hg * hl).T, wof_ref[...], preferred_element_type=f32)  # (N, D)

    # ---- per-batch ids / mask ----
    ids = ids_ref[0]                                        # (s_enc, 1) int32
    dec_in = dec_in_ref[0]                                  # (s_dec, 1) int32
    lab = lab_ref[0]                                        # (s_dec, 1) int32
    mask_bias = (1.0 - mask_ref[0].astype(f32)) * (-1e9)    # (1, s_enc)

    emb = emb_ref[...]                                      # (V, D)

    # ---- token embedding via one-hot @ emb (no gather, no HBM one-hot) ----
    iota_e = lax.broadcasted_iota(jnp.int32, (s_enc, vocab), 1)
    iota_d = lax.broadcasted_iota(jnp.int32, (s_dec, vocab), 1)
    x = jnp.dot((iota_e == ids).astype(f32), emb, preferred_element_type=f32)      # (s_enc, D)
    y = jnp.dot((iota_d == dec_in).astype(f32), emb, preferred_element_type=f32)   # (s_dec, D)

    # ---- encoder layer ----
    hn = rmsnorm(x, e_sa_ln_ref)
    qkv_t = jnp.dot(e_wqkv_t_ref[...], hn.T, preferred_element_type=f32)           # (3*hdk, s_enc)
    q_t = lax.slice_in_dim(qkv_t, 0, hdk, axis=0)
    k_t = lax.slice_in_dim(qkv_t, hdk, 2 * hdk, axis=0)
    v_t = lax.slice_in_dim(qkv_t, 2 * hdk, 3 * hdk, axis=0)
    x = x + attention(q_t, k_t, v_t, e_wo_ref[...],
                      lambda h: enc_rel_ref[h] + mask_bias)
    hn = rmsnorm(x, e_ff_ln_ref)
    x = x + gated_ff(hn, e_wi_t_ref, e_wof_ref)
    enc_out = rmsnorm(x, e_final_ln_ref)

    # ---- decoder layer ----
    hn = rmsnorm(y, d_sa_ln_ref)
    qkv_t = jnp.dot(d_sa_wqkv_t_ref[...], hn.T, preferred_element_type=f32)        # (3*hdk, s_dec)
    q_t = lax.slice_in_dim(qkv_t, 0, hdk, axis=0)
    k_t = lax.slice_in_dim(qkv_t, hdk, 2 * hdk, axis=0)
    v_t = lax.slice_in_dim(qkv_t, 2 * hdk, 3 * hdk, axis=0)
    y = y + attention(q_t, k_t, v_t, d_sa_wo_ref[...],
                      lambda h: dec_rel_ref[h])             # rel bias already includes causal mask
    hn = rmsnorm(y, d_ca_ln_ref)
    q_t = jnp.dot(d_ca_wq_t_ref[...], hn.T, preferred_element_type=f32)            # (hdk, s_dec)
    kv_t = jnp.dot(d_ca_wkv_t_ref[...], enc_out.T, preferred_element_type=f32)     # (2*hdk, s_enc)
    k_t = lax.slice_in_dim(kv_t, 0, hdk, axis=0)
    v_t = lax.slice_in_dim(kv_t, hdk, 2 * hdk, axis=0)
    y = y + attention(q_t, k_t, v_t, d_ca_wo_ref[...],
                      lambda h: mask_bias)                  # cross-attn: padding mask only
    hn = rmsnorm(y, d_ff_ln_ref)
    y = y + gated_ff(hn, d_wi_t_ref, d_wof_ref)
    y = rmsnorm(y, d_final_ln_ref)

    # ---- lm head (untied, no d_model**-0.5 scaling); V=128 -> lane-dense store ----
    logits = jnp.dot(y, lm_ref[...], preferred_element_type=f32)                   # (s_dec, V)
    logits_ref[0] = logits

    # ---- masked cross entropy (ignore_index=-100), one-hot built in-register ----
    m = jnp.max(logits, axis=-1, keepdims=True)
    lse = jnp.log(jnp.sum(jnp.exp(logits - m), axis=-1, keepdims=True)) + m
    tgt = jnp.sum(logits * (iota_d == lab).astype(f32), axis=-1, keepdims=True)
    valid = (lab != -100).astype(f32)
    nll_ref[0] = (lse - tgt) * valid


# ------------------------------ plain-JAX glue ----------------------------------------

def _relative_position_bucket(rel_pos, bidirectional, num_buckets, max_distance):
    rel_buckets = jnp.zeros_like(rel_pos)
    if bidirectional:
        num_buckets //= 2
        rel_buckets = rel_buckets + (rel_pos > 0).astype(jnp.int32) * num_buckets
        rel_pos = jnp.abs(rel_pos)
    else:
        rel_pos = -jnp.minimum(rel_pos, 0)
    max_exact = num_buckets // 2
    is_small = rel_pos < max_exact
    rel_large = max_exact + (
        jnp.log(jnp.maximum(rel_pos, 1).astype(jnp.float32) / max_exact)
        / jnp.log(max_distance / max_exact)
        * (num_buckets - max_exact)
    ).astype(jnp.int32)
    rel_large = jnp.minimum(rel_large, num_buckets - 1)
    return rel_buckets + jnp.where(is_small, rel_pos, rel_large)


def relative_position_bias(rel_emb, q_len, k_len, bidirectional):
    ctx = jnp.arange(q_len)[:, None]
    mem = jnp.arange(k_len)[None, :]
    buckets = _relative_position_bucket(mem - ctx, bidirectional, REL_BUCKETS, REL_MAX_DIST)
    vals = rel_emb[buckets]                      # (q, k, H)
    return jnp.transpose(vals, (2, 0, 1))        # (H, q, k)


def _pack_params(params):
    # Merge QKV / gate+linear FF weights and transpose them to (out_features, D) so the
    # in-kernel per-head / gate splits are sublane slices.
    pe, pd = params["enc_layer"], params["dec_layer"]
    return dict(
        emb=params["shared_embedding"],
        e_sa_ln=pe["sa_ln"].reshape(1, D),
        e_wqkv_t=jnp.concatenate([pe["sa_q"], pe["sa_k"], pe["sa_v"]], axis=1).T,
        e_wo=pe["sa_o"],
        e_ff_ln=pe["ff_ln"].reshape(1, D),
        e_wi_t=jnp.concatenate([pe["wi0"], pe["wi1"]], axis=1).T,
        e_wof=pe["wo"],
        e_final_ln=params["enc_final_ln"].reshape(1, D),
        d_sa_ln=pd["sa_ln"].reshape(1, D),
        d_sa_wqkv_t=jnp.concatenate([pd["sa_q"], pd["sa_k"], pd["sa_v"]], axis=1).T,
        d_sa_wo=pd["sa_o"],
        d_ca_ln=pd["ca_ln"].reshape(1, D),
        d_ca_wq_t=pd["ca_q"].T,
        d_ca_wkv_t=jnp.concatenate([pd["ca_k"], pd["ca_v"]], axis=1).T,
        d_ca_wo=pd["ca_o"],
        d_ff_ln=pd["ff_ln"].reshape(1, D),
        d_wi_t=jnp.concatenate([pd["wi0"], pd["wi1"]], axis=1).T,
        d_wof=pd["wo"],
        d_final_ln=params["dec_final_ln"].reshape(1, D),
        lm=params["lm_head"],
    )


def flan_t5_forward(params, input_ids, attention_mask, labels):
    b, s = input_ids.shape
    t = labels.shape[1]

    # decoder inputs: labels shifted right, start = pad id 0, -100 -> 0 (HF _shift_right)
    dec_in = jnp.concatenate(
        [jnp.zeros((b, 1), jnp.int32), labels[:, :-1].astype(jnp.int32)], axis=1)
    dec_in = jnp.where(dec_in == -100, 0, dec_in)

    # position-only bias tables (shared across batch); causal mask folded into decoder bias.
    enc_rel = relative_position_bias(params["enc_rel_bias"], s, s, bidirectional=True)
    causal = jnp.triu(jnp.full((t, t), -1e9, jnp.float32), k=1)
    dec_rel = relative_position_bias(params["dec_rel_bias"], t, t, bidirectional=False) + causal[None]

    w = _pack_params(params)

    wspec2 = lambda shape: pl.BlockSpec(shape, lambda i: (0, 0))
    wspec3 = lambda shape: pl.BlockSpec(shape, lambda i: (0, 0, 0))
    bspec3 = lambda shape: pl.BlockSpec(shape, lambda i: (i, 0, 0))

    in_specs = [
        bspec3((1, s, 1)),            # input ids
        bspec3((1, 1, s)),            # attention mask
        bspec3((1, t, 1)),            # decoder input ids
        bspec3((1, t, 1)),            # labels
        wspec3((H, s, s)),            # encoder rel-pos bias
        wspec3((H, t, t)),            # decoder rel-pos bias (+ causal)
        wspec2((V, D)),               # shared embedding
        wspec2((1, D)), wspec2((3 * HDK, D)), wspec2((HDK, D)),
        wspec2((1, D)), wspec2((2 * DFF, D)), wspec2((DFF, D)),
        wspec2((1, D)),
        wspec2((1, D)), wspec2((3 * HDK, D)), wspec2((HDK, D)),
        wspec2((1, D)), wspec2((HDK, D)), wspec2((2 * HDK, D)), wspec2((HDK, D)),
        wspec2((1, D)), wspec2((2 * DFF, D)), wspec2((DFF, D)),
        wspec2((1, D)),
        wspec2((D, V)),
    ]

    logits, nll = pl.pallas_call(
        _fused_t5_kernel,
        out_shape=(jax.ShapeDtypeStruct((b, t, V), jnp.float32),
                   jax.ShapeDtypeStruct((b, t, 1), jnp.float32)),
        grid=(b,),
        in_specs=in_specs,
        out_specs=(pl.BlockSpec((1, t, V), lambda i: (i, 0, 0)),
                   pl.BlockSpec((1, t, 1), lambda i: (i, 0, 0))),
        compiler_params=pltpu.CompilerParams(
            dimension_semantics=("parallel",),      # batch across TCs on v7x megacore
            vmem_limit_bytes=32 * 1024 * 1024),
    )(
        input_ids[..., None].astype(jnp.int32),
        attention_mask[:, None, :].astype(jnp.int32),
        dec_in[..., None],
        labels[..., None].astype(jnp.int32),
        enc_rel, dec_rel,
        w["emb"],
        w["e_sa_ln"], w["e_wqkv_t"], w["e_wo"],
        w["e_ff_ln"], w["e_wi_t"], w["e_wof"],
        w["e_final_ln"],
        w["d_sa_ln"], w["d_sa_wqkv_t"], w["d_sa_wo"],
        w["d_ca_ln"], w["d_ca_wq_t"], w["d_ca_wkv_t"], w["d_ca_wo"],
        w["d_ff_ln"], w["d_wi_t"], w["d_wof"],
        w["d_final_ln"],
        w["lm"],
    )

    valid = (labels != -100).astype(jnp.float32)
    loss = jnp.sum(nll) / jnp.maximum(jnp.sum(valid), 1.0)   # token-mean CE (ignore_index=-100)
    return loss, logits


# ------------------------------ parameter init ----------------------------------------

def init_params(key):
    keys = iter(jax.random.split(key, 64))

    def w(shape, scale=0.05):
        return jax.random.normal(next(keys), shape, jnp.float32) * scale

    def attn():
        return dict(q=w((D, H * DK)), k=w((D, H * DK)), v=w((D, H * DK)), o=w((H * DK, D)))

    enc_a, dec_sa, dec_ca = attn(), attn(), attn()
    params = {
        "shared_embedding": w((V, D), 1.0),
        "enc_rel_bias": w((REL_BUCKETS, H)),
        "dec_rel_bias": w((REL_BUCKETS, H)),
        "enc_layer": {
            "sa_ln": jnp.ones((D,), jnp.float32),
            "sa_q": enc_a["q"], "sa_k": enc_a["k"], "sa_v": enc_a["v"], "sa_o": enc_a["o"],
            "ff_ln": jnp.ones((D,), jnp.float32),
            "wi0": w((D, DFF)), "wi1": w((D, DFF)), "wo": w((DFF, D)),
        },
        "enc_final_ln": jnp.ones((D,), jnp.float32),
        "dec_layer": {
            "sa_ln": jnp.ones((D,), jnp.float32),
            "sa_q": dec_sa["q"], "sa_k": dec_sa["k"], "sa_v": dec_sa["v"], "sa_o": dec_sa["o"],
            "ca_ln": jnp.ones((D,), jnp.float32),
            "ca_q": dec_ca["q"], "ca_k": dec_ca["k"], "ca_v": dec_ca["v"], "ca_o": dec_ca["o"],
            "ff_ln": jnp.ones((D,), jnp.float32),
            "wi0": w((D, DFF)), "wi1": w((D, DFF)), "wo": w((DFF, D)),
        },
        "dec_final_ln": jnp.ones((D,), jnp.float32),
        "lm_head": w((D, V)),
    }
    return params


# ------------------------------------ main ---------------------------------------------

if __name__ == "__main__":
    key = jax.random.PRNGKey(0)
    k_param, k_in, k_lab = jax.random.split(key, 3)

    params = init_params(k_param)

    # tokenized prompt / label ids (tokenizer itself not reproducible -> ids are inputs)
    input_ids = jax.random.randint(k_in, (B, S_ENC), 0, V, dtype=jnp.int32)
    attention_mask = jnp.ones((B, S_ENC), jnp.int32).at[1, -2:].set(0)   # some padding
    labels = jax.random.randint(k_lab, (B, S_DEC), 0, V, dtype=jnp.int32)
    labels = labels.at[1, -1].set(-100)   # exercise ignore_index path

    fwd = jax.jit(flan_t5_forward)
    loss, logits = fwd(params, input_ids, attention_mask, labels)
    jax.block_until_ready((loss, logits))

    assert logits.shape == (B, S_DEC, V)
    assert bool(jnp.isfinite(loss))
    print("KERNEL_OK")
</pallas_src>

<mosaic_0001>
module attributes {stable_mosaic.version = 11 : i64} {
  func.func @_fused_t5_kernel(%arg0: i32, %arg1: memref<1x8x1xi32, #tpu.memory_space<vmem>>, %arg2: memref<1x1x8xi32, #tpu.memory_space<vmem>>, %arg3: memref<1x8x1xi32, #tpu.memory_space<vmem>>, %arg4: memref<1x8x1xi32, #tpu.memory_space<vmem>>, %arg5: memref<2x8x8xf32, #tpu.memory_space<vmem>>, %arg6: memref<2x8x8xf32, #tpu.memory_space<vmem>>, %arg7: memref<128x32xf32, #tpu.memory_space<vmem>>, %arg8: memref<1x32xf32, #tpu.memory_space<vmem>>, %arg9: memref<96x32xf32, #tpu.memory_space<vmem>>, %arg10: memref<32x32xf32, #tpu.memory_space<vmem>>, %arg11: memref<1x32xf32, #tpu.memory_space<vmem>>, %arg12: memref<128x32xf32, #tpu.memory_space<vmem>>, %arg13: memref<64x32xf32, #tpu.memory_space<vmem>>, %arg14: memref<1x32xf32, #tpu.memory_space<vmem>>, %arg15: memref<1x32xf32, #tpu.memory_space<vmem>>, %arg16: memref<96x32xf32, #tpu.memory_space<vmem>>, %arg17: memref<32x32xf32, #tpu.memory_space<vmem>>, %arg18: memref<1x32xf32, #tpu.memory_space<vmem>>, %arg19: memref<32x32xf32, #tpu.memory_space<vmem>>, %arg20: memref<64x32xf32, #tpu.memory_space<vmem>>, %arg21: memref<32x32xf32, #tpu.memory_space<vmem>>, %arg22: memref<1x32xf32, #tpu.memory_space<vmem>>, %arg23: memref<128x32xf32, #tpu.memory_space<vmem>>, %arg24: memref<64x32xf32, #tpu.memory_space<vmem>>, %arg25: memref<1x32xf32, #tpu.memory_space<vmem>>, %arg26: memref<32x128xf32, #tpu.memory_space<vmem>>, %arg27: memref<1x8x128xf32, #tpu.memory_space<vmem>>, %arg28: memref<1x8x1xf32, #tpu.memory_space<vmem>>) attributes {dimension_semantics = [#tpu.dimension_semantics<parallel>], iteration_bounds = array<i64: 2>, scalar_prefetch = 0 : i64, scratch_operands = 0 : i64, tpu.core_type = #tpu.core_type<tc>, window_params = [{transform_indices = @transform_0, window_bounds = array<i64: 1, 8, 1>}, {transform_indices = @transform_1, window_bounds = array<i64: 1, 1, 8>}, {transform_indices = @transform_2, window_bounds = array<i64: 1, 8, 1>}, {transform_indices = @transform_3, window_bounds = array<i64: 1, 8, 1>}, {pipeline_mode = #tpu.pipeline_mode<synchronous>, transform_indices = @transform_4, window_bounds = array<i64: 2, 8, 8>}, {pipeline_mode = #tpu.pipeline_mode<synchronous>, transform_indices = @transform_5, window_bounds = array<i64: 2, 8, 8>}, {pipeline_mode = #tpu.pipeline_mode<synchronous>, transform_indices = @transform_6, window_bounds = array<i64: 128, 32>}, {pipeline_mode = #tpu.pipeline_mode<synchronous>, transform_indices = @transform_7, window_bounds = array<i64: 1, 32>}, {pipeline_mode = #tpu.pipeline_mode<synchronous>, transform_indices = @transform_8, window_bounds = array<i64: 96, 32>}, {pipeline_mode = #tpu.pipeline_mode<synchronous>, transform_indices = @transform_9, window_bounds = array<i64: 32, 32>}, {pipeline_mode = #tpu.pipeline_mode<synchronous>, transform_indices = @transform_10, window_bounds = array<i64: 1, 32>}, {pipeline_mode = #tpu.pipeline_mode<synchronous>, transform_indices = @transform_11, window_bounds = array<i64: 128, 32>}, {pipeline_mode = #tpu.pipeline_mode<synchronous>, transform_indices = @transform_12, window_bounds = array<i64: 64, 32>}, {pipeline_mode = #tpu.pipeline_mode<synchronous>, transform_indices = @transform_13, window_bounds = array<i64: 1, 32>}, {pipeline_mode = #tpu.pipeline_mode<synchronous>, transform_indices = @transform_14, window_bounds = array<i64: 1, 32>}, {pipeline_mode = #tpu.pipeline_mode<synchronous>, transform_indices = @transform_15, window_bounds = array<i64: 96, 32>}, {pipeline_mode = #tpu.pipeline_mode<synchronous>, transform_indices = @transform_16, window_bounds = array<i64: 32, 32>}, {pipeline_mode = #tpu.pipeline_mode<synchronous>, transform_indices = @transform_17, window_bounds = array<i64: 1, 32>}, {pipeline_mode = #tpu.pipeline_mode<synchronous>, transform_indices = @transform_18, window_bounds = array<i64: 32, 32>}, {pipeline_mode = #tpu.pipeline_mode<synchronous>, transform_indices = @transform_19, window_bounds = array<i64: 64, 32>}, {pipeline_mode = #tpu.pipeline_mode<synchronous>, transform_indices = @transform_20, window_bounds = array<i64: 32, 32>}, {pipeline_mode = #tpu.pipeline_mode<synchronous>, transform_indices = @transform_21, window_bounds = array<i64: 1, 32>}, {pipeline_mode = #tpu.pipeline_mode<synchronous>, transform_indices = @transform_22, window_bounds = array<i64: 128, 32>}, {pipeline_mode = #tpu.pipeline_mode<synchronous>, transform_indices = @transform_23, window_bounds = array<i64: 64, 32>}, {pipeline_mode = #tpu.pipeline_mode<synchronous>, transform_indices = @transform_24, window_bounds = array<i64: 1, 32>}, {pipeline_mode = #tpu.pipeline_mode<synchronous>, transform_indices = @transform_25, window_bounds = array<i64: 32, 128>}, {transform_indices = @transform_26, window_bounds = array<i64: 1, 8, 128>}, {transform_indices = @transform_27, window_bounds = array<i64: 1, 8, 1>}]} {
    %c0 = arith.constant 0 : index
    %c0_0 = arith.constant 0 : index
    %c0_1 = arith.constant 0 : index
    %0 = vector.load %arg1[%c0, %c0_0, %c0_1] : memref<1x8x1xi32, #tpu.memory_space<vmem>>, vector<1x8x1xi32>
    %1 = vector.shape_cast %0 : vector<1x8x1xi32> to vector<8x1xi32>
    %c0_2 = arith.constant 0 : index
    %c0_3 = arith.constant 0 : index
    %c0_4 = arith.constant 0 : index
    %2 = vector.load %arg3[%c0_2, %c0_3, %c0_4] : memref<1x8x1xi32, #tpu.memory_space<vmem>>, vector<1x8x1xi32>
    %3 = vector.shape_cast %2 : vector<1x8x1xi32> to vector<8x1xi32>
    %c0_5 = arith.constant 0 : index
    %c0_6 = arith.constant 0 : index
    %c0_7 = arith.constant 0 : index
    %4 = vector.load %arg4[%c0_5, %c0_6, %c0_7] : memref<1x8x1xi32, #tpu.memory_space<vmem>>, vector<1x8x1xi32>
    %5 = vector.shape_cast %4 : vector<1x8x1xi32> to vector<8x1xi32>
    %c0_8 = arith.constant 0 : index
    %c0_9 = arith.constant 0 : index
    %c0_10 = arith.constant 0 : index
    %6 = vector.load %arg2[%c0_8, %c0_9, %c0_10] : memref<1x1x8xi32, #tpu.memory_space<vmem>>, vector<1x1x8xi32>
    %7 = vector.shape_cast %6 : vector<1x1x8xi32> to vector<1x8xi32>
    %8 = arith.sitofp %7 : vector<1x8xi32> to vector<1x8xf32>
    %cst = arith.constant 1.000000e+00 : f32
    %9 = vector.broadcast %cst : f32 to vector<1x8xf32>
    %10 = arith.subf %9, %8 : vector<1x8xf32>
    %cst_11 = arith.constant -1.000000e+09 : f32
    %11 = vector.broadcast %cst_11 : f32 to vector<1x8xf32>
    %12 = arith.mulf %10, %11 : vector<1x8xf32>
    %c0_12 = arith.constant 0 : index
    %c0_13 = arith.constant 0 : index
    %13 = vector.load %arg7[%c0_12, %c0_13] : memref<128x32xf32, #tpu.memory_space<vmem>>, vector<128x32xf32>
    %14 = tpu.iota {dimensions = array<i32: 1>} : vector<8x128xi32>
    %15 = tpu.iota {dimensions = array<i32: 1>} : vector<8x128xi32>
    %16 = vector.broadcast %1 : vector<8x1xi32> to vector<8x128xi32>
    %17 = arith.cmpi eq, %14, %16 : vector<8x128xi32>
    %18 = arith.extui %17 : vector<8x128xi1> to vector<8x128xi32>
    %19 = arith.sitofp %18 : vector<8x128xi32> to vector<8x128xf32>
    %cst_14 = arith.constant dense<0.000000e+00> : vector<8x32xf32>
    %20 = tpu.matmul %19, %13, %cst_14 {dimension_numbers = #tpu.dot_dimension_numbers<[1], [0], [0], [1], [0, 0, 1, 1], [], []>} : vector<8x128xf32>, vector<128x32xf32>, vector<8x32xf32> -> vector<8x32xf32>
    %21 = vector.broadcast %3 : vector<8x1xi32> to vector<8x128xi32>
    %22 = arith.cmpi eq, %15, %21 : vector<8x128xi32>
    %23 = arith.extui %22 : vector<8x128xi1> to vector<8x128xi32>
    %24 = arith.sitofp %23 : vector<8x128xi32> to vector<8x128xf32>
    %cst_15 = arith.constant dense<0.000000e+00> : vector<8x32xf32>
    %25 = tpu.matmul %24, %13, %cst_15 {dimension_numbers = #tpu.dot_dimension_numbers<[1], [0], [0], [1], [0, 0, 1, 1], [], []>} : vector<8x128xf32>, vector<128x32xf32>, vector<8x32xf32> -> vector<8x32xf32>
    %26 = arith.mulf %20, %20 : vector<8x32xf32>
    %cst_16 = arith.constant dense<0.000000e+00> : vector<8xf32>
    %27 = vector.multi_reduction <add>, %26, %cst_16 [1] : vector<8x32xf32> to vector<8xf32>
    %28 = vector.shape_cast %27 : vector<8xf32> to vector<8x1xf32>
    %cst_17 = arith.constant 3.200000e+01 : f32
    %29 = vector.broadcast %cst_17 : f32 to vector<8x1xf32>
    %30 = arith.divf %28, %29 : vector<8x1xf32>
    %cst_18 = arith.constant 9.99999997E-7 : f32
    %31 = vector.broadcast %cst_18 : f32 to vector<8x1xf32>
    %32 = arith.addf %30, %31 : vector<8x1xf32>
    %33 = math.rsqrt %32 : vector<8x1xf32>
    %34 = vector.broadcast %33 : vector<8x1xf32> to vector<8x32xf32>
    %35 = arith.mulf %20, %34 : vector<8x32xf32>
    %c0_19 = arith.constant 0 : index
    %c0_20 = arith.constant 0 : index
    %36 = vector.load %arg8[%c0_19, %c0_20] : memref<1x32xf32, #tpu.memory_space<vmem>>, vector<1x32xf32>
    %37 = vector.broadcast %36 : vector<1x32xf32> to vector<8x32xf32>
    %38 = arith.mulf %35, %37 : vector<8x32xf32>
    %c0_21 = arith.constant 0 : index
    %c0_22 = arith.constant 0 : index
    %39 = vector.load %arg9[%c0_21, %c0_22] : memref<96x32xf32, #tpu.memory_space<vmem>>, vector<96x32xf32>
    %40 = tpu.transpose %38, [1, 0] : vector<8x32xf32> -> vector<32x8xf32>
    %cst_23 = arith.constant dense<0.000000e+00> : vector<96x8xf32>
    %41 = tpu.matmul %39, %40, %cst_23 {dimension_numbers = #tpu.dot_dimension_numbers<[1], [0], [0], [1], [0, 0, 1, 1], [], []>} : vector<96x32xf32>, vector<32x8xf32>, vector<96x8xf32> -> vector<96x8xf32>
    %42 = vector.extract_strided_slice %41 {offsets = [0, 0], sizes = [32, 8], strides = [1, 1]} : vector<96x8xf32> to vector<32x8xf32>
    %43 = vector.extract_strided_slice %41 {offsets = [32, 0], sizes = [32, 8], strides = [1, 1]} : vector<96x8xf32> to vector<32x8xf32>
    %44 = vector.extract_strided_slice %41 {offsets = [64, 0], sizes = [32, 8], strides = [1, 1]} : vector<96x8xf32> to vector<32x8xf32>
    %c0_24 = arith.constant 0 : index
    %c0_25 = arith.constant 0 : index
    %45 = vector.load %arg10[%c0_24, %c0_25] : memref<32x32xf32, #tpu.memory_space<vmem>>, vector<32x32xf32>
    %46 = vector.extract_strided_slice %42 {offsets = [0, 0], sizes = [16, 8], strides = [1, 1]} : vector<32x8xf32> to vector<16x8xf32>
    %47 = tpu.transpose %46, [1, 0] : vector<16x8xf32> -> vector<8x16xf32>
    %48 = vector.extract_strided_slice %43 {offsets = [0, 0], sizes = [16, 8], strides = [1, 1]} : vector<32x8xf32> to vector<16x8xf32>
    %49 = vector.extract_strided_slice %44 {offsets = [0, 0], sizes = [16, 8], strides = [1, 1]} : vector<32x8xf32> to vector<16x8xf32>
    %50 = tpu.transpose %49, [1, 0] : vector<16x8xf32> -> vector<8x16xf32>
    %cst_26 = arith.constant dense<0.000000e+00> : vector<8x8xf32>
    %51 = tpu.matmul %47, %48, %cst_26 {dimension_numbers = #tpu.dot_dimension_numbers<[1], [0], [0], [1], [0, 0, 1, 1], [], []>} : vector<8x16xf32>, vector<16x8xf32>, vector<8x8xf32> -> vector<8x8xf32>
    %c0_27 = arith.constant 0 : index
    %c0_28 = arith.constant 0 : index
    %c0_29 = arith.constant 0 : index
    %52 = vector.load %arg5[%c0_27, %c0_28, %c0_29] : memref<2x8x8xf32, #tpu.memory_space<vmem>>, vector<1x8x8xf32>
    %53 = vector.shape_cast %52 : vector<1x8x8xf32> to vector<8x8xf32>
    %54 = vector.broadcast %12 : vector<1x8xf32> to vector<8x8xf32>
    %55 = arith.addf %53, %54 : vector<8x8xf32>
    %56 = arith.addf %51, %55 : vector<8x8xf32>
    %cst_30 = arith.constant dense<0xFF800000> : vector<8xf32>
    %57 = vector.multi_reduction <maximumf>, %56, %cst_30 [1] : vector<8x8xf32> to vector<8xf32>
    %58 = vector.shape_cast %57 : vector<8xf32> to vector<8x1xf32>
    %59 = vector.broadcast %58 : vector<8x1xf32> to vector<8x8xf32>
    %60 = arith.subf %56, %59 : vector<8x8xf32>
    %61 = math.exp %60 : vector<8x8xf32>
    %cst_31 = arith.constant dense<0.000000e+00> : vector<8xf32>
    %62 = vector.multi_reduction <add>, %61, %cst_31 [1] : vector<8x8xf32> to vector<8xf32>
    %63 = vector.shape_cast %62 : vector<8xf32> to vector<8x1xf32>
    %64 = tpu.reciprocal %63 {approx = true} : vector<8x1xf32> -> vector<8x1xf32>
    %65 = vector.broadcast %64 : vector<8x1xf32> to vector<8x8xf32>
    %66 = arith.mulf %61, %65 : vector<8x8xf32>
    %cst_32 = arith.constant dense<0.000000e+00> : vector<8x16xf32>
    %67 = tpu.matmul %66, %50, %cst_32 {dimension_numbers = #tpu.dot_dimension_numbers<[1], [0], [0], [1], [0, 0, 1, 1], [], []>} : vector<8x8xf32>, vector<8x16xf32>, vector<8x16xf32> -> vector<8x16xf32>
    %68 = vector.extract_strided_slice %45 {offsets = [0, 0], sizes = [16, 32], strides = [1, 1]} : vector<32x32xf32> to vector<16x32xf32>
    %cst_33 = arith.constant dense<0.000000e+00> : vector<8x32xf32>
    %69 = tpu.matmul %67, %68, %cst_33 {dimension_numbers = #tpu.dot_dimension_numbers<[1], [0], [0], [1], [0, 0, 1, 1], [], []>} : vector<8x16xf32>, vector<16x32xf32>, vector<8x32xf32> -> vector<8x32xf32>
    %70 = vector.extract_strided_slice %42 {offsets = [16, 0], sizes = [16, 8], strides = [1, 1]} : vector<32x8xf32> to vector<16x8xf32>
    %71 = tpu.transpose %70, [1, 0] : vector<16x8xf32> -> vector<8x16xf32>
    %72 = vector.extract_strided_slice %43 {offsets = [16, 0], sizes = [16, 8], strides = [1, 1]} : vector<32x8xf32> to vector<16x8xf32>
    %73 = vector.extract_strided_slice %44 {offsets = [16, 0], sizes = [16, 8], strides = [1, 1]} : vector<32x8xf32> to vector<16x8xf32>
    %74 = tpu.transpose %73, [1, 0] : vector<16x8xf32> -> vector<8x16xf32>
    %cst_34 = arith.constant dense<0.000000e+00> : vector<8x8xf32>
    %75 = tpu.matmul %71, %72, %cst_34 {dimension_numbers = #tpu.dot_dimension_numbers<[1], [0], [0], [1], [0, 0, 1, 1], [], []>} : vector<8x16xf32>, vector<16x8xf32>, vector<8x8xf32> -> vector<8x8xf32>
    %c1 = arith.constant 1 : index
    %c0_35 = arith.constant 0 : index
    %c0_36 = arith.constant 0 : index
    %76 = vector.load %arg5[%c1, %c0_35, %c0_36] : memref<2x8x8xf32, #tpu.memory_space<vmem>>, vector<1x8x8xf32>
    %77 = vector.shape_cast %76 : vector<1x8x8xf32> to vector<8x8xf32>
    %78 = vector.broadcast %12 : vector<1x8xf32> to vector<8x8xf32>
    %79 = arith.addf %77, %78 : vector<8x8xf32>
    %80 = arith.addf %75, %79 : vector<8x8xf32>
    %cst_37 = arith.constant dense<0xFF800000> : vector<8xf32>
    %81 = vector.multi_reduction <maximumf>, %80, %cst_37 [1] : vector<8x8xf32> to vector<8xf32>
    %82 = vector.shape_cast %81 : vector<8xf32> to vector<8x1xf32>
    %83 = vector.broadcast %82 : vector<8x1xf32> to vector<8x8xf32>
    %84 = arith.subf %80, %83 : vector<8x8xf32>
    %85 = math.exp %84 : vector<8x8xf32>
    %cst_38 = arith.constant dense<0.000000e+00> : vector<8xf32>
    %86 = vector.multi_reduction <add>, %85, %cst_38 [1] : vector<8x8xf32> to vector<8xf32>
    %87 = vector.shape_cast %86 : vector<8xf32> to vector<8x1xf32>
    %88 = tpu.reciprocal %87 {approx = true} : vector<8x1xf32> -> vector<8x1xf32>
    %89 = vector.broadcast %88 : vector<8x1xf32> to vector<8x8xf32>
    %90 = arith.mulf %85, %89 : vector<8x8xf32>
    %cst_39 = arith.constant dense<0.000000e+00> : vector<8x16xf32>
    %91 = tpu.matmul %90, %74, %cst_39 {dimension_numbers = #tpu.dot_dimension_numbers<[1], [0], [0], [1], [0, 0, 1, 1], [], []>} : vector<8x8xf32>, vector<8x16xf32>, vector<8x16xf32> -> vector<8x16xf32>
    %92 = vector.extract_strided_slice %45 {offsets = [16, 0], sizes = [16, 32], strides = [1, 1]} : vector<32x32xf32> to vector<16x32xf32>
    %cst_40 = arith.constant dense<0.000000e+00> : vector<8x32xf32>
    %93 = tpu.matmul %91, %92, %cst_40 {dimension_numbers = #tpu.dot_dimension_numbers<[1], [0], [0], [1], [0, 0, 1, 1], [], []>} : vector<8x16xf32>, vector<16x32xf32>, vector<8x32xf32> -> vector<8x32xf32>
    %94 = arith.addf %69, %93 : vector<8x32xf32>
    %95 = arith.addf %20, %94 : vector<8x32xf32>
    %96 = arith.mulf %95, %95 : vector<8x32xf32>
    %cst_41 = arith.constant dense<0.000000e+00> : vector<8xf32>
    %97 = vector.multi_reduction <add>, %96, %cst_41 [1] : vector<8x32xf32> to vector<8xf32>
    %98 = vector.shape_cast %97 : vector<8xf32> to vector<8x1xf32>
    %cst_42 = arith.constant 3.200000e+01 : f32
    %99 = vector.broadcast %cst_42 : f32 to vector<8x1xf32>
    %100 = arith.divf %98, %99 : vector<8x1xf32>
    %cst_43 = arith.constant 9.99999997E-7 : f32
    %101 = vector.broadcast %cst_43 : f32 to vector<8x1xf32>
    %102 = arith.addf %100, %101 : vector<8x1xf32>
    %103 = math.rsqrt %102 : vector<8x1xf32>
    %104 = vector.broadcast %103 : vector<8x1xf32> to vector<8x32xf32>
    %105 = arith.mulf %95, %104 : vector<8x32xf32>
    %c0_44 = arith.constant 0 : index
    %c0_45 = arith.constant 0 : index
    %106 = vector.load %arg11[%c0_44, %c0_45] : memref<1x32xf32, #tpu.memory_space<vmem>>, vector<1x32xf32>
    %107 = vector.broadcast %106 : vector<1x32xf32> to vector<8x32xf32>
    %108 = arith.mulf %105, %107 : vector<8x32xf32>
    %c0_46 = arith.constant 0 : index
    %c0_47 = arith.constant 0 : index
    %109 = vector.load %arg12[%c0_46, %c0_47] : memref<128x32xf32, #tpu.memory_space<vmem>>, vector<128x32xf32>
    %110 = tpu.transpose %108, [1, 0] : vector<8x32xf32> -> vector<32x8xf32>
    %cst_48 = arith.constant dense<0.000000e+00> : vector<128x8xf32>
    %111 = tpu.matmul %109, %110, %cst_48 {dimension_numbers = #tpu.dot_dimension_numbers<[1], [0], [0], [1], [0, 0, 1, 1], [], []>} : vector<128x32xf32>, vector<32x8xf32>, vector<128x8xf32> -> vector<128x8xf32>
    %112 = vector.extract_strided_slice %111 {offsets = [0, 0], sizes = [64, 8], strides = [1, 1]} : vector<128x8xf32> to vector<64x8xf32>
    %113 = arith.mulf %112, %112 : vector<64x8xf32>
    %114 = arith.mulf %112, %113 : vector<64x8xf32>
    %cst_49 = arith.constant 4.471500e-02 : f32
    %115 = vector.broadcast %cst_49 : f32 to vector<64x8xf32>
    %116 = arith.mulf %115, %114 : vector<64x8xf32>
    %117 = arith.addf %112, %116 : vector<64x8xf32>
    %cst_50 = arith.constant 0.797884583 : f32
    %118 = vector.broadcast %cst_50 : f32 to vector<64x8xf32>
    %119 = arith.mulf %118, %117 : vector<64x8xf32>
    %120 = math.tanh %119 : vector<64x8xf32>
    %cst_51 = arith.constant 1.000000e+00 : f32
    %121 = vector.broadcast %cst_51 : f32 to vector<64x8xf32>
    %122 = arith.addf %121, %120 : vector<64x8xf32>
    %cst_52 = arith.constant 5.000000e-01 : f32
    %123 = vector.broadcast %cst_52 : f32 to vector<64x8xf32>
    %124 = arith.mulf %123, %122 : vector<64x8xf32>
    %125 = arith.mulf %112, %124 : vector<64x8xf32>
    %126 = vector.extract_strided_slice %111 {offsets = [64, 0], sizes = [64, 8], strides = [1, 1]} : vector<128x8xf32> to vector<64x8xf32>
    %127 = arith.mulf %125, %126 : vector<64x8xf32>
    %128 = tpu.transpose %127, [1, 0] : vector<64x8xf32> -> vector<8x64xf32>
    %c0_53 = arith.constant 0 : index
    %c0_54 = arith.constant 0 : index
    %129 = vector.load %arg13[%c0_53, %c0_54] : memref<64x32xf32, #tpu.memory_space<vmem>>, vector<64x32xf32>
    %cst_55 = arith.constant dense<0.000000e+00> : vector<8x32xf32>
    %130 = tpu.matmul %128, %129, %cst_55 {dimension_numbers = #tpu.dot_dimension_numbers<[1], [0], [0], [1], [0, 0, 1, 1], [], []>} : vector<8x64xf32>, vector<64x32xf32>, vector<8x32xf32> -> vector<8x32xf32>
    %131 = arith.addf %95, %130 : vector<8x32xf32>
    %132 = arith.mulf %131, %131 : vector<8x32xf32>
    %cst_56 = arith.constant dense<0.000000e+00> : vector<8xf32>
    %133 = vector.multi_reduction <add>, %132, %cst_56 [1] : vector<8x32xf32> to vector<8xf32>
    %134 = vector.shape_cast %133 : vector<8xf32> to vector<8x1xf32>
    %cst_57 = arith.constant 3.200000e+01 : f32
    %135 = vector.broadcast %cst_57 : f32 to vector<8x1xf32>
    %136 = arith.divf %134, %135 : vector<8x1xf32>
    %cst_58 = arith.constant 9.99999997E-7 : f32
    %137 = vector.broadcast %cst_58 : f32 to vector<8x1xf32>
    %138 = arith.addf %136, %137 : vector<8x1xf32>
    %139 = math.rsqrt %138 : vector<8x1xf32>
    %140 = vector.broadcast %139 : vector<8x1xf32> to vector<8x32xf32>
    %141 = arith.mulf %131, %140 : vector<8x32xf32>
    %c0_59 = arith.constant 0 : index
    %c0_60 = arith.constant 0 : index
    %142 = vector.load %arg14[%c0_59, %c0_60] : memref<1x32xf32, #tpu.memory_space<vmem>>, vector<1x32xf32>
    %143 = vector.broadcast %142 : vector<1x32xf32> to vector<8x32xf32>
    %144 = arith.mulf %141, %143 : vector<8x32xf32>
    %145 = arith.mulf %25, %25 : vector<8x32xf32>
    %cst_61 = arith.constant dense<0.000000e+00> : vector<8xf32>
    %146 = vector.multi_reduction <add>, %145, %cst_61 [1] : vector<8x32xf32> to vector<8xf32>
    %147 = vector.shape_cast %146 : vector<8xf32> to vector<8x1xf32>
    %cst_62 = arith.constant 3.200000e+01 : f32
    %148 = vector.broadcast %cst_62 : f32 to vector<8x1xf32>
    %149 = arith.divf %147, %148 : vector<8x1xf32>
    %cst_63 = arith.constant 9.99999997E-7 : f32
    %150 = vector.broadcast %cst_63 : f32 to vector<8x1xf32>
    %151 = arith.addf %149, %150 : vector<8x1xf32>
    %152 = math.rsqrt %151 : vector<8x1xf32>
    %153 = vector.broadcast %152 : vector<8x1xf32> to vector<8x32xf32>
    %154 = arith.mulf %25, %153 : vector<8x32xf32>
    %c0_64 = arith.constant 0 : index
    %c0_65 = arith.constant 0 : index
    %155 = vector.load %arg15[%c0_64, %c0_65] : memref<1x32xf32, #tpu.memory_space<vmem>>, vector<1x32xf32>
    %156 = vector.broadcast %155 : vector<1x32xf32> to vector<8x32xf32>
    %157 = arith.mulf %154, %156 : vector<8x32xf32>
    %c0_66 = arith.constant 0 : index
    %c0_67 = arith.constant 0 : index
    %158 = vector.load %arg16[%c0_66, %c0_67] : memref<96x32xf32, #tpu.memory_space<vmem>>, vector<96x32xf32>
    %159 = tpu.transpose %157, [1, 0] : vector<8x32xf32> -> vector<32x8xf32>
    %cst_68 = arith.constant dense<0.000000e+00> : vector<96x8xf32>
    %160 = tpu.matmul %158, %159, %cst_68 {dimension_numbers = #tpu.dot_dimension_numbers<[1], [0], [0], [1], [0, 0, 1, 1], [], []>} : vector<96x32xf32>, vector<32x8xf32>, vector<96x8xf32> -> vector<96x8xf32>
    %161 = vector.extract_strided_slice %160 {offsets = [0, 0], sizes = [32, 8], strides = [1, 1]} : vector<96x8xf32> to vector<32x8xf32>
    %162 = vector.extract_strided_slice %160 {offsets = [32, 0], sizes = [32, 8], strides = [1, 1]} : vector<96x8xf32> to vector<32x8xf32>
    %163 = vector.extract_strided_slice %160 {offsets = [64, 0], sizes = [32, 8], strides = [1, 1]} : vector<96x8xf32> to vector<32x8xf32>
    %c0_69 = arith.constant 0 : index
    %c0_70 = arith.constant 0 : index
    %164 = vector.load %arg17[%c0_69, %c0_70] : memref<32x32xf32, #tpu.memory_space<vmem>>, vector<32x32xf32>
    %165 = vector.extract_strided_slice %161 {offsets = [0, 0], sizes = [16, 8], strides = [1, 1]} : vector<32x8xf32> to vector<16x8xf32>
    %166 = tpu.transpose %165, [1, 0] : vector<16x8xf32> -> vector<8x16xf32>
    %167 = vector.extract_strided_slice %162 {offsets = [0, 0], sizes = [16, 8], strides = [1, 1]} : vector<32x8xf32> to vector<16x8xf32>
    %168 = vector.extract_strided_slice %163 {offsets = [0, 0], sizes = [16, 8], strides = [1, 1]} : vector<32x8xf32> to vector<16x8xf32>
    %169 = tpu.transpose %168, [1, 0] : vector<16x8xf32> -> vector<8x16xf32>
    %cst_71 = arith.constant dense<0.000000e+00> : vector<8x8xf32>
    %170 = tpu.matmul %166, %167, %cst_71 {dimension_numbers = #tpu.dot_dimension_numbers<[1], [0], [0], [1], [0, 0, 1, 1], [], []>} : vector<8x16xf32>, vector<16x8xf32>, vector<8x8xf32> -> vector<8x8xf32>
    %c0_72 = arith.constant 0 : index
    %c0_73 = arith.constant 0 : index
    %c0_74 = arith.constant 0 : index
    %171 = vector.load %arg6[%c0_72, %c0_73, %c0_74] : memref<2x8x8xf32, #tpu.memory_space<vmem>>, vector<1x8x8xf32>
    %172 = vector.shape_cast %171 : vector<1x8x8xf32> to vector<8x8xf32>
    %173 = arith.addf %170, %172 : vector<8x8xf32>
    %cst_75 = arith.constant dense<0xFF800000> : vector<8xf32>
    %174 = vector.multi_reduction <maximumf>, %173, %cst_75 [1] : vector<8x8xf32> to vector<8xf32>
    %175 = vector.shape_cast %174 : vector<8xf32> to vector<8x1xf32>
    %176 = vector.broadcast %175 : vector<8x1xf32> to vector<8x8xf32>
    %177 = arith.subf %173, %176 : vector<8x8xf32>
    %178 = math.exp %177 : vector<8x8xf32>
    %cst_76 = arith.constant dense<0.000000e+00> : vector<8xf32>
    %179 = vector.multi_reduction <add>, %178, %cst_76 [1] : vector<8x8xf32> to vector<8xf32>
    %180 = vector.shape_cast %179 : vector<8xf32> to vector<8x1xf32>
    %181 = tpu.reciprocal %180 {approx = true} : vector<8x1xf32> -> vector<8x1xf32>
    %182 = vector.broadcast %181 : vector<8x1xf32> to vector<8x8xf32>
    %183 = arith.mulf %178, %182 : vector<8x8xf32>
    %cst_77 = arith.constant dense<0.000000e+00> : vector<8x16xf32>
    %184 = tpu.matmul %183, %169, %cst_77 {dimension_numbers = #tpu.dot_dimension_numbers<[1], [0], [0], [1], [0, 0, 1, 1], [], []>} : vector<8x8xf32>, vector<8x16xf32>, vector<8x16xf32> -> vector<8x16xf32>
    %185 = vector.extract_strided_slice %164 {offsets = [0, 0], sizes = [16, 32], strides = [1, 1]} : vector<32x32xf32> to vector<16x32xf32>
    %cst_78 = arith.constant dense<0.000000e+00> : vector<8x32xf32>
    %186 = tpu.matmul %184, %185, %cst_78 {dimension_numbers = #tpu.dot_dimension_numbers<[1], [0], [0], [1], [0, 0, 1, 1], [], []>} : vector<8x16xf32>, vector<16x32xf32>, vector<8x32xf32> -> vector<8x32xf32>
    %187 = vector.extract_strided_slice %161 {offsets = [16, 0], sizes = [16, 8], strides = [1, 1]} : vector<32x8xf32> to vector<16x8xf32>
    %188 = tpu.transpose %187, [1, 0] : vector<16x8xf32> -> vector<8x16xf32>
    %189 = vector.extract_strided_slice %162 {offsets = [16, 0], sizes = [16, 8], strides = [1, 1]} : vector<32x8xf32> to vector<16x8xf32>
    %190 = vector.extract_strided_slice %163 {offsets = [16, 0], sizes = [16, 8], strides = [1, 1]} : vector<32x8xf32> to vector<16x8xf32>
    %191 = tpu.transpose %190, [1, 0] : vector<16x8xf32> -> vector<8x16xf32>
    %cst_79 = arith.constant dense<0.000000e+00> : vector<8x8xf32>
    %192 = tpu.matmul %188, %189, %cst_79 {dimension_numbers = #tpu.dot_dimension_numbers<[1], [0], [0], [1], [0, 0, 1, 1], [], []>} : vector<8x16xf32>, vector<16x8xf32>, vector<8x8xf32> -> vector<8x8xf32>
    %c1_80 = arith.constant 1 : index
    %c0_81 = arith.constant 0 : index
    %c0_82 = arith.constant 0 : index
    %193 = vector.load %arg6[%c1_80, %c0_81, %c0_82] : memref<2x8x8xf32, #tpu.memory_space<vmem>>, vector<1x8x8xf32>
    %194 = vector.shape_cast %193 : vector<1x8x8xf32> to vector<8x8xf32>
    %195 = arith.addf %192, %194 : vector<8x8xf32>
    %cst_83 = arith.constant dense<0xFF800000> : vector<8xf32>
    %196 = vector.multi_reduction <maximumf>, %195, %cst_83 [1] : vector<8x8xf32> to vector<8xf32>
    %197 = vector.shape_cast %196 : vector<8xf32> to vector<8x1xf32>
    %198 = vector.broadcast %197 : vector<8x1xf32> to vector<8x8xf32>
    %199 = arith.subf %195, %198 : vector<8x8xf32>
    %200 = math.exp %199 : vector<8x8xf32>
    %cst_84 = arith.constant dense<0.000000e+00> : vector<8xf32>
    %201 = vector.multi_reduction <add>, %200, %cst_84 [1] : vector<8x8xf32> to vector<8xf32>
    %202 = vector.shape_cast %201 : vector<8xf32> to vector<8x1xf32>
    %203 = tpu.reciprocal %202 {approx = true} : vector<8x1xf32> -> vector<8x1xf32>
    %204 = vector.broadcast %203 : vector<8x1xf32> to vector<8x8xf32>
    %205 = arith.mulf %200, %204 : vector<8x8xf32>
    %cst_85 = arith.constant dense<0.000000e+00> : vector<8x16xf32>
    %206 = tpu.matmul %205, %191, %cst_85 {dimension_numbers = #tpu.dot_dimension_numbers<[1], [0], [0], [1], [0, 0, 1, 1], [], []>} : vector<8x8xf32>, vector<8x16xf32>, vector<8x16xf32> -> vector<8x16xf32>
    %207 = vector.extract_strided_slice %164 {offsets = [16, 0], sizes = [16, 32], strides = [1, 1]} : vector<32x32xf32> to vector<16x32xf32>
    %cst_86 = arith.constant dense<0.000000e+00> : vector<8x32xf32>
    %208 = tpu.matmul %206, %207, %cst_86 {dimension_numbers = #tpu.dot_dimension_numbers<[1], [0], [0], [1], [0, 0, 1, 1], [], []>} : vector<8x16xf32>, vector<16x32xf32>, vector<8x32xf32> -> vector<8x32xf32>
    %209 = arith.addf %186, %208 : vector<8x32xf32>
    %210 = arith.addf %25, %209 : vector<8x32xf32>
    %211 = arith.mulf %210, %210 : vector<8x32xf32>
    %cst_87 = arith.constant dense<0.000000e+00> : vector<8xf32>
    %212 = vector.multi_reduction <add>, %211, %cst_87 [1] : vector<8x32xf32> to vector<8xf32>
    %213 = vector.shape_cast %212 : vector<8xf32> to vector<8x1xf32>
    %cst_88 = arith.constant 3.200000e+01 : f32
    %214 = vector.broadcast %cst_88 : f32 to vector<8x1xf32>
    %215 = arith.divf %213, %214 : vector<8x1xf32>
    %cst_89 = arith.constant 9.99999997E-7 : f32
    %216 = vector.broadcast %cst_89 : f32 to vector<8x1xf32>
    %217 = arith.addf %215, %216 : vector<8x1xf32>
    %218 = math.rsqrt %217 : vector<8x1xf32>
    %219 = vector.broadcast %218 : vector<8x1xf32> to vector<8x32xf32>
    %220 = arith.mulf %210, %219 : vector<8x32xf32>
    %c0_90 = arith.constant 0 : index
    %c0_91 = arith.constant 0 : index
    %221 = vector.load %arg18[%c0_90, %c0_91] : memref<1x32xf32, #tpu.memory_space<vmem>>, vector<1x32xf32>
    %222 = vector.broadcast %221 : vector<1x32xf32> to vector<8x32xf32>
    %223 = arith.mulf %220, %222 : vector<8x32xf32>
    %c0_92 = arith.constant 0 : index
    %c0_93 = arith.constant 0 : index
    %224 = vector.load %arg19[%c0_92, %c0_93] : memref<32x32xf32, #tpu.memory_space<vmem>>, vector<32x32xf32>
    %225 = tpu.transpose %223, [1, 0] : vector<8x32xf32> -> vector<32x8xf32>
    %cst_94 = arith.constant dense<0.000000e+00> : vector<32x8xf32>
    %226 = tpu.matmul %224, %225, %cst_94 {dimension_numbers = #tpu.dot_dimension_numbers<[1], [0], [0], [1], [0, 0, 1, 1], [], []>} : vector<32x32xf32>, vector<32x8xf32>, vector<32x8xf32> -> vector<32x8xf32>
    %c0_95 = arith.constant 0 : index
    %c0_96 = arith.constant 0 : index
    %227 = vector.load %arg20[%c0_95, %c0_96] : memref<64x32xf32, #tpu.memory_space<vmem>>, vector<64x32xf32>
    %228 = tpu.transpose %144, [1, 0] : vector<8x32xf32> -> vector<32x8xf32>
    %cst_97 = arith.constant dense<0.000000e+00> : vector<64x8xf32>
    %229 = tpu.matmul %227, %228, %cst_97 {dimension_numbers = #tpu.dot_dimension_numbers<[1], [0], [0], [1], [0, 0, 1, 1], [], []>} : vector<64x32xf32>, vector<32x8xf32>, vector<64x8xf32> -> vector<64x8xf32>
    %230 = vector.extract_strided_slice %229 {offsets = [0, 0], sizes = [32, 8], strides = [1, 1]} : vector<64x8xf32> to vector<32x8xf32>
    %231 = vector.extract_strided_slice %229 {offsets = [32, 0], sizes = [32, 8], strides = [1, 1]} : vector<64x8xf32> to vector<32x8xf32>
    %c0_98 = arith.constant 0 : index
    %c0_99 = arith.constant 0 : index
    %232 = vector.load %arg21[%c0_98, %c0_99] : memref<32x32xf32, #tpu.memory_space<vmem>>, vector<32x32xf32>
    %233 = vector.extract_strided_slice %226 {offsets = [0, 0], sizes = [16, 8], strides = [1, 1]} : vector<32x8xf32> to vector<16x8xf32>
    %234 = tpu.transpose %233, [1, 0] : vector<16x8xf32> -> vector<8x16xf32>
    %235 = vector.extract_strided_slice %230 {offsets = [0, 0], sizes = [16, 8], strides = [1, 1]} : vector<32x8xf32> to vector<16x8xf32>
    %236 = vector.extract_strided_slice %231 {offsets = [0, 0], sizes = [16, 8], strides = [1, 1]} : vector<32x8xf32> to vector<16x8xf32>
    %237 = tpu.transpose %236, [1, 0] : vector<16x8xf32> -> vector<8x16xf32>
    %cst_100 = arith.constant dense<0.000000e+00> : vector<8x8xf32>
    %238 = tpu.matmul %234, %235, %cst_100 {dimension_numbers = #tpu.dot_dimension_numbers<[1], [0], [0], [1], [0, 0, 1, 1], [], []>} : vector<8x16xf32>, vector<16x8xf32>, vector<8x8xf32> -> vector<8x8xf32>
    %239 = vector.broadcast %12 : vector<1x8xf32> to vector<8x8xf32>
    %240 = arith.addf %238, %239 : vector<8x8xf32>
    %cst_101 = arith.constant dense<0xFF800000> : vector<8xf32>
    %241 = vector.multi_reduction <maximumf>, %240, %cst_101 [1] : vector<8x8xf32> to vector<8xf32>
    %242 = vector.shape_cast %241 : vector<8xf32> to vector<8x1xf32>
    %243 = vector.broadcast %242 : vector<8x1xf32> to vector<8x8xf32>
    %244 = arith.subf %240, %243 : vector<8x8xf32>
    %245 = math.exp %244 : vector<8x8xf32>
    %cst_102 = arith.constant dense<0.000000e+00> : vector<8xf32>
    %246 = vector.multi_reduction <add>, %245, %cst_102 [1] : vector<8x8xf32> to vector<8xf32>
    %247 = vector.shape_cast %246 : vector<8xf32> to vector<8x1xf32>
    %248 = tpu.reciprocal %247 {approx = true} : vector<8x1xf32> -> vector<8x1xf32>
    %249 = vector.broadcast %248 : vector<8x1xf32> to vector<8x8xf32>
    %250 = arith.mulf %245, %249 : vector<8x8xf32>
    %cst_103 = arith.constant dense<0.000000e+00> : vector<8x16xf32>
    %251 = tpu.matmul %250, %237, %cst_103 {dimension_numbers = #tpu.dot_dimension_numbers<[1], [0], [0], [1], [0, 0, 1, 1], [], []>} : vector<8x8xf32>, vector<8x16xf32>, vector<8x16xf32> -> vector<8x16xf32>
    %252 = vector.extract_strided_slice %232 {offsets = [0, 0], sizes = [16, 32], strides = [1, 1]} : vector<32x32xf32> to vector<16x32xf32>
    %cst_104 = arith.constant dense<0.000000e+00> : vector<8x32xf32>
    %253 = tpu.matmul %251, %252, %cst_104 {dimension_numbers = #tpu.dot_dimension_numbers<[1], [0], [0], [1], [0, 0, 1, 1], [], []>} : vector<8x16xf32>, vector<16x32xf32>, vector<8x32xf32> -> vector<8x32xf32>
    %254 = vector.extract_strided_slice %226 {offsets = [16, 0], sizes = [16, 8], strides = [1, 1]} : vector<32x8xf32> to vector<16x8xf32>
    %255 = tpu.transpose %254, [1, 0] : vector<16x8xf32> -> vector<8x16xf32>
    %256 = vector.extract_strided_slice %230 {offsets = [16, 0], sizes = [16, 8], strides = [1, 1]} : vector<32x8xf32> to vector<16x8xf32>
    %257 = vector.extract_strided_slice %231 {offsets = [16, 0], sizes = [16, 8], strides = [1, 1]} : vector<32x8xf32> to vector<16x8xf32>
    %258 = tpu.transpose %257, [1, 0] : vector<16x8xf32> -> vector<8x16xf32>
    %cst_105 = arith.constant dense<0.000000e+00> : vector<8x8xf32>
    %259 = tpu.matmul %255, %256, %cst_105 {dimension_numbers = #tpu.dot_dimension_numbers<[1], [0], [0], [1], [0, 0, 1, 1], [], []>} : vector<8x16xf32>, vector<16x8xf32>, vector<8x8xf32> -> vector<8x8xf32>
    %260 = vector.broadcast %12 : vector<1x8xf32> to vector<8x8xf32>
    %261 = arith.addf %259, %260 : vector<8x8xf32>
    %cst_106 = arith.constant dense<0xFF800000> : vector<8xf32>
    %262 = vector.multi_reduction <maximumf>, %261, %cst_106 [1] : vector<8x8xf32> to vector<8xf32>
    %263 = vector.shape_cast %262 : vector<8xf32> to vector<8x1xf32>
    %264 = vector.broadcast %263 : vector<8x1xf32> to vector<8x8xf32>
    %265 = arith.subf %261, %264 : vector<8x8xf32>
    %266 = math.exp %265 : vector<8x8xf32>
    %cst_107 = arith.constant dense<0.000000e+00> : vector<8xf32>
    %267 = vector.multi_reduction <add>, %266, %cst_107 [1] : vector<8x8xf32> to vector<8xf32>
    %268 = vector.shape_cast %267 : vector<8xf32> to vector<8x1xf32>
    %269 = tpu.reciprocal %268 {approx = true} : vector<8x1xf32> -> vector<8x1xf32>
    %270 = vector.broadcast %269 : vector<8x1xf32> to vector<8x8xf32>
    %271 = arith.mulf %266, %270 : vector<8x8xf32>
    %cst_108 = arith.constant dense<0.000000e+00> : vector<8x16xf32>
    %272 = tpu.matmul %271, %258, %cst_108 {dimension_numbers = #tpu.dot_dimension_numbers<[1], [0], [0], [1], [0, 0, 1, 1], [], []>} : vector<8x8xf32>, vector<8x16xf32>, vector<8x16xf32> -> vector<8x16xf32>
    %273 = vector.extract_strided_slice %232 {offsets = [16, 0], sizes = [16, 32], strides = [1, 1]} : vector<32x32xf32> to vector<16x32xf32>
    %cst_109 = arith.constant dense<0.000000e+00> : vector<8x32xf32>
    %274 = tpu.matmul %272, %273, %cst_109 {dimension_numbers = #tpu.dot_dimension_numbers<[1], [0], [0], [1], [0, 0, 1, 1], [], []>} : vector<8x16xf32>, vector<16x32xf32>, vector<8x32xf32> -> vector<8x32xf32>
    %275 = arith.addf %253, %274 : vector<8x32xf32>
    %276 = arith.addf %210, %275 : vector<8x32xf32>
    %277 = arith.mulf %276, %276 : vector<8x32xf32>
    %cst_110 = arith.constant dense<0.000000e+00> : vector<8xf32>
    %278 = vector.multi_reduction <add>, %277, %cst_110 [1] : vector<8x32xf32> to vector<8xf32>
    %279 = vector.shape_cast %278 : vector<8xf32> to vector<8x1xf32>
    %cst_111 = arith.constant 3.200000e+01 : f32
    %280 = vector.broadcast %cst_111 : f32 to vector<8x1xf32>
    %281 = arith.divf %279, %280 : vector<8x1xf32>
    %cst_112 = arith.constant 9.99999997E-7 : f32
    %282 = vector.broadcast %cst_112 : f32 to vector<8x1xf32>
    %283 = arith.addf %281, %282 : vector<8x1xf32>
    %284 = math.rsqrt %283 : vector<8x1xf32>
    %285 = vector.broadcast %284 : vector<8x1xf32> to vector<8x32xf32>
    %286 = arith.mulf %276, %285 : vector<8x32xf32>
    %c0_113 = arith.constant 0 : index
    %c0_114 = arith.constant 0 : index
    %287 = vector.load %arg22[%c0_113, %c0_114] : memref<1x32xf32, #tpu.memory_space<vmem>>, vector<1x32xf32>
    %288 = vector.broadcast %287 : vector<1x32xf32> to vector<8x32xf32>
    %289 = arith.mulf %286, %288 : vector<8x32xf32>
    %c0_115 = arith.constant 0 : index
    %c0_116 = arith.constant 0 : index
    %290 = vector.load %arg23[%c0_115, %c0_116] : memref<128x32xf32, #tpu.memory_space<vmem>>, vector<128x32xf32>
    %291 = tpu.transpose %289, [1, 0] : vector<8x32xf32> -> vector<32x8xf32>
    %cst_117 = arith.constant dense<0.000000e+00> : vector<128x8xf32>
    %292 = tpu.matmul %290, %291, %cst_117 {dimension_numbers = #tpu.dot_dimension_numbers<[1], [0], [0], [1], [0, 0, 1, 1], [], []>} : vector<128x32xf32>, vector<32x8xf32>, vector<128x8xf32> -> vector<128x8xf32>
    %293 = vector.extract_strided_slice %292 {offsets = [0, 0], sizes = [64, 8], strides = [1, 1]} : vector<128x8xf32> to vector<64x8xf32>
    %294 = arith.mulf %293, %293 : vector<64x8xf32>
    %295 = arith.mulf %293, %294 : vector<64x8xf32>
    %cst_118 = arith.constant 4.471500e-02 : f32
    %296 = vector.broadcast %cst_118 : f32 to vector<64x8xf32>
    %297 = arith.mulf %296, %295 : vector<64x8xf32>
    %298 = arith.addf %293, %297 : vector<64x8xf32>
    %cst_119 = arith.constant 0.797884583 : f32
    %299 = vector.broadcast %cst_119 : f32 to vector<64x8xf32>
    %300 = arith.mulf %299, %298 : vector<64x8xf32>
    %301 = math.tanh %300 : vector<64x8xf32>
    %cst_120 = arith.constant 1.000000e+00 : f32
    %302 = vector.broadcast %cst_120 : f32 to vector<64x8xf32>
    %303 = arith.addf %302, %301 : vector<64x8xf32>
    %cst_121 = arith.constant 5.000000e-01 : f32
    %304 = vector.broadcast %cst_121 : f32 to vector<64x8xf32>
    %305 = arith.mulf %304, %303 : vector<64x8xf32>
    %306 = arith.mulf %293, %305 : vector<64x8xf32>
    %307 = vector.extract_strided_slice %292 {offsets = [64, 0], sizes = [64, 8], strides = [1, 1]} : vector<128x8xf32> to vector<64x8xf32>
    %308 = arith.mulf %306, %307 : vector<64x8xf32>
    %309 = tpu.transpose %308, [1, 0] : vector<64x8xf32> -> vector<8x64xf32>
    %c0_122 = arith.constant 0 : index
    %c0_123 = arith.constant 0 : index
    %310 = vector.load %arg24[%c0_122, %c0_123] : memref<64x32xf32, #tpu.memory_space<vmem>>, vector<64x32xf32>
    %cst_124 = arith.constant dense<0.000000e+00> : vector<8x32xf32>
    %311 = tpu.matmul %309, %310, %cst_124 {dimension_numbers = #tpu.dot_dimension_numbers<[1], [0], [0], [1], [0, 0, 1, 1], [], []>} : vector<8x64xf32>, vector<64x32xf32>, vector<8x32xf32> -> vector<8x32xf32>
    %312 = arith.addf %276, %311 : vector<8x32xf32>
    %313 = arith.mulf %312, %312 : vector<8x32xf32>
    %cst_125 = arith.constant dense<0.000000e+00> : vector<8xf32>
    %314 = vector.multi_reduction <add>, %313, %cst_125 [1] : vector<8x32xf32> to vector<8xf32>
    %315 = vector.shape_cast %314 : vector<8xf32> to vector<8x1xf32>
    %cst_126 = arith.constant 3.200000e+01 : f32
    %316 = vector.broadcast %cst_126 : f32 to vector<8x1xf32>
    %317 = arith.divf %315, %316 : vector<8x1xf32>
    %cst_127 = arith.constant 9.99999997E-7 : f32
    %318 = vector.broadcast %cst_127 : f32 to vector<8x1xf32>
    %319 = arith.addf %317, %318 : vector<8x1xf32>
    %320 = math.rsqrt %319 : vector<8x1xf32>
    %321 = vector.broadcast %320 : vector<8x1xf32> to vector<8x32xf32>
    %322 = arith.mulf %312, %321 : vector<8x32xf32>
    %c0_128 = arith.constant 0 : index
    %c0_129 = arith.constant 0 : index
    %323 = vector.load %arg25[%c0_128, %c0_129] : memref<1x32xf32, #tpu.memory_space<vmem>>, vector<1x32xf32>
    %324 = vector.broadcast %323 : vector<1x32xf32> to vector<8x32xf32>
    %325 = arith.mulf %322, %324 : vector<8x32xf32>
    %c0_130 = arith.constant 0 : index
    %c0_131 = arith.constant 0 : index
    %326 = vector.load %arg26[%c0_130, %c0_131] : memref<32x128xf32, #tpu.memory_space<vmem>>, vector<32x128xf32>
    %cst_132 = arith.constant dense<0.000000e+00> : vector<8x128xf32>
    %327 = tpu.matmul %325, %326, %cst_132 {dimension_numbers = #tpu.dot_dimension_numbers<[1], [0], [0], [1], [0, 0, 1, 1], [], []>} : vector<8x32xf32>, vector<32x128xf32>, vector<8x128xf32> -> vector<8x128xf32>
    %c0_133 = arith.constant 0 : index
    %c0_134 = arith.constant 0 : index
    %c0_135 = arith.constant 0 : index
    %328 = vector.load %arg27[%c0_133, %c0_134, %c0_135] : memref<1x8x128xf32, #tpu.memory_space<vmem>>, vector<1x8x128xf32>
    %329 = vector.shape_cast %328 : vector<1x8x128xf32> to vector<8x128xf32>
    %330 = vector.shape_cast %327 : vector<8x128xf32> to vector<1x8x128xf32>
    tpu.vector_store %arg27[%c0_133, %c0_134, %c0_135], %330 {strides = array<i32>} : memref<1x8x128xf32, #tpu.memory_space<vmem>>, vector<1x8x128xf32>,
    %cst_136 = arith.constant dense<0xFF800000> : vector<8xf32>
    %331 = vector.multi_reduction <maximumf>, %327, %cst_136 [1] : vector<8x128xf32> to vector<8xf32>
    %332 = vector.shape_cast %331 : vector<8xf32> to vector<8x1xf32>
    %333 = vector.broadcast %332 : vector<8x1xf32> to vector<8x128xf32>
    %334 = arith.subf %327, %333 : vector<8x128xf32>
    %335 = math.exp %334 : vector<8x128xf32>
    %cst_137 = arith.constant dense<0.000000e+00> : vector<8xf32>
    %336 = vector.multi_reduction <add>, %335, %cst_137 [1] : vector<8x128xf32> to vector<8xf32>
    %337 = vector.shape_cast %336 : vector<8xf32> to vector<8x1xf32>
    %338 = math.log %337 : vector<8x1xf32>
    %339 = arith.addf %338, %332 : vector<8x1xf32>
    %340 = vector.broadcast %5 : vector<8x1xi32> to vector<8x128xi32>
    %341 = arith.cmpi eq, %15, %340 : vector<8x128xi32>
    %342 = arith.extui %341 : vector<8x128xi1> to vector<8x128xi32>
    %343 = arith.sitofp %342 : vector<8x128xi32> to vector<8x128xf32>
    %344 = arith.mulf %327, %343 : vector<8x128xf32>
    %cst_138 = arith.constant dense<0.000000e+00> : vector<8xf32>
    %345 = vector.multi_reduction <add>, %344, %cst_138 [1] : vector<8x128xf32> to vector<8xf32>
    %346 = vector.shape_cast %345 : vector<8xf32> to vector<8x1xf32>
    %c-100_i32 = arith.constant -100 : i32
    %347 = vector.broadcast %c-100_i32 : i32 to vector<8x1xi32>
    %348 = arith.cmpi ne, %5, %347 : vector<8x1xi32>
    %349 = arith.extui %348 : vector<8x1xi1> to vector<8x1xi32>
    %350 = arith.sitofp %349 : vector<8x1xi32> to vector<8x1xf32>
    %351 = arith.subf %339, %346 : vector<8x1xf32>
    %352 = arith.mulf %351, %350 : vector<8x1xf32>
    %c0_139 = arith.constant 0 : index
    %c0_140 = arith.constant 0 : index
    %c0_141 = arith.constant 0 : index
    %353 = vector.load %arg28[%c0_139, %c0_140, %c0_141] : memref<1x8x1xf32, #tpu.memory_space<vmem>>, vector<1x8x1xf32>
    %354 = vector.shape_cast %353 : vector<1x8x1xf32> to vector<8x1xf32>
    %355 = vector.shape_cast %352 : vector<8x1xf32> to vector<1x8x1xf32>
    tpu.vector_store %arg28[%c0_139, %c0_140, %c0_141], %355 {strides = array<i32>} : memref<1x8x1xf32, #tpu.memory_space<vmem>>, vector<1x8x1xf32>,
    return
  }
  func.func @transform_0(%arg0: i32) -> (i32, i32, i32) {
    %c0_i32 = arith.constant 0 : i32
    %c0_i32_0 = arith.constant 0 : i32
    %c0_i32_1 = arith.constant 0 : i32
    return %arg0, %c0_i32, %c0_i32_0 : i32, i32, i32
  }
  func.func @transform_1(%arg0: i32) -> (i32, i32, i32) {
    %c0_i32 = arith.constant 0 : i32
    %c0_i32_0 = arith.constant 0 : i32
    %c0_i32_1 = arith.constant 0 : i32
    return %arg0, %c0_i32, %c0_i32_0 : i32, i32, i32
  }
  func.func @transform_2(%arg0: i32) -> (i32, i32, i32) {
    %c0_i32 = arith.constant 0 : i32
    %c0_i32_0 = arith.constant 0 : i32
    %c0_i32_1 = arith.constant 0 : i32
    return %arg0, %c0_i32, %c0_i32_0 : i32, i32, i32
  }
  func.func @transform_3(%arg0: i32) -> (i32, i32, i32) {
    %c0_i32 = arith.constant 0 : i32
    %c0_i32_0 = arith.constant 0 : i32
    %c0_i32_1 = arith.constant 0 : i32
    return %arg0, %c0_i32, %c0_i32_0 : i32, i32, i32
  }
  func.func @transform_4(%arg0: i32) -> (i32, i32, i32) {
    %c0_i32 = arith.constant 0 : i32
    %c0_i32_0 = arith.constant 0 : i32
    %c0_i32_1 = arith.constant 0 : i32
    %c0_i32_2 = arith.constant 0 : i32
    return %c0_i32, %c0_i32_0, %c0_i32_1 : i32, i32, i32
  }
  func.func @transform_5(%arg0: i32) -> (i32, i32, i32) {
    %c0_i32 = arith.constant 0 : i32
    %c0_i32_0 = arith.constant 0 : i32
    %c0_i32_1 = arith.constant 0 : i32
    %c0_i32_2 = arith.constant 0 : i32
    return %c0_i32, %c0_i32_0, %c0_i32_1 : i32, i32, i32
  }
  func.func @transform_6(%arg0: i32) -> (i32, i32) {
    %c0_i32 = arith.constant 0 : i32
    %c0_i32_0 = arith.constant 0 : i32
    %c0_i32_1 = arith.constant 0 : i32
    return %c0_i32, %c0_i32_0 : i32, i32
  }
  func.func @transform_7(%arg0: i32) -> (i32, i32) {
    %c0_i32 = arith.constant 0 : i32
    %c0_i32_0 = arith.constant 0 : i32
    %c0_i32_1 = arith.constant 0 : i32
    return %c0_i32, %c0_i32_0 : i32, i32
  }
  func.func @transform_8(%arg0: i32) -> (i32, i32) {
    %c0_i32 = arith.constant 0 : i32
    %c0_i32_0 = arith.constant 0 : i32
    %c0_i32_1 = arith.constant 0 : i32
    return %c0_i32, %c0_i32_0 : i32, i32
  }
  func.func @transform_9(%arg0: i32) -> (i32, i32) {
    %c0_i32 = arith.constant 0 : i32
    %c0_i32_0 = arith.constant 0 : i32
    %c0_i32_1 = arith.constant 0 : i32
    return %c0_i32, %c0_i32_0 : i32, i32
  }
  func.func @transform_10(%arg0: i32) -> (i32, i32) {
    %c0_i32 = arith.constant 0 : i32
    %c0_i32_0 = arith.constant 0 : i32
    %c0_i32_1 = arith.constant 0 : i32
    return %c0_i32, %c0_i32_0 : i32, i32
  }
  func.func @transform_11(%arg0: i32) -> (i32, i32) {
    %c0_i32 = arith.constant 0 : i32
    %c0_i32_0 = arith.constant 0 : i32
    %c0_i32_1 = arith.constant 0 : i32
    return %c0_i32, %c0_i32_0 : i32, i32
  }
  func.func @transform_12(%arg0: i32) -> (i32, i32) {
    %c0_i32 = arith.constant 0 : i32
    %c0_i32_0 = arith.constant 0 : i32
    %c0_i32_1 = arith.constant 0 : i32
    return %c0_i32, %c0_i32_0 : i32, i32
  }
  func.func @transform_13(%arg0: i32) -> (i32, i32) {
    %c0_i32 = arith.constant 0 : i32
    %c0_i32_0 = arith.constant 0 : i32
    %c0_i32_1 = arith.constant 0 : i32
    return %c0_i32, %c0_i32_0 : i32, i32
  }
  func.func @transform_14(%arg0: i32) -> (i32, i32) {
    %c0_i32 = arith.constant 0 : i32
    %c0_i32_0 = arith.constant 0 : i32
    %c0_i32_1 = arith.constant 0 : i32
    return %c0_i32, %c0_i32_0 : i32, i32
  }
  func.func @transform_15(%arg0: i32) -> (i32, i32) {
    %c0_i32 = arith.constant 0 : i32
    %c0_i32_0 = arith.constant 0 : i32
    %c0_i32_1 = arith.constant 0 : i32
    return %c0_i32, %c0_i32_0 : i32, i32
  }
  func.func @transform_16(%arg0: i32) -> (i32, i32) {
    %c0_i32 = arith.constant 0 : i32
    %c0_i32_0 = arith.constant 0 : i32
    %c0_i32_1 = arith.constant 0 : i32
    return %c0_i32, %c0_i32_0 : i32, i32
  }
  func.func @transform_17(%arg0: i32) -> (i32, i32) {
    %c0_i32 = arith.constant 0 : i32
    %c0_i32_0 = arith.constant 0 : i32
    %c0_i32_1 = arith.constant 0 : i32
    return %c0_i32, %c0_i32_0 : i32, i32
  }
  func.func @transform_18(%arg0: i32) -> (i32, i32) {
    %c0_i32 = arith.constant 0 : i32
    %c0_i32_0 = arith.constant 0 : i32
    %c0_i32_1 = arith.constant 0 : i32
    return %c0_i32, %c0_i32_0 : i32, i32
  }
  func.func @transform_19(%arg0: i32) -> (i32, i32) {
    %c0_i32 = arith.constant 0 : i32
    %c0_i32_0 = arith.constant 0 : i32
    %c0_i32_1 = arith.constant 0 : i32
    return %c0_i32, %c0_i32_0 : i32, i32
  }
  func.func @transform_20(%arg0: i32) -> (i32, i32) {
    %c0_i32 = arith.constant 0 : i32
    %c0_i32_0 = arith.constant 0 : i32
    %c0_i32_1 = arith.constant 0 : i32
    return %c0_i32, %c0_i32_0 : i32, i32
  }
  func.func @transform_21(%arg0: i32) -> (i32, i32) {
    %c0_i32 = arith.constant 0 : i32
    %c0_i32_0 = arith.constant 0 : i32
    %c0_i32_1 = arith.constant 0 : i32
    return %c0_i32, %c0_i32_0 : i32, i32
  }
  func.func @transform_22(%arg0: i32) -> (i32, i32) {
    %c0_i32 = arith.constant 0 : i32
    %c0_i32_0 = arith.constant 0 : i32
    %c0_i32_1 = arith.constant 0 : i32
    return %c0_i32, %c0_i32_0 : i32, i32
  }
  func.func @transform_23(%arg0: i32) -> (i32, i32) {
    %c0_i32 = arith.constant 0 : i32
    %c0_i32_0 = arith.constant 0 : i32
    %c0_i32_1 = arith.constant 0 : i32
    return %c0_i32, %c0_i32_0 : i32, i32
  }
  func.func @transform_24(%arg0: i32) -> (i32, i32) {
    %c0_i32 = arith.constant 0 : i32
    %c0_i32_0 = arith.constant 0 : i32
    %c0_i32_1 = arith.constant 0 : i32
    return %c0_i32, %c0_i32_0 : i32, i32
  }
  func.func @transform_25(%arg0: i32) -> (i32, i32) {
    %c0_i32 = arith.constant 0 : i32
    %c0_i32_0 = arith.constant 0 : i32
    %c0_i32_1 = arith.constant 0 : i32
    return %c0_i32, %c0_i32_0 : i32, i32
  }
  func.func @transform_26(%arg0: i32) -> (i32, i32, i32) {
    %c0_i32 = arith.constant 0 : i32
    %c0_i32_0 = arith.constant 0 : i32
    %c0_i32_1 = arith.constant 0 : i32
    return %arg0, %c0_i32, %c0_i32_0 : i32, i32, i32
  }
  func.func @transform_27(%arg0: i32) -> (i32, i32, i32) {
    %c0_i32 = arith.constant 0 : i32
    %c0_i32_0 = arith.constant 0 : i32
    %c0_i32_1 = arith.constant 0 : i32
    return %arg0, %c0_i32, %c0_i32_0 : i32, i32, i32
  }
}

</mosaic_0001>

<llo_original>
// kernel: flan_t5_forward.1
$region0: #{flan_t5_forward.1}
  #allocation0 [shape = 'u32[]', space=smem, size = 0x4, offset = 0x4, fixed_abs, tag = 'smem constant byte address 0x4 - core index']
  #allocation1 [shape = 'u32[144,128]{1,0:T(1,128)}', space=vmem, size = 0x12000, scoped, tag = 'internal scratch']
  %s0 = inlined_call_operand.vmem [shape: s32[2,8,1], index: 0, kind: input, shape index: {}]
  %s1 = inlined_call_operand.vmem [shape: s32[2,1,8], index: 1, kind: input, shape index: {}]
  %s2 = inlined_call_operand.vmem [shape: s32[2,8,1], index: 2, kind: input, shape index: {}]
  %s3 = inlined_call_operand.vmem [shape: s32[2,8,1], index: 3, kind: input, shape index: {}]
  %s4 = inlined_call_operand.vmem [shape: f32[2,8,8], index: 4, kind: input, shape index: {}]
  %s5 = inlined_call_operand.vmem [shape: f32[2,8,8], index: 5, kind: input, shape index: {}]
  %s6 = inlined_call_operand.vmem [shape: f32[128,32], index: 6, kind: input, shape index: {}]
  %s7 = inlined_call_operand.vmem [shape: f32[1,32], index: 7, kind: input, shape index: {}]
  %s8 = inlined_call_operand.vmem [shape: f32[96,32], index: 8, kind: input, shape index: {}]
  %s9 = inlined_call_operand.vmem [shape: f32[32,32], index: 9, kind: input, shape index: {}]
  %s10 = inlined_call_operand.vmem [shape: f32[1,32], index: 10, kind: input, shape index: {}]
  %s11 = inlined_call_operand.vmem [shape: f32[128,32], index: 11, kind: input, shape index: {}]
  %s12 = inlined_call_operand.vmem [shape: f32[64,32], index: 12, kind: input, shape index: {}]
  %s13 = inlined_call_operand.vmem [shape: f32[1,32], index: 13, kind: input, shape index: {}]
  %s14 = inlined_call_operand.vmem [shape: f32[1,32], index: 14, kind: input, shape index: {}]
  %s15 = inlined_call_operand.vmem [shape: f32[96,32], index: 15, kind: input, shape index: {}]
  %s16 = inlined_call_operand.vmem [shape: f32[32,32], index: 16, kind: input, shape index: {}]
  %s17 = inlined_call_operand.vmem [shape: f32[1,32], index: 17, kind: input, shape index: {}]
  %s18 = inlined_call_operand.vmem [shape: f32[32,32], index: 18, kind: input, shape index: {}]
  %s19 = inlined_call_operand.vmem [shape: f32[64,32], index: 19, kind: input, shape index: {}]
  %s20 = inlined_call_operand.vmem [shape: f32[32,32], index: 20, kind: input, shape index: {}]
  %s21 = inlined_call_operand.vmem [shape: f32[1,32], index: 21, kind: input, shape index: {}]
  %s22 = inlined_call_operand.vmem [shape: f32[128,32], index: 22, kind: input, shape index: {}]
  %s23 = inlined_call_operand.vmem [shape: f32[64,32], index: 23, kind: input, shape index: {}]
  %s24 = inlined_call_operand.vmem [shape: f32[1,32], index: 24, kind: input, shape index: {}]
  %s25 = inlined_call_operand.vmem [shape: f32[32,128], index: 25, kind: input, shape index: {}]
  %s26 = inlined_call_operand.hbm [shape: f32[2,8,128], index: 26, kind: output, shape index: {0}]
  %s27 = inlined_call_operand.vmem [shape: f32[2,8,1], index: 27, kind: output, shape index: {1}]
  %28 = xla_tuple %s26, %s27
  %s29 = sld [smem:[#allocation0]]
  $region145: #{flan_t5_forward.1} parent=0
    _
  %s31 = ssub.s32 1, %s29
  %s32 = scalar_select 0, %s31, %s29
  $region1: #{flan_t5_forward.1} parent=0
    #allocation2 [shape = 'u8[8192]{0}', space=vmem, size = 0x2000, scoped, tag = 'output window, operand 0']
    #allocation3 [shape = 's32[2]{0}', space=sflag, size = 0x8, scoped, tag = 'scoped memory for flan_t5_forward.1']
    %33 = vsyncpa [#allocation3], 0
    %s34 = scalar_lea.sflag [#allocation3], 1
    %35 = vsyncpa %s34, 0
    loop: start=0, step=1, limit=4
    $region2: #{flan_t5_forward.1} parent=1 // loop_pre_header
      _
    $region3: #{flan_t5_forward.1} parent=1 // loop_header
      %s37 = sphi 0, %s41
      %p38 = scmp.ge.s32.totalorder %s37, 4
      %s47 = sphi 0, %s49
      %s50 = sphi 0, %s47
      %s51 = sphi 0, %s50
      %s67 = sphi 0, %s51
      %s73 = sphi 0, %s75
      %s76 = sphi 0, %s73
      %s77 = sphi 0, %s76
      %s93 = sphi 0, %s77
      %s99 = sphi 0, %s101
      %s102 = sphi 0, %s99
      %s103 = sphi 0, %s102
      %s119 = sphi 0, %s103
      %s125 = sphi 0, %s127
      %s128 = sphi 0, %s125
      %s129 = sphi 0, %s128
      %s145 = sphi 0, %s129
      %s149 = sphi 0, %s149
      %s151 = sphi 0, %s149
      %s152 = sphi 0, %s151
      %s166 = sphi 0, %s152
      %s170 = sphi 0, %s170
      %s172 = sphi 0, %s170
      %s173 = sphi 0, %s172
      %s187 = sphi 0, %s173
      %s191 = sphi 0, %s191
      %s193 = sphi 0, %s191
      %s194 = sphi 0, %s193
      %s208 = sphi 0, %s194
      %s212 = sphi 0, %s212
      %s214 = sphi 0, %s212
      %s215 = sphi 0, %s214
      %s229 = sphi 0, %s215
      %s233 = sphi 0, %s233
      %s235 = sphi 0, %s233
      %s236 = sphi 0, %s235
      %s250 = sphi 0, %s236
      %s254 = sphi 0, %s254
      %s256 = sphi 0, %s254
      %s257 = sphi 0, %s256
      %s271 = sphi 0, %s257
      %s275 = sphi 0, %s275
      %s277 = sphi 0, %s275
      %s278 = sphi 0, %s277
      %s292 = sphi 0, %s278
      %s296 = sphi 0, %s296
      %s298 = sphi 0, %s296
      %s299 = sphi 0, %s298
      %s313 = sphi 0, %s299
      %s317 = sphi 0, %s317
      %s319 = sphi 0, %s317
      %s320 = sphi 0, %s319
      %s334 = sphi 0, %s320
      %s338 = sphi 0, %s338
      %s340 = sphi 0, %s338
      %s341 = sphi 0, %s340
      %s355 = sphi 0, %s341
      %s359 = sphi 0, %s359
      %s361 = sphi 0, %s359
      %s362 = sphi 0, %s361
      %s376 = sphi 0, %s362
      %s380 = sphi 0, %s380
      %s382 = sphi 0, %s380
      %s383 = sphi 0, %s382
      %s397 = sphi 0, %s383
      %s401 = sphi 0, %s401
      %s403 = sphi 0, %s401
      %s404 = sphi 0, %s403
      %s418 = sphi 0, %s404
      %s422 = sphi 0, %s422
      %s424 = sphi 0, %s422
      %s425 = sphi 0, %s424
      %s439 = sphi 0, %s425
      %s443 = sphi 0, %s443
      %s445 = sphi 0, %s443
      %s446 = sphi 0, %s445
      %s460 = sphi 0, %s446
      %s464 = sphi 0, %s464
      %s466 = sphi 0, %s464
      %s467 = sphi 0, %s466
      %s481 = sphi 0, %s467
      %s485 = sphi 0, %s485
      %s487 = sphi 0, %s485
      %s488 = sphi 0, %s487
      %s502 = sphi 0, %s488
      %s506 = sphi 0, %s506
      %s508 = sphi 0, %s506
      %s509 = sphi 0, %s508
      %s523 = sphi 0, %s509
      %s527 = sphi 0, %s527
      %s529 = sphi 0, %s527
      %s530 = sphi 0, %s529
      %s544 = sphi 0, %s530
      %s548 = sphi 0, %s548
      %s550 = sphi 0, %s548
      %s551 = sphi 0, %s550
      %s565 = sphi 0, %s551
      %s569 = sphi 0, %s569
      %s571 = sphi 0, %s569
      %s572 = sphi 0, %s571
      %s586 = sphi 0, %s572
      %s590 = sphi 0, %s590
      %s592 = sphi 0, %s590
      %s593 = sphi 0, %s592
      %s607 = sphi 0, %s593
      %s613 = sphi 0, %s615
      %s616 = sphi 0, %s613
      %s617 = sphi 0, %s616
      %s633 = sphi 0, %s617
      %s639 = sphi 0, %s641
      %s642 = sphi 0, %s639
      %s643 = sphi 0, %s642
      %s659 = sphi 0, %s643
    $region4: #{flan_t5_forward.1} parent=1 // loop_header_branch
      %40 = sbr.rel (%p38) target = $region8
    $region5: #{flan_t5_forward.1} parent=1 // loop_body
      %s42 = ssub.s32 %s37, 1
      %s43 = ssub.s32 %s37, 2
      %s44 = sadd.s32 %s37, 1
      %s45 = ssub.s32 %s37, %s44
      %p46 = scmp.eq.s32.totalorder %s45, 0
      %s48 = sadd.s32 %s47, 1
      %s49 = scalar_select %p46, %s47, %s48
      %p52 = pneg %p46
      %p53 = scmp.eq.s32.totalorder %s37, 1
      %p54 = por %p52, %p53
      %p55 = scmp.ne.s32.totalorder %s47, %s50
      %p56 = scmp.eq.s32.totalorder %s37, 0
      %p57 = por %p55, %p56
      %p58 = scmp.ne.s32.totalorder %s47, %s50
      %p59 = scmp.eq.s32.totalorder %s42, 1
      %p60 = por %p58, %p59
      %p61 = scmp.ne.s32.totalorder %s50, %s51
      %p62 = scmp.eq.s32.totalorder %s42, 0
      %p63 = por %p61, %p62
      %p64 = scmp.ne.s32.totalorder %s50, %s51
      %p65 = scmp.eq.s32.totalorder %s43, 1
      %p66 = por %p64, %p65
      %p68 = scmp.ne.s32.totalorder %s51, %s67
      %p69 = scmp.eq.s32.totalorder %s43, 0
      %p70 = por %p68, %p69
      %s71 = ssub.s32 %s37, %s44
      %p72 = scmp.eq.s32.totalorder %s71, 0
      %s74 = sadd.s32 %s73, 1
      %s75 = scalar_select %p72, %s73, %s74
      %p78 = pneg %p72
      %p79 = scmp.eq.s32.totalorder %s37, 1
      %p80 = por %p78, %p79
      %p81 = scmp.ne.s32.totalorder %s73, %s76
      %p82 = scmp.eq.s32.totalorder %s37, 0
      %p83 = por %p81, %p82
      %p84 = scmp.ne.s32.totalorder %s73, %s76
      %p85 = scmp.eq.s32.totalorder %s42, 1
      %p86 = por %p84, %p85
      %p87 = scmp.ne.s32.totalorder %s76, %s77
      %p88 = scmp.eq.s32.totalorder %s42, 0
      %p89 = por %p87, %p88
      %p90 = scmp.ne.s32.totalorder %s76, %s77
      %p91 = scmp.eq.s32.totalorder %s43, 1
      %p92 = por %p90, %p91
      %p94 = scmp.ne.s32.totalorder %s77, %s93
      %p95 = scmp.eq.s32.totalorder %s43, 0
      %p96 = por %p94, %p95
      %s97 = ssub.s32 %s37, %s44
      %p98 = scmp.eq.s32.totalorder %s97, 0
      %s100 = sadd.s32 %s99, 1
      %s101 = scalar_select %p98, %s99, %s100
      %p104 = pneg %p98
      %p105 = scmp.eq.s32.totalorder %s37, 1
      %p106 = por %p104, %p105
      %p107 = scmp.ne.s32.totalorder %s99, %s102
      %p108 = scmp.eq.s32.totalorder %s37, 0
      %p109 = por %p107, %p108
      %p110 = scmp.ne.s32.totalorder %s99, %s102
      %p111 = scmp.eq.s32.totalorder %s42, 1
      %p112 = por %p110, %p111
      %p113 = scmp.ne.s32.totalorder %s102, %s103
      %p114 = scmp.eq.s32.totalorder %s42, 0
      %p115 = por %p113, %p114
      %p116 = scmp.ne.s32.totalorder %s102, %s103
      %p117 = scmp.eq.s32.totalorder %s43, 1
      %p118 = por %p116, %p117
      %p120 = scmp.ne.s32.totalorder %s103, %s119
      %p121 = scmp.eq.s32.totalorder %s43, 0
      %p122 = por %p120, %p121
      %s123 = ssub.s32 %s37, %s44
      %p124 = scmp.eq.s32.totalorder %s123, 0
      %s126 = sadd.s32 %s125, 1
      %s127 = scalar_select %p124, %s125, %s126
      %p130 = pneg %p124
      %p131 = scmp.eq.s32.totalorder %s37, 1
      %p132 = por %p130, %p131
      %p133 = scmp.ne.s32.totalorder %s125, %s128
      %p134 = scmp.eq.s32.totalorder %s37, 0
      %p135 = por %p133, %p134
      %p136 = scmp.ne.s32.totalorder %s125, %s128
      %p137 = scmp.eq.s32.totalorder %s42, 1
      %p138 = por %p136, %p137
      %p139 = scmp.ne.s32.totalorder %s128, %s129
      %p140 = scmp.eq.s32.totalorder %s42, 0
      %p141 = por %p139, %p140
      %p142 = scmp.ne.s32.totalorder %s128, %s129
      %p143 = scmp.eq.s32.totalorder %s43, 1
      %p144 = por %p142, %p143
      %p146 = scmp.ne.s32.totalorder %s129, %s145
      %p147 = scmp.eq.s32.totalorder %s43, 0
      %p148 = por %p146, %p147
      %s150 = sadd.s32 %s149, 1
      %p153 = scmp.eq.s32.totalorder %s37, 1
      %p154 = scmp.ne.s32.totalorder %s149, %s151
      %p155 = scmp.eq.s32.totalorder %s37, 0
      %p156 = por %p154, %p155
      %p157 = scmp.ne.s32.totalorder %s149, %s151
      %p158 = scmp.eq.s32.totalorder %s42, 1
      %p159 = por %p157, %p158
      %p160 = scmp.ne.s32.totalorder %s151, %s152
      %p161 = scmp.eq.s32.totalorder %s42, 0
      %p162 = por %p160, %p161
      %p163 = scmp.ne.s32.totalorder %s151, %s152
      %p164 = scmp.eq.s32.totalorder %s43, 1
      %p165 = por %p163, %p164
      %p167 = scmp.ne.s32.totalorder %s152, %s166
      %p168 = scmp.eq.s32.totalorder %s43, 0
      %p169 = por %p167, %p168
      %s171 = sadd.s32 %s170, 1
      %p174 = scmp.eq.s32.totalorder %s37, 1
      %p175 = scmp.ne.s32.totalorder %s170, %s172
      %p176 = scmp.eq.s32.totalorder %s37, 0
      %p177 = por %p175, %p176
      %p178 = scmp.ne.s32.totalorder %s170, %s172
      %p179 = scmp.eq.s32.totalorder %s42, 1
      %p180 = por %p178, %p179
      %p181 = scmp.ne.s32.totalorder %s172, %s173
      %p182 = scmp.eq.s32.totalorder %s42, 0
      %p183 = por %p181, %p182
      %p184 = scmp.ne.s32.totalorder %s172, %s173
      %p185 = scmp.eq.s32.totalorder %s43, 1
      %p186 = por %p184, %p185
      %p188 = scmp.ne.s32.totalorder %s173, %s187
      %p189 = scmp.eq.s32.totalorder %s43, 0
      %p190 = por %p188, %p189
      %s192 = sadd.s32 %s191, 1
      %p195 = scmp.eq.s32.totalorder %s37, 1
      %p196 = scmp.ne.s32.totalorder %s191, %s193
      %p197 = scmp.eq.s32.totalorder %s37, 0
      %p198 = por %p196, %p197
      %p199 = scmp.ne.s32.totalorder %s191, %s193
      %p200 = scmp.eq.s32.totalorder %s42, 1
      %p201 = por %p199, %p200
      %p202 = scmp.ne.s32.totalorder %s193, %s194
      %p203 = scmp.eq.s32.totalorder %s42, 0
      %p204 = por %p202, %p203
      %p205 = scmp.ne.s32.totalorder %s193, %s194
      %p206 = scmp.eq.s32.totalorder %s43, 1
      %p207 = por %p205, %p206
      %p209 = scmp.ne.s32.totalorder %s194, %s208
      %p210 = scmp.eq.s32.totalorder %s43, 0
      %p211 = por %p209, %p210
      %s213 = sadd.s32 %s212, 1
      %p216 = scmp.eq.s32.totalorder %s37, 1
      %p217 = scmp.ne.s32.totalorder %s212, %s214
      %p218 = scmp.eq.s32.totalorder %s37, 0
      %p219 = por %p217, %p218
      %p220 = scmp.ne.s32.totalorder %s212, %s214
      %p221 = scmp.eq.s32.totalorder %s42, 1
      %p222 = por %p220, %p221
      %p223 = scmp.ne.s32.totalorder %s214, %s215
      %p224 = scmp.eq.s32.totalorder %s42, 0
      %p225 = por %p223, %p224
      %p226 = scmp.ne.s32.totalorder %s214, %s215
      %p227 = scmp.eq.s32.totalorder %s43, 1
      %p228 = por %p226, %p227
      %p230 = scmp.ne.s32.totalorder %s215, %s229
      %p231 = scmp.eq.s32.totalorder %s43, 0
      %p232 = por %p230, %p231
      %s234 = sadd.s32 %s233, 1
      %p237 = scmp.eq.s32.totalorder %s37, 1
      %p238 = scmp.ne.s32.totalorder %s233, %s235
      %p239 = scmp.eq.s32.totalorder %s37, 0
      %p240 = por %p238, %p239
      %p241 = scmp.ne.s32.totalorder %s233, %s235
      %p242 = scmp.eq.s32.totalorder %s42, 1
      %p243 = por %p241, %p242
      %p244 = scmp.ne.s32.totalorder %s235, %s236
      %p245 = scmp.eq.s32.totalorder %s42, 0
      %p246 = por %p244, %p245
      %p247 = scmp.ne.s32.totalorder %s235, %s236
      %p248 = scmp.eq.s32.totalorder %s43, 1
      %p249 = por %p247, %p248
      %p251 = scmp.ne.s32.totalorder %s236, %s250
      %p252 = scmp.eq.s32.totalorder %s43, 0
      %p253 = por %p251, %p252
      %s255 = sadd.s32 %s254, 1
      %p258 = scmp.eq.s32.totalorder %s37, 1
      %p259 = scmp.ne.s32.totalorder %s254, %s256
      %p260 = scmp.eq.s32.totalorder %s37, 0
      %p261 = por %p259, %p260
      %p262 = scmp.ne.s32.totalorder %s254, %s256
      %p263 = scmp.eq.s32.totalorder %s42, 1
      %p264 = por %p262, %p263
      %p265 = scmp.ne.s32.totalorder %s256, %s257
      %p266 = scmp.eq.s32.totalorder %s42, 0
      %p267 = por %p265, %p266
      %p268 = scmp.ne.s32.totalorder %s256, %s257
      %p269 = scmp.eq.s32.totalorder %s43, 1
      %p270 = por %p268, %p269
      %p272 = scmp.ne.s32.totalorder %s257, %s271
      %p273 = scmp.eq.s32.totalorder %s43, 0
      %p274 = por %p272, %p273
      %s276 = sadd.s32 %s275, 1
      %p279 = scmp.eq.s32.totalorder %s37, 1
      %p280 = scmp.ne.s32.totalorder %s275, %s277
      %p281 = scmp.eq.s32.totalorder %s37, 0
      %p282 = por %p280, %p281
      %p283 = scmp.ne.s32.totalorder %s275, %s277
      %p284 = scmp.eq.s32.totalorder %s42, 1
      %p285 = por %p283, %p284
      %p286 = scmp.ne.s32.totalorder %s277, %s278
      %p287 = scmp.eq.s32.totalorder %s42, 0
      %p288 = por %p286, %p287
      %p289 = scmp.ne.s32.totalorder %s277, %s278
      %p290 = scmp.eq.s32.totalorder %s43, 1
      %p291 = por %p289, %p290
      %p293 = scmp.ne.s32.totalorder %s278, %s292
      %p294 = scmp.eq.s32.totalorder %s43, 0
      %p295 = por %p293, %p294
      %s297 = sadd.s32 %s296, 1
      %p300 = scmp.eq.s32.totalorder %s37, 1
      %p301 = scmp.ne.s32.totalorder %s296, %s298
      %p302 = scmp.eq.s32.totalorder %s37, 0
      %p303 = por %p301, %p302
      %p304 = scmp.ne.s32.totalorder %s296, %s298
      %p305 = scmp.eq.s32.totalorder %s42, 1
      %p306 = por %p304, %p305
      %p307 = scmp.ne.s32.totalorder %s298, %s299
      %p308 = scmp.eq.s32.totalorder %s42, 0
      %p309 = por %p307, %p308
      %p310 = scmp.ne.s32.totalorder %s298, %s299
      %p311 = scmp.eq.s32.totalorder %s43, 1
      %p312 = por %p310, %p311
      %p314 = scmp.ne.s32.totalorder %s299, %s313
      %p315 = scmp.eq.s32.totalorder %s43, 0
      %p316 = por %p314, %p315
      %s318 = sadd.s32 %s317, 1
      %p321 = scmp.eq.s32.totalorder %s37, 1
      %p322 = scmp.ne.s32.totalorder %s317, %s319
      %p323 = scmp.eq.s32.totalorder %s37, 0
      %p324 = por %p322, %p323
      %p325 = scmp.ne.s32.totalorder %s317, %s319
      %p326 = scmp.eq.s32.totalorder %s42, 1
      %p327 = por %p325, %p326
      %p328 = scmp.ne.s32.totalorder %s319, %s320
      %p329 = scmp.eq.s32.totalorder %s42, 0
      %p330 = por %p328, %p329
      %p331 = scmp.ne.s32.totalorder %s319, %s320
      %p332 = scmp.eq.s32.totalorder %s43, 1
      %p333 = por %p331, %p332
      %p335 = scmp.ne.s32.totalorder %s320, %s334
      %p336 = scmp.eq.s32.totalorder %s43, 0
      %p337 = por %p335, %p336
      %s339 = sadd.s32 %s338, 1
      %p342 = scmp.eq.s32.totalorder %s37, 1
      %p343 = scmp.ne.s32.totalorder %s338, %s340
      %p344 = scmp.eq.s32.totalorder %s37, 0
      %p345 = por %p343, %p344
      %p346 = scmp.ne.s32.totalorder %s338, %s340
      %p347 = scmp.eq.s32.totalorder %s42, 1
      %p348 = por %p346, %p347
      %p349 = scmp.ne.s32.totalorder %s340, %s341
      %p350 = scmp.eq.s32.totalorder %s42, 0
      %p351 = por %p349, %p350
      %p352 = scmp.ne.s32.totalorder %s340, %s341
      %p353 = scmp.eq.s32.totalorder %s43, 1
      %p354 = por %p352, %p353
      %p356 = scmp.ne.s32.totalorder %s341, %s355
      %p357 = scmp.eq.s32.totalorder %s43, 0
      %p358 = por %p356, %p357
      %s360 = sadd.s32 %s359, 1
      %p363 = scmp.eq.s32.totalorder %s37, 1
      %p364 = scmp.ne.s32.totalorder %s359, %s361
      %p365 = scmp.eq.s32.totalorder %s37, 0
      %p366 = por %p364, %p365
      %p367 = scmp.ne.s32.totalorder %s359, %s361
      %p368 = scmp.eq.s32.totalorder %s42, 1
      %p369 = por %p367, %p368
      %p370 = scmp.ne.s32.totalorder %s361, %s362
      %p371 = scmp.eq.s32.totalorder %s42, 0
      %p372 = por %p370, %p371
      %p373 = scmp.ne.s32.totalorder %s361, %s362
      %p374 = scmp.eq.s32.totalorder %s43, 1
      %p375 = por %p373, %p374
      %p377 = scmp.ne.s32.totalorder %s362, %s376
      %p378 = scmp.eq.s32.totalorder %s43, 0
      %p379 = por %p377, %p378
      %s381 = sadd.s32 %s380, 1
      %p384 = scmp.eq.s32.totalorder %s37, 1
      %p385 = scmp.ne.s32.totalorder %s380, %s382
      %p386 = scmp.eq.s32.totalorder %s37, 0
      %p387 = por %p385, %p386
      %p388 = scmp.ne.s32.totalorder %s380, %s382
      %p389 = scmp.eq.s32.totalorder %s42, 1
      %p390 = por %p388, %p389
      %p391 = scmp.ne.s32.totalorder %s382, %s383
      %p392 = scmp.eq.s32.totalorder %s42, 0
      %p393 = por %p391, %p392
      %p394 = scmp.ne.s32.totalorder %s382, %s383
      %p395 = scmp.eq.s32.totalorder %s43, 1
      %p396 = por %p394, %p395
      %p398 = scmp.ne.s32.totalorder %s383, %s397
      %p399 = scmp.eq.s32.totalorder %s43, 0
      %p400 = por %p398, %p399
      %s402 = sadd.s32 %s401, 1
      %p405 = scmp.eq.s32.totalorder %s37, 1
      %p406 = scmp.ne.s32.totalorder %s401, %s403
      %p407 = scmp.eq.s32.totalorder %s37, 0
      %p408 = por %p406, %p407
      %p409 = scmp.ne.s32.totalorder %s401, %s403
      %p410 = scmp.eq.s32.totalorder %s42, 1
      %p411 = por %p409, %p410
      %p412 = scmp.ne.s32.totalorder %s403, %s404
      %p413 = scmp.eq.s32.totalorder %s42, 0
      %p414 = por %p412, %p413
      %p415 = scmp.ne.s32.totalorder %s403, %s404
      %p416 = scmp.eq.s32.totalorder %s43, 1
      %p417 = por %p415, %p416
      %p419 = scmp.ne.s32.totalorder %s404, %s418
      %p420 = scmp.eq.s32.totalorder %s43, 0
      %p421 = por %p419, %p420
      %s423 = sadd.s32 %s422, 1
      %p426 = scmp.eq.s32.totalorder %s37, 1
      %p427 = scmp.ne.s32.totalorder %s422, %s424
      %p428 = scmp.eq.s32.totalorder %s37, 0
      %p429 = por %p427, %p428
      %p430 = scmp.ne.s32.totalorder %s422, %s424
      %p431 = scmp.eq.s32.totalorder %s42, 1
      %p432 = por %p430, %p431
      %p433 = scmp.ne.s32.totalorder %s424, %s425
      %p434 = scmp.eq.s32.totalorder %s42, 0
      %p435 = por %p433, %p434
      %p436 = scmp.ne.s32.totalorder %s424, %s425
      %p437 = scmp.eq.s32.totalorder %s43, 1
      %p438 = por %p436, %p437
      %p440 = scmp.ne.s32.totalorder %s425, %s439
      %p441 = scmp.eq.s32.totalorder %s43, 0
      %p442 = por %p440, %p441
      %s444 = sadd.s32 %s443, 1
      %p447 = scmp.eq.s32.totalorder %s37, 1
      %p448 = scmp.ne.s32.totalorder %s443, %s445
      %p449 = scmp.eq.s32.totalorder %s37, 0
      %p450 = por %p448, %p449
      %p451 = scmp.ne.s32.totalorder %s443, %s445
      %p452 = scmp.eq.s32.totalorder %s42, 1
      %p453 = por %p451, %p452
      %p454 = scmp.ne.s32.totalorder %s445, %s446
      %p455 = scmp.eq.s32.totalorder %s42, 0
      %p456 = por %p454, %p455
      %p457 = scmp.ne.s32.totalorder %s445, %s446
      %p458 = scmp.eq.s32.totalorder %s43, 1
      %p459 = por %p457, %p458
      %p461 = scmp.ne.s32.totalorder %s446, %s460
      %p462 = scmp.eq.s32.totalorder %s43, 0
      %p463 = por %p461, %p462
      %s465 = sadd.s32 %s464, 1
      %p468 = scmp.eq.s32.totalorder %s37, 1
      %p469 = scmp.ne.s32.totalorder %s464, %s466
      %p470 = scmp.eq.s32.totalorder %s37, 0
      %p471 = por %p469, %p470
      %p472 = scmp.ne.s32.totalorder %s464, %s466
      %p473 = scmp.eq.s32.totalorder %s42, 1
      %p474 = por %p472, %p473
      %p475 = scmp.ne.s32.totalorder %s466, %s467
      %p476 = scmp.eq.s32.totalorder %s42, 0
      %p477 = por %p475, %p476
      %p478 = scmp.ne.s32.totalorder %s466, %s467
      %p479 = scmp.eq.s32.totalorder %s43, 1
      %p480 = por %p478, %p479
      %p482 = scmp.ne.s32.totalorder %s467, %s481
      %p483 = scmp.eq.s32.totalorder %s43, 0
      %p484 = por %p482, %p483
      %s486 = sadd.s32 %s485, 1
      %p489 = scmp.eq.s32.totalorder %s37, 1
      %p490 = scmp.ne.s32.totalorder %s485, %s487
      %p491 = scmp.eq.s32.totalorder %s37, 0
      %p492 = por %p490, %p491
      %p493 = scmp.ne.s32.totalorder %s485, %s487
      %p494 = scmp.eq.s32.totalorder %s42, 1
      %p495 = por %p493, %p494
      %p496 = scmp.ne.s32.totalorder %s487, %s488
      %p497 = scmp.eq.s32.totalorder %s42, 0
      %p498 = por %p496, %p497
      %p499 = scmp.ne.s32.totalorder %s487, %s488
      %p500 = scmp.eq.s32.totalorder %s43, 1
      %p501 = por %p499, %p500
      %p503 = scmp.ne.s32.totalorder %s488, %s502
      %p504 = scmp.eq.s32.totalorder %s43, 0
      %p505 = por %p503, %p504
      %s507 = sadd.s32 %s506, 1
      %p510 = scmp.eq.s32.totalorder %s37, 1
      %p511 = scmp.ne.s32.totalorder %s506, %s508
      %p512 = scmp.eq.s32.totalorder %s37, 0
      %p513 = por %p511, %p512
      %p514 = scmp.ne.s32.totalorder %s506, %s508
      %p515 = scmp.eq.s32.totalorder %s42, 1
      %p516 = por %p514, %p515
      %p517 = scmp.ne.s32.totalorder %s508, %s509
      %p518 = scmp.eq.s32.totalorder %s42, 0
      %p519 = por %p517, %p518
      %p520 = scmp.ne.s32.totalorder %s508, %s509
      %p521 = scmp.eq.s32.totalorder %s43, 1
      %p522 = por %p520, %p521
      %p524 = scmp.ne.s32.totalorder %s509, %s523
      %p525 = scmp.eq.s32.totalorder %s43, 0
      %p526 = por %p524, %p525
      %s528 = sadd.s32 %s527, 1
      %p531 = scmp.eq.s32.totalorder %s37, 1
      %p532 = scmp.ne.s32.totalorder %s527, %s529
      %p533 = scmp.eq.s32.totalorder %s37, 0
      %p534 = por %p532, %p533
      %p535 = scmp.ne.s32.totalorder %s527, %s529
      %p536 = scmp.eq.s32.totalorder %s42, 1
      %p537 = por %p535, %p536
      %p538 = scmp.ne.s32.totalorder %s529, %s530
      %p539 = scmp.eq.s32.totalorder %s42, 0
      %p540 = por %p538, %p539
      %p541 = scmp.ne.s32.totalorder %s529, %s530
      %p542 = scmp.eq.s32.totalorder %s43, 1
      %p543 = por %p541, %p542
      %p545 = scmp.ne.s32.totalorder %s530, %s544
      %p546 = scmp.eq.s32.totalorder %s43, 0
      %p547 = por %p545, %p546
      %s549 = sadd.s32 %s548, 1
      %p552 = scmp.eq.s32.totalorder %s37, 1
      %p553 = scmp.ne.s32.totalorder %s548, %s550
      %p554 = scmp.eq.s32.totalorder %s37, 0
      %p555 = por %p553, %p554
      %p556 = scmp.ne.s32.totalorder %s548, %s550
      %p557 = scmp.eq.s32.totalorder %s42, 1
      %p558 = por %p556, %p557
      %p559 = scmp.ne.s32.totalorder %s550, %s551
      %p560 = scmp.eq.s32.totalorder %s42, 0
      %p561 = por %p559, %p560
      %p562 = scmp.ne.s32.totalorder %s550, %s551
      %p563 = scmp.eq.s32.totalorder %s43, 1
      %p564 = por %p562, %p563
      %p566 = scmp.ne.s32.totalorder %s551, %s565
      %p567 = scmp.eq.s32.totalorder %s43, 0
      %p568 = por %p566, %p567
      %s570 = sadd.s32 %s569, 1
      %p573 = scmp.eq.s32.totalorder %s37, 1
      %p574 = scmp.ne.s32.totalorder %s569, %s571
      %p575 = scmp.eq.s32.totalorder %s37, 0
      %p576 = por %p574, %p575
      %p577 = scmp.ne.s32.totalorder %s569, %s571
      %p578 = scmp.eq.s32.totalorder %s42, 1
      %p579 = por %p577, %p578
      %p580 = scmp.ne.s32.totalorder %s571, %s572
      %p581 = scmp.eq.s32.totalorder %s42, 0
      %p582 = por %p580, %p581
      %p583 = scmp.ne.s32.totalorder %s571, %s572
      %p584 = scmp.eq.s32.totalorder %s43, 1
      %p585 = por %p583, %p584
      %p587 = scmp.ne.s32.totalorder %s572, %s586
      %p588 = scmp.eq.s32.totalorder %s43, 0
      %p589 = por %p587, %p588
      %s591 = sadd.s32 %s590, 1
      %p594 = scmp.eq.s32.totalorder %s37, 1
      %p595 = scmp.ne.s32.totalorder %s590, %s592
      %p596 = scmp.eq.s32.totalorder %s37, 0
      %p597 = por %p595, %p596
      %p598 = scmp.ne.s32.totalorder %s590, %s592
      %p599 = scmp.eq.s32.totalorder %s42, 1
      %p600 = por %p598, %p599
      %p601 = scmp.ne.s32.totalorder %s592, %s593
      %p602 = scmp.eq.s32.totalorder %s42, 0
      %p603 = por %p601, %p602
      %p604 = scmp.ne.s32.totalorder %s592, %s593
      %p605 = scmp.eq.s32.totalorder %s43, 1
      %p606 = por %p604, %p605
      %p608 = scmp.ne.s32.totalorder %s593, %s607
      %p609 = scmp.eq.s32.totalorder %s43, 0
      %p610 = por %p608, %p609
      %s611 = ssub.s32 %s37, %s44
      %p612 = scmp.eq.s32.totalorder %s611, 0
      %s614 = sadd.s32 %s613, 1
      %s615 = scalar_select %p612, %s613, %s614
      %p618 = pneg %p612
      %p619 = scmp.eq.s32.totalorder %s37, 1
      %p620 = por %p618, %p619
      %p621 = scmp.ne.s32.totalorder %s613, %s616
      %p622 = scmp.eq.s32.totalorder %s37, 0
      %p623 = por %p621, %p622
      %p624 = scmp.ne.s32.totalorder %s613, %s616
      %p625 = scmp.eq.s32.totalorder %s42, 1
      %p626 = por %p624, %p625
      %p627 = scmp.ne.s32.totalorder %s616, %s617
      %p628 = scmp.eq.s32.totalorder %s42, 0
      %p629 = por %p627, %p628
      %p630 = scmp.ne.s32.totalorder %s616, %s617
      %p631 = scmp.eq.s32.totalorder %s43, 1
      %p632 = por %p630, %p631
      %p634 = scmp.ne.s32.totalorder %s617, %s633
      %p635 = scmp.eq.s32.totalorder %s43, 0
      %p636 = por %p634, %p635
      %s637 = ssub.s32 %s37, %s44
      %p638 = scmp.eq.s32.totalorder %s637, 0
      %s640 = sadd.s32 %s639, 1
      %s641 = scalar_select %p638, %s639, %s640
      %p644 = pneg %p638
      %p645 = scmp.eq.s32.totalorder %s37, 1
      %p646 = por %p644, %p645
      %p647 = scmp.ne.s32.totalorder %s639, %s642
      %p648 = scmp.eq.s32.totalorder %s37, 0
      %p649 = por %p647, %p648
      %p650 = scmp.ne.s32.totalorder %s639, %s642
      %p651 = scmp.eq.s32.totalorder %s42, 1
      %p652 = por %p650, %p651
      %p653 = scmp.ne.s32.totalorder %s642, %s643
      %p654 = scmp.eq.s32.totalorder %s42, 0
      %p655 = por %p653, %p654
      %p656 = scmp.ne.s32.totalorder %s642, %s643
      %p657 = scmp.eq.s32.totalorder %s43, 1
      %p658 = por %p656, %p657
      %p660 = scmp.ne.s32.totalorder %s643, %s659
      %p661 = scmp.eq.s32.totalorder %s43, 0
      %p662 = por %p660, %p661
      %p663 = scmp.le.s32.totalorder 1, %s37
      %p664 = scmp.lt.s32.totalorder %s37, 3
      %p665 = pnand %p663, %p664
      %p666 = pneg %p665
      // Predicated region
      $region9: #{flan_t5_forward.1} parent=5 // pred_check
        _
      $region10: #{flan_t5_forward.1} parent=5 // pred_check_branch
        %668 = sbr.rel (%p665) target = $region12
      $region11: #{flan_t5_forward.1} parent=5 // pred_region
        %s669 = ssub.s32 %s37, 1
        // Predicated region
        $region13: #{flan_t5_forward.1} parent=11 // pred_check
          %p670 = pneg %p162
        $region14: #{flan_t5_forward.1} parent=11 // pred_check_branch
          %672 = sbr.rel (%p670) target = $region16
        $region15: #{flan_t5_forward.1} parent=11 // pred_region
          _
        $region16: #{flan_t5_forward.1} parent=11 // pred_fallthru
          _
        // Predicated region
        $region17: #{flan_t5_forward.1} parent=11 // pred_check
          %p673 = pneg %p183
        $region18: #{flan_t5_forward.1} parent=11 // pred_check_branch
          %675 = sbr.rel (%p673) target = $region20
        $region19: #{flan_t5_forward.1} parent=11 // pred_region
          _
        $region20: #{flan_t5_forward.1} parent=11 // pred_fallthru
          _
        // Predicated region
        $region21: #{flan_t5_forward.1} parent=11 // pred_check
          %p676 = pneg %p204
        $region22: #{flan_t5_forward.1} parent=11 // pred_check_branch
          %678 = sbr.rel (%p676) target = $region24
        $region23: #{flan_t5_forward.1} parent=11 // pred_region
          _
        $region24: #{flan_t5_forward.1} parent=11 // pred_fallthru
          _
        // Predicated region
        $region25: #{flan_t5_forward.1} parent=11 // pred_check
          %p679 = pneg %p225
        $region26: #{flan_t5_forward.1} parent=11 // pred_check_branch
          %681 = sbr.rel (%p679) target = $region28
        $region27: #{flan_t5_forward.1} parent=11 // pred_region
          _
        $region28: #{flan_t5_forward.1} parent=11 // pred_fallthru
          _
        // Predicated region
        $region29: #{flan_t5_forward.1} parent=11 // pred_check
          %p682 = pneg %p246
        $region30: #{flan_t5_forward.1} parent=11 // pred_check_branch
          %684 = sbr.rel (%p682) target = $region32
        $region31: #{flan_t5_forward.1} parent=11 // pred_region
          _
        $region32: #{flan_t5_forward.1} parent=11 // pred_fallthru
          _
        // Predicated region
        $region33: #{flan_t5_forward.1} parent=11 // pred_check
          %p685 = pneg %p267
        $region34: #{flan_t5_forward.1} parent=11 // pred_check_branch
          %687 = sbr.rel (%p685) target = $region36
        $region35: #{flan_t5_forward.1} parent=11 // pred_region
          _
        $region36: #{flan_t5_forward.1} parent=11 // pred_fallthru
          _
        // Predicated region
        $region37: #{flan_t5_forward.1} parent=11 // pred_check
          %p688 = pneg %p288
        $region38: #{flan_t5_forward.1} parent=11 // pred_check_branch
          %690 = sbr.rel (%p688) target = $region40
        $region39: #{flan_t5_forward.1} parent=11 // pred_region
          _
        $region40: #{flan_t5_forward.1} parent=11 // pred_fallthru
          _
        // Predicated region
        $region41: #{flan_t5_forward.1} parent=11 // pred_check
          %p691 = pneg %p309
        $region42: #{flan_t5_forward.1} parent=11 // pred_check_branch
          %693 = sbr.rel (%p691) target = $region44
        $region43: #{flan_t5_forward.1} parent=11 // pred_region
          _
        $region44: #{flan_t5_forward.1} parent=11 // pred_fallthru
          _
        // Predicated region
        $region45: #{flan_t5_forward.1} parent=11 // pred_check
          %p694 = pneg %p330
        $region46: #{flan_t5_forward.1} parent=11 // pred_check_branch
          %696 = sbr.rel (%p694) target = $region48
        $region47: #{flan_t5_forward.1} parent=11 // pred_region
          _
        $region48: #{flan_t5_forward.1} parent=11 // pred_fallthru
          _
        // Predicated region
        $region49: #{flan_t5_forward.1} parent=11 // pred_check
          %p697 = pneg %p351
        $region50: #{flan_t5_forward.1} parent=11 // pred_check_branch
          %699 = sbr.rel (%p697) target = $region52
        $region51: #{flan_t5_forward.1} parent=11 // pred_region
          _
        $region52: #{flan_t5_forward.1} parent=11 // pred_fallthru
          _
        // Predicated region
        $region53: #{flan_t5_forward.1} parent=11 // pred_check
          %p700 = pneg %p372
        $region54: #{flan_t5_forward.1} parent=11 // pred_check_branch
          %702 = sbr.rel (%p700) target = $region56
        $region55: #{flan_t5_forward.1} parent=11 // pred_region
          _
        $region56: #{flan_t5_forward.1} parent=11 // pred_fallthru
          _
        // Predicated region
        $region57: #{flan_t5_forward.1} parent=11 // pred_check
          %p703 = pneg %p393
        $region58: #{flan_t5_forward.1} parent=11 // pred_check_branch
          %705 = sbr.rel (%p703) target = $region60
        $region59: #{flan_t5_forward.1} parent=11 // pred_region
          _
        $region60: #{flan_t5_forward.1} parent=11 // pred_fallthru
          _
        // Predicated region
        $region61: #{flan_t5_forward.1} parent=11 // pred_check
          %p706 = pneg %p414
        $region62: #{flan_t5_forward.1} parent=11 // pred_check_branch
          %708 = sbr.rel (%p706) target = $region64
        $region63: #{flan_t5_forward.1} parent=11 // pred_region
          _
        $region64: #{flan_t5_forward.1} parent=11 // pred_fallthru
          _
        // Predicated region
        $region65: #{flan_t5_forward.1} parent=11 // pred_check
          %p709 = pneg %p435
        $region66: #{flan_t5_forward.1} parent=11 // pred_check_branch
          %711 = sbr.rel (%p709) target = $region68
        $region67: #{flan_t5_forward.1} parent=11 // pred_region
          _
        $region68: #{flan_t5_forward.1} parent=11 // pred_fallthru
          _
        // Predicated region
        $region69: #{flan_t5_forward.1} parent=11 // pred_check
          %p712 = pneg %p456
        $region70: #{flan_t5_forward.1} parent=11 // pred_check_branch
          %714 = sbr.rel (%p712) target = $region72
        $region71: #{flan_t5_forward.1} parent=11 // pred_region
          _
        $region72: #{flan_t5_forward.1} parent=11 // pred_fallthru
          _
        // Predicated region
        $region73: #{flan_t5_forward.1} parent=11 // pred_check
          %p715 = pneg %p477
        $region74: #{flan_t5_forward.1} parent=11 // pred_check_branch
          %717 = sbr.rel (%p715) target = $region76
        $region75: #{flan_t5_forward.1} parent=11 // pred_region
          _
        $region76: #{flan_t5_forward.1} parent=11 // pred_fallthru
          _
        // Predicated region
        $region77: #{flan_t5_forward.1} parent=11 // pred_check
          %p718 = pneg %p498
        $region78: #{flan_t5_forward.1} parent=11 // pred_check_branch
          %720 = sbr.rel (%p718) target = $region80
        $region79: #{flan_t5_forward.1} parent=11 // pred_region
          _
        $region80: #{flan_t5_forward.1} parent=11 // pred_fallthru
          _
        // Predicated region
        $region81: #{flan_t5_forward.1} parent=11 // pred_check
          %p721 = pneg %p519
        $region82: #{flan_t5_forward.1} parent=11 // pred_check_branch
          %723 = sbr.rel (%p721) target = $region84
        $region83: #{flan_t5_forward.1} parent=11 // pred_region
          _
        $region84: #{flan_t5_forward.1} parent=11 // pred_fallthru
          _
        // Predicated region
        $region85: #{flan_t5_forward.1} parent=11 // pred_check
          %p724 = pneg %p540
        $region86: #{flan_t5_forward.1} parent=11 // pred_check_branch
          %726 = sbr.rel (%p724) target = $region88
        $region87: #{flan_t5_forward.1} parent=11 // pred_region
          _
        $region88: #{flan_t5_forward.1} parent=11 // pred_fallthru
          _
        // Predicated region
        $region89: #{flan_t5_forward.1} parent=11 // pred_check
          %p727 = pneg %p561
        $region90: #{flan_t5_forward.1} parent=11 // pred_check_branch
          %729 = sbr.rel (%p727) target = $region92
        $region91: #{flan_t5_forward.1} parent=11 // pred_region
          _
        $region92: #{flan_t5_forward.1} parent=11 // pred_fallthru
          _
        // Predicated region
        $region93: #{flan_t5_forward.1} parent=11 // pred_check
          %p730 = pneg %p582
        $region94: #{flan_t5_forward.1} parent=11 // pred_check_branch
          %732 = sbr.rel (%p730) target = $region96
        $region95: #{flan_t5_forward.1} parent=11 // pred_region
          _
        $region96: #{flan_t5_forward.1} parent=11 // pred_fallthru
          _
        // Predicated region
        $region97: #{flan_t5_forward.1} parent=11 // pred_check
          %p733 = pneg %p603
        $region98: #{flan_t5_forward.1} parent=11 // pred_check_branch
          %735 = sbr.rel (%p733) target = $region100
        $region99: #{flan_t5_forward.1} parent=11 // pred_region
          _
        $region100: #{flan_t5_forward.1} parent=11 // pred_fallthru
          _
      $region12: #{flan_t5_forward.1} parent=5 // pred_fallthru
        _
      %p736 = scmp.lt.s32.totalorder %s37, 2
      // Predicated region
      $region101: #{flan_t5_forward.1} parent=5 // pred_check
        %p737 = pneg %p736
      $region102: #{flan_t5_forward.1} parent=5 // pred_check_branch
        %739 = sbr.rel (%p737) target = $region104
      $region103: #{flan_t5_forward.1} parent=5 // pred_region
        // Predicated region
        $region105: #{flan_t5_forward.1} parent=103 // pred_check
          %p740 = pneg %p57
        $region106: #{flan_t5_forward.1} parent=103 // pred_check_branch
          %742 = sbr.rel (%p740) target = $region108
        $region107: #{flan_t5_forward.1} parent=103 // pred_region
          %p743 = scmp.lt.s32.totalorder %s37, 1
          %s744 = scalar_select %p743, %s37, 1
          %s745 = smul.addr %s744, 8
          %s746 = scalar_lea.vmem %s0, %s745
        $region108: #{flan_t5_forward.1} parent=103 // pred_fallthru
          _
        // Predicated region
        $region109: #{flan_t5_forward.1} parent=103 // pred_check
          %p747 = pneg %p83
        $region110: #{flan_t5_forward.1} parent=103 // pred_check_branch
          %749 = sbr.rel (%p747) target = $region112
        $region111: #{flan_t5_forward.1} parent=103 // pred_region
          %p750 = scmp.lt.s32.totalorder %s37, 1
          %s751 = scalar_select %p750, %s37, 1
          %s752 = scalar_lea.vmem %s1, %s751
        $region112: #{flan_t5_forward.1} parent=103 // pred_fallthru
          _
        // Predicated region
        $region113: #{flan_t5_forward.1} parent=103 // pred_check
          %p753 = pneg %p109
        $region114: #{flan_t5_forward.1} parent=103 // pred_check_branch
          %755 = sbr.rel (%p753) target = $region116
        $region115: #{flan_t5_forward.1} parent=103 // pred_region
          %p756 = scmp.lt.s32.totalorder %s37, 1
          %s757 = scalar_select %p756, %s37, 1
          %s758 = smul.addr %s757, 8
          %s759 = scalar_lea.vmem %s2, %s758
        $region116: #{flan_t5_forward.1} parent=103 // pred_fallthru
          _
        // Predicated region
        $region117: #{flan_t5_forward.1} parent=103 // pred_check
          %p760 = pneg %p135
        $region118: #{flan_t5_forward.1} parent=103 // pred_check_branch
          %762 = sbr.rel (%p760) target = $region120
        $region119: #{flan_t5_forward.1} parent=103 // pred_region
          %p763 = scmp.lt.s32.totalorder %s37, 1
          %s764 = scalar_select %p763, %s37, 1
          %s765 = smul.addr %s764, 8
          %s766 = scalar_lea.vmem %s3, %s765
        $region120: #{flan_t5_forward.1} parent=103 // pred_fallthru
          _
      $region104: #{flan_t5_forward.1} parent=5 // pred_fallthru
        _
      %p767 = scmp.le.s32.totalorder 1, %s37
      %p768 = scmp.lt.s32.totalorder %s37, 3
      %p769 = pnand %p767, %p768
      %p770 = pneg %p769
      // Predicated region
      $region121: #{flan_t5_forward.1} parent=5 // pred_check
        _
      $region122: #{flan_t5_forward.1} parent=5 // pred_check_branch
        %772 = sbr.rel (%p769) target = $region124
      $region123: #{flan_t5_forward.1} parent=5 // pred_region
        %s773 = ssub.s32 %s37, 1
        %p774 = scmp.lt.s32.totalorder %s42, 1
        %s775 = scalar_select %p774, %s42, 1
        %s776 = smul.addr %s775, 8
        %s777 = scalar_lea.vmem %s0, %s776
        %p778 = pneg %p63
        %p779 = pneg %p60
        %p780 = scmp.lt.s32.totalorder %s42, 1
        %s781 = scalar_select %p780, %s42, 1
        %s782 = scalar_lea.vmem %s1, %s781
        %p783 = pneg %p89
        %p784 = pneg %p86
        %p785 = scmp.lt.s32.totalorder %s42, 1
        %s786 = scalar_select %p785, %s42, 1
        %s787 = smul.addr %s786, 8
        %s788 = scalar_lea.vmem %s2, %s787
        %p789 = pneg %p115
        %p790 = pneg %p112
        %p791 = scmp.lt.s32.totalorder %s42, 1
        %s792 = scalar_select %p791, %s42, 1
        %s793 = smul.addr %s792, 8
        %s794 = scalar_lea.vmem %s3, %s793
        %p795 = pneg %p141
        %p796 = pneg %p138
        %p797 = pneg %p162
        %p798 = pneg %p159
        %p799 = pneg %p183
        %p800 = pneg %p180
        %p801 = pneg %p204
        %p802 = pneg %p201
        %p803 = pneg %p225
        %p804 = pneg %p222
        %p805 = pneg %p246
        %p806 = pneg %p243
        %p807 = pneg %p267
        %p808 = pneg %p264
        %p809 = pneg %p288
        %p810 = pneg %p285
        %p811 = pneg %p309
        %p812 = pneg %p306
        %p813 = pneg %p330
        %p814 = pneg %p327
        %p815 = pneg %p351
        %p816 = pneg %p348
        %p817 = pneg %p372
        %p818 = pneg %p369
        %p819 = pneg %p393
        %p820 = pneg %p390
        %p821 = pneg %p414
        %p822 = pneg %p411
        %p823 = pneg %p435
        %p824 = pneg %p432
        %p825 = pneg %p456
        %p826 = pneg %p453
        %p827 = pneg %p477
        %p828 = pneg %p474
        %p829 = pneg %p498
        %p830 = pneg %p495
        %p831 = pneg %p519
        %p832 = pneg %p516
        %p833 = pneg %p540
        %p834 = pneg %p537
        %p835 = pneg %p561
        %p836 = pneg %p558
        %p837 = pneg %p582
        %p838 = pneg %p579
        %p839 = pneg %p603
        %p840 = pneg %p600
        %p841 = pneg %p629
        %p842 = pneg %p626
        %s843 = sand.u32 %s616, 1
        %s844 = scalar_lea.sflag [#allocation3], %s843
        %s845 = sand.u32 %s616, 1
        %s846 = smul.addr %s845, 8
        %s847 = scalar_lea.vmem [#allocation2], %s846
        %p848 = pneg %p655
        %p849 = pneg %p652
        %p850 = scmp.lt.s32.totalorder %s42, 1
        %s851 = scalar_select %p850, %s42, 1
        %s852 = smul.addr %s851, 8
        %s853 = scalar_lea.vmem %s27, %s852
        %p854 = scmp.lt.s32.totalorder %s42, 1
        %s855 = scalar_select %p854, %s42, 1
        %s856 = smul.addr %s855, 8
        %s857 = scalar_lea.vmem %s0, %s856
        %p858 = scmp.lt.s32.totalorder %s42, 1
        %s859 = scalar_select %p858, %s42, 1
        %s860 = scalar_lea.vmem %s1, %s859
        %p861 = scmp.lt.s32.totalorder %s42, 1
        %s862 = scalar_select %p861, %s42, 1
        %s863 = smul.addr %s862, 8
        %s864 = scalar_lea.vmem %s2, %s863
        %p865 = scmp.lt.s32.totalorder %s42, 1
        %s866 = scalar_select %p865, %s42, 1
        %s867 = smul.addr %s866, 8
        %s868 = scalar_lea.vmem %s3, %s867
        %p869 = scmp.lt.s32.totalorder %s42, 1
        %s870 = scalar_select %p869, %s42, 1
        %s871 = smul.addr %s870, 8
        %s872 = scalar_lea.vmem %s27, %s871
        %v873 = vld [vmem:[%s857] sm:$0xff]
        %v874 = vld [vmem:[%s864] sm:$0xff]
        %v875 = vld [vmem:[%s868] sm:$0xff]
        %v876 = vld [vmem:[%s860] sm:$0x1]
        %v877 = vcvt.s32.f32 %v876
        %v878 = vsub.f32 1.0, %v877
        %v879 = vmul.f32 %v878, -1e+09
        %v880 = vld [vmem:[%s6] sm:$0xff]
        %v881 = vld [vmem:[%s6 + $0x8] sm:$0xff]
        %v882 = vld [vmem:[%s6 + $0x10] sm:$0xff]
        %v883 = vld [vmem:[%s6 + $0x18] sm:$0xff]
        %v884 = vld [vmem:[%s6 + $0x20] sm:$0xff]
        %v885 = vld [vmem:[%s6 + $0x28] sm:$0xff]
        %v886 = vld [vmem:[%s6 + $0x30] sm:$0xff]
        %v887 = vld [vmem:[%s6 + $0x38] sm:$0xff]
        %v888 = vld [vmem:[%s6 + $0x40] sm:$0xff]
        %v889 = vld [vmem:[%s6 + $0x48] sm:$0xff]
        %v890 = vld [vmem:[%s6 + $0x50] sm:$0xff]
        %v891 = vld [vmem:[%s6 + $0x58] sm:$0xff]
        %v892 = vld [vmem:[%s6 + $0x60] sm:$0xff]
        %v893 = vld [vmem:[%s6 + $0x68] sm:$0xff]
        %v894 = vld [vmem:[%s6 + $0x70] sm:$0xff]
        %v895 = vld [vmem:[%s6 + $0x78] sm:$0xff]
        %v896 = vlaneseq
        %v897 = vand.u32 %v896, 127
        %898 = vset.pattern.permute.xlu0 0
        %899 = vperm.xlu0 %898, %v873
        %v900 = vpop.permute.xlu0 %899
        %vm901 = vcmp.eq.s32.totalorder %v897, %v900
        %v902 = vsel %vm901, 1, 0
        %v903 = vcvt.s32.f32 %v902
        %904 = vmatprep.subr.mxu0 0.0
        %905 = vmatpush1.msra.mxu0 %v880
        %906 = vmatprep.subr.mxu0 0.0
        %907 = vmatpush1.msra.mxu0 %v881
        %908 = vmatprep.subr.mxu0 0.0
        %909 = vmatpush1.msra.mxu0 %v882
        %910 = vmatprep.subr.mxu0 0.0
        %911 = vmatpush1.msra.mxu0 %v883
        %912 = vmatprep.subr.mxu0 0.0
        %913 = vmatpush1.msra.mxu0 %v884
        %914 = vmatprep.subr.mxu0 0.0
        %915 = vmatpush1.msra.mxu0 %v885
        %916 = vmatprep.subr.mxu0 0.0
        %917 = vmatpush1.msra.mxu0 %v886
        %918 = vmatprep.subr.mxu0 0.0
        %919 = vmatpush1.msra.mxu0 %v887
        %920 = vmatprep.subr.mxu0 0.0
        %921 = vmatpush1.msra.mxu0 %v888
        %922 = vmatprep.subr.mxu0 0.0
        %923 = vmatpush1.msra.mxu0 %v889
        %924 = vmatprep.subr.mxu0 0.0
        %925 = vmatpush1.msra.mxu0 %v890
        %926 = vmatprep.subr.mxu0 0.0
        %927 = vmatpush1.msra.mxu0 %v891
        %928 = vmatprep.subr.mxu0 0.0
        %929 = vmatpush1.msra.mxu0 %v892
        %930 = vmatprep.subr.mxu0 0.0
        %931 = vmatpush1.msra.mxu0 %v893
        %932 = vmatprep.subr.mxu0 0.0
        %933 = vmatpush1.msra.mxu0 %v894
        %934 = vmatprep.subr.mxu0 0.0
        %935 = vmatpush1.msra.mxu0 %v895
        %936 = vmatprep.subr.mxu0 0.0
        %937 = vmatpush1.msra.mxu0 0.0
        %938 = vmatprep.subr.mxu0 0.0
        %939 = vmatpush1.msra.mxu0 0.0
        %940 = vmatprep.subr.mxu0 0.0
        %941 = vmatpush1.msra.mxu0 0.0
        %942 = vmatprep.subr.mxu0 0.0
        %943 = vmatpush1.msra.mxu0 0.0
        %944 = vmatprep.subr.mxu0 0.0
        %945 = vmatpush1.msra.mxu0 0.0
        %946 = vmatprep.subr.mxu0 0.0
        %947 = vmatpush1.msra.mxu0 0.0
        %948 = vmatprep.subr.mxu0 0.0
        %949 = vmatpush1.msra.mxu0 0.0
        %950 = vmatprep.subr.mxu0 0.0
        %951 = vmatpush1.msra.mxu0 0.0
        %952 = vmatprep.subr.mxu0 0.0
        %953 = vmatpush1.msra.mxu0 0.0
        %954 = vmatprep.subr.mxu0 0.0
        %955 = vmatpush1.msra.mxu0 0.0
        %956 = vmatprep.subr.mxu0 0.0
        %957 = vmatpush1.msra.mxu0 0.0
        %958 = vmatprep.subr.mxu0 0.0
        %959 = vmatpush1.msra.mxu0 0.0
        %960 = vmatprep.subr.mxu0 0.0
        %961 = vmatpush1.msra.mxu0 0.0
        %962 = vmatprep.subr.mxu0 0.0
        %963 = vmatpush1.msra.mxu0 0.0
        %964 = vmatprep.subr.mxu0 0.0
        %965 = vmatpush1.msra.mxu0 0.0
        %966 = vmatprep.subr.mxu0 0.0
        %967 = vmatpush1.msra.mxu0 0.0
        %968 = vmatprep.mubr.f32.mxu0 0.0
        %969 = vmatmul.mubr.f32.gmra.mrb[0].mxu0 %v903
        %v970 = vpop.f32.mrb[0].mxu0
        %v971 = vadd.f32 0.0, %v970
        %v972 = vpop.f32.mrb[0].mxu0
        %973 = vdwg.mxu0
        %974 = vset.pattern.permute.xlu0 0
        %975 = vperm.xlu0 %974, %v874
        %v976 = vpop.permute.xlu0 %975
        %vm977 = vcmp.eq.s32.totalorder %v897, %v976
        %v978 = vsel %vm977, 1, 0
        %v979 = vcvt.s32.f32 %v978
        %980 = vmatprep.subr.mxu0 0.0
        %981 = vmatpush1.msra.mxu0 %v880
        %982 = vmatprep.subr.mxu0 0.0
        %983 = vmatpush1.msra.mxu0 %v881
        %984 = vmatprep.subr.mxu0 0.0
        %985 = vmatpush1.msra.mxu0 %v882
        %986 = vmatprep.subr.mxu0 0.0
        %987 = vmatpush1.msra.mxu0 %v883
        %988 = vmatprep.subr.mxu0 0.0
        %989 = vmatpush1.msra.mxu0 %v884
        %990 = vmatprep.subr.mxu0 0.0
        %991 = vmatpush1.msra.mxu0 %v885
        %992 = vmatprep.subr.mxu0 0.0
        %993 = vmatpush1.msra.mxu0 %v886
        %994 = vmatprep.subr.mxu0 0.0
        %995 = vmatpush1.msra.mxu0 %v887
        %996 = vmatprep.subr.mxu0 0.0
        %997 = vmatpush1.msra.mxu0 %v888
        %998 = vmatprep.subr.mxu0 0.0
        %999 = vmatpush1.msra.mxu0 %v889
        %1000 = vmatprep.subr.mxu0 0.0
        %1001 = vmatpush1.msra.mxu0 %v890
        %1002 = vmatprep.subr.mxu0 0.0
        %1003 = vmatpush1.msra.mxu0 %v891
        %1004 = vmatprep.subr.mxu0 0.0
        %1005 = vmatpush1.msra.mxu0 %v892
        %1006 = vmatprep.subr.mxu0 0.0
        %1007 = vmatpush1.msra.mxu0 %v893
        %1008 = vmatprep.subr.mxu0 0.0
        %1009 = vmatpush1.msra.mxu0 %v894
        %1010 = vmatprep.subr.mxu0 0.0
        %1011 = vmatpush1.msra.mxu0 %v895
        %1012 = vmatprep.subr.mxu0 0.0
        %1013 = vmatpush1.msra.mxu0 0.0
        %1014 = vmatprep.subr.mxu0 0.0
        %1015 = vmatpush1.msra.mxu0 0.0
        %1016 = vmatprep.subr.mxu0 0.0
        %1017 = vmatpush1.msra.mxu0 0.0
        %1018 = vmatprep.subr.mxu0 0.0
        %1019 = vmatpush1.msra.mxu0 0.0
        %1020 = vmatprep.subr.mxu0 0.0
        %1021 = vmatpush1.msra.mxu0 0.0
        %1022 = vmatprep.subr.mxu0 0.0
        %1023 = vmatpush1.msra.mxu0 0.0
        %1024 = vmatprep.subr.mxu0 0.0
        %1025 = vmatpush1.msra.mxu0 0.0
        %1026 = vmatprep.subr.mxu0 0.0
        %1027 = vmatpush1.msra.mxu0 0.0
        %1028 = vmatprep.subr.mxu0 0.0
        %1029 = vmatpush1.msra.mxu0 0.0
        %1030 = vmatprep.subr.mxu0 0.0
        %1031 = vmatpush1.msra.mxu0 0.0
        %1032 = vmatprep.subr.mxu0 0.0
        %1033 = vmatpush1.msra.mxu0 0.0
        %1034 = vmatprep.subr.mxu0 0.0
        %1035 = vmatpush1.msra.mxu0 0.0
        %1036 = vmatprep.subr.mxu0 0.0
        %1037 = vmatpush1.msra.mxu0 0.0
        %1038 = vmatprep.subr.mxu0 0.0
        %1039 = vmatpush1.msra.mxu0 0.0
        %1040 = vmatprep.subr.mxu0 0.0
        %1041 = vmatpush1.msra.mxu0 0.0
        %1042 = vmatprep.subr.mxu0 0.0
        %1043 = vmatpush1.msra.mxu0 0.0
        %1044 = vmatprep.mubr.f32.mxu0 0.0
        %1045 = vmatmul.mubr.f32.gmra.mrb[0].mxu0 %v979
        %v1046 = vpop.f32.mrb[0].mxu0
        %v1047 = vadd.f32 0.0, %v1046
        %v1048 = vpop.f32.mrb[0].mxu0
        %1049 = vdwg.mxu0
        %v1050 = vmul.f32 %v971, %v971
        %vm1051 = vcmask 261120
        %v1052 = vsel %vm1051, %v1050, 0.0
        %1053 = vadd.xlane.f32.xlu0 %v1052
        %v1054 = vpop.xlane.xlu0 %1053
        %v1055 = vrcp.pop 32.0
        %v1056 = vmul.f32 %v1054, %v1055
        %v1057 = vadd.f32 %v1056, 1e-06
        %v1058 = vrsqrt.pop %v1057
        %v1059 = vmul.f32 %v971, %v1058
        %v1060 = vld [vmem:[%s7] sm:$0x1]
        %v1062 = vlaneseq
        %v1063 = vshrl.u32 %v1062, 7
        %v1064 = vsub.s32 0, %v1063
        %v1065 = vrot.slane %v1060, %v1064
        %v1067 = vmul.f32 %v1059, %v1065
        %v1068 = vld [vmem:[%s8] sm:$0xff]
        %v1069 = vld [vmem:[%s8 + $0x8] sm:$0xff]
        %v1070 = vld [vmem:[%s8 + $0x10] sm:$0xff]
        %v1071 = vld [vmem:[%s8 + $0x18] sm:$0xff]
        %v1072 = vld [vmem:[%s8 + $0x20] sm:$0xff]
        %v1073 = vld [vmem:[%s8 + $0x28] sm:$0xff]
        %v1074 = vld [vmem:[%s8 + $0x30] sm:$0xff]
        %v1075 = vld [vmem:[%s8 + $0x38] sm:$0xff]
        %v1076 = vld [vmem:[%s8 + $0x40] sm:$0xff]
        %v1077 = vld [vmem:[%s8 + $0x48] sm:$0xff]
        %v1078 = vld [vmem:[%s8 + $0x50] sm:$0xff]
        %v1079 = vld [vmem:[%s8 + $0x58] sm:$0xff]
        %v1081 = vsel %vm1051, %v1068, 0
        %v1084 = vsel %vm1051, %v1069, 0
        %v1087 = vsel %vm1051, %v1070, 0
        %v1090 = vsel %vm1051, %v1071, 0
        %v1093 = vsel %vm1051, %v1072, 0
        %v1096 = vsel %vm1051, %v1073, 0
        %v1099 = vsel %vm1051, %v1074, 0
        %v1102 = vsel %vm1051, %v1075, 0
        %v1105 = vsel %vm1051, %v1076, 0
        %v1108 = vsel %vm1051, %v1077, 0
        %v1111 = vsel %vm1051, %v1078, 0
        %v1114 = vsel %vm1051, %v1079, 0
        %v1117 = vsel %vm1051, %v1067, 0
        %1119 = vmatprep.subr.mxu0 0.0
        %1120 = vmatpush1.xpose.msra.mxu0 %v1117
        %1121 = vmatprep.subr.mxu0 0.0
        %1122 = vmatpush1.xpose.msra.mxu0 0.0
        %1123 = vmatprep.subr.mxu0 0.0
        %1124 = vmatpush1.xpose.msra.mxu0 0.0
        %1125 = vmatprep.subr.mxu0 0.0
        %1126 = vmatpush1.xpose.msra.mxu0 0.0
        %1127 = vmatprep.subr.mxu0 0.0
        %1128 = vmatpush1.xpose.msra.mxu0 0.0
        %1129 = vmatprep.subr.mxu0 0.0
        %1130 = vmatpush1.xpose.msra.mxu0 0.0
        %1131 = vmatprep.subr.mxu0 0.0
        %1132 = vmatpush1.xpose.msra.mxu0 0.0
        %1133 = vmatprep.subr.mxu0 0.0
        %1134 = vmatpush1.xpose.msra.mxu0 0.0
        %1135 = vmatprep.subr.mxu0 0.0
        %1136 = vmatpush1.xpose.msra.mxu0 0.0
        %1137 = vmatprep.subr.mxu0 0.0
        %1138 = vmatpush1.xpose.msra.mxu0 0.0
        %1139 = vmatprep.subr.mxu0 0.0
        %1140 = vmatpush1.xpose.msra.mxu0 0.0
        %1141 = vmatprep.subr.mxu0 0.0
        %1142 = vmatpush1.xpose.msra.mxu0 0.0
        %1143 = vmatprep.subr.mxu0 0.0
        %1144 = vmatpush1.xpose.msra.mxu0 0.0
        %1145 = vmatprep.subr.mxu0 0.0
        %1146 = vmatpush1.xpose.msra.mxu0 0.0
        %1147 = vmatprep.subr.mxu0 0.0
        %1148 = vmatpush1.xpose.msra.mxu0 0.0
        %1149 = vmatprep.subr.mxu0 0.0
        %1150 = vmatpush1.xpose.msra.mxu0 0.0
        %1151 = vmatprep.subr.mxu0 0.0
        %1152 = vmatpush1.xpose.msra.mxu0 0.0
        %1153 = vmatprep.subr.mxu0 0.0
        %1154 = vmatpush1.xpose.msra.mxu0 0.0
        %1155 = vmatprep.subr.mxu0 0.0
        %1156 = vmatpush1.xpose.msra.mxu0 0.0
        %1157 = vmatprep.subr.mxu0 0.0
        %1158 = vmatpush1.xpose.msra.mxu0 0.0
        %1159 = vmatprep.subr.mxu0 0.0
        %1160 = vmatpush1.xpose.msra.mxu0 0.0
        %1161 = vmatprep.subr.mxu0 0.0
        %1162 = vmatpush1.xpose.msra.mxu0 0.0
        %1163 = vmatprep.subr.mxu0 0.0
        %1164 = vmatpush1.xpose.msra.mxu0 0.0
        %1165 = vmatprep.subr.mxu0 0.0
        %1166 = vmatpush1.xpose.msra.mxu0 0.0
        %1167 = vmatprep.subr.mxu0 0.0
        %1168 = vmatpush1.xpose.msra.mxu0 0.0
        %1169 = vmatprep.subr.mxu0 0.0
        %1170 = vmatpush1.xpose.msra.mxu0 0.0
        %1171 = vmatprep.subr.mxu0 0.0
        %1172 = vmatpush1.xpose.msra.mxu0 0.0
        %1173 = vmatprep.subr.mxu0 0.0
        %1174 = vmatpush1.xpose.msra.mxu0 0.0
        %1175 = vmatprep.subr.mxu0 0.0
        %1176 = vmatpush1.xpose.msra.mxu0 0.0
        %1177 = vmatprep.subr.mxu0 0.0
        %1178 = vmatpush1.xpose.msra.mxu0 0.0
        %1179 = vmatprep.subr.mxu0 0.0
        %1180 = vmatpush1.xpose.msra.mxu0 0.0
        %1181 = vmatprep.subr.mxu0 0.0
        %1182 = vmatpush1.xpose.msra.mxu0 0.0
        %1183 = vmatprep.mubr.f32.mxu0 0.0
        %1184 = vmatmul.mubr.f32.gmra.mrb[0].mxu0 %v1081
        %v1185 = vpop.f32.mrb[0].mxu0
        %v1186 = vadd.f32 0.0, %v1185
        %v1187 = vpop.f32.mrb[0].mxu0
        %1188 = vmatprep.mubr.f32.mxu0 0.0
        %1189 = vmatmul.mubr.f32.gmra.mrb[0].mxu0 %v1084
        %v1190 = vpop.f32.mrb[0].mxu0
        %v1191 = vadd.f32 0.0, %v1190
        %v1192 = vpop.f32.mrb[0].mxu0
        %1193 = vmatprep.mubr.f32.mxu0 0.0
        %1194 = vmatmul.mubr.f32.gmra.mrb[0].mxu0 %v1087
        %v1195 = vpop.f32.mrb[0].mxu0
        %v1196 = vadd.f32 0.0, %v1195
        %v1197 = vpop.f32.mrb[0].mxu0
        %1198 = vmatprep.mubr.f32.mxu0 0.0
        %1199 = vmatmul.mubr.f32.gmra.mrb[0].mxu0 %v1090
        %v1200 = vpop.f32.mrb[0].mxu0
        %v1201 = vadd.f32 0.0, %v1200
        %v1202 = vpop.f32.mrb[0].mxu0
        %1203 = vmatprep.mubr.f32.mxu0 0.0
        %1204 = vmatmul.mubr.f32.gmra.mrb[0].mxu0 %v1093
        %v1205 = vpop.f32.mrb[0].mxu0
        %v1206 = vadd.f32 0.0, %v1205
        %v1207 = vpop.f32.mrb[0].mxu0
        %1208 = vmatprep.mubr.f32.mxu0 0.0
        %1209 = vmatmul.mubr.f32.gmra.mrb[0].mxu0 %v1096
        %v1210 = vpop.f32.mrb[0].mxu0
        %v1211 = vadd.f32 0.0, %v1210
        %v1212 = vpop.f32.mrb[0].mxu0
        %1213 = vmatprep.mubr.f32.mxu0 0.0
        %1214 = vmatmul.mubr.f32.gmra.mrb[0].mxu0 %v1099
        %v1215 = vpop.f32.mrb[0].mxu0
        %v1216 = vadd.f32 0.0, %v1215
        %v1217 = vpop.f32.mrb[0].mxu0
        %1218 = vmatprep.mubr.f32.mxu0 0.0
        %1219 = vmatmul.mubr.f32.gmra.mrb[0].mxu0 %v1102
        %v1220 = vpop.f32.mrb[0].mxu0
        %v1221 = vadd.f32 0.0, %v1220
        %v1222 = vpop.f32.mrb[0].mxu0
        %1223 = vmatprep.mubr.f32.mxu0 0.0
        %1224 = vmatmul.mubr.f32.gmra.mrb[0].mxu0 %v1105
        %v1225 = vpop.f32.mrb[0].mxu0
        %v1226 = vadd.f32 0.0, %v1225
        %v1227 = vpop.f32.mrb[0].mxu0
        %1228 = vmatprep.mubr.f32.mxu0 0.0
        %1229 = vmatmul.mubr.f32.gmra.mrb[0].mxu0 %v1108
        %v1230 = vpop.f32.mrb[0].mxu0
        %v1231 = vadd.f32 0.0, %v1230
        %v1232 = vpop.f32.mrb[0].mxu0
        %1233 = vmatprep.mubr.f32.mxu0 0.0
        %1234 = vmatmul.mubr.f32.gmra.mrb[0].mxu0 %v1111
        %v1235 = vpop.f32.mrb[0].mxu0
        %v1236 = vadd.f32 0.0, %v1235
        %v1237 = vpop.f32.mrb[0].mxu0
        %1238 = vmatprep.mubr.f32.mxu0 0.0
        %1239 = vmatmul.mubr.f32.gmra.mrb[0].mxu0 %v1114
        %v1240 = vpop.f32.mrb[0].mxu0
        %v1241 = vadd.f32 0.0, %v1240
        %v1242 = vpop.f32.mrb[0].mxu0
        %1243 = vdwg.mxu0
        %v1244 = vld [vmem:[%s9] sm:$0xff]
        %v1245 = vld [vmem:[%s9 + $0x8] sm:$0xff]
        %v1246 = vld [vmem:[%s9 + $0x10] sm:$0xff]
        %v1247 = vld [vmem:[%s9 + $0x18] sm:$0xff]
        %1248 = vxpose.xlu0.b32.start [1/16] %v1186, 128
        %1249 = vxpose.xlu0.b32.cont [2/16] %v1191, 128
        %1250 = vxpose.xlu0.b32.cont [3/16] 0.0, 128
        %1251 = vxpose.xlu0.b32.cont [4/16] 0.0, 128
        %1252 = vxpose.xlu0.b32.cont [5/16] 0.0, 128
        %1253 = vxpose.xlu0.b32.cont [6/16] 0.0, 128
        %1254 = vxpose.xlu0.b32.cont [7/16] 0.0, 128
        %1255 = vxpose.xlu0.b32.cont [8/16] 0.0, 128
        %1256 = vxpose.xlu0.b32.cont [9/16] 0.0, 128
        %1257 = vxpose.xlu0.b32.cont [10/16] 0.0, 128
        %1258 = vxpose.xlu0.b32.cont [11/16] 0.0, 128
        %1259 = vxpose.xlu0.b32.cont [12/16] 0.0, 128
        %1260 = vxpose.xlu0.b32.cont [13/16] 0.0, 128
        %1261 = vxpose.xlu0.b32.cont [14/16] 0.0, 128
        %1262 = vxpose.xlu0.b32.cont [15/16] 0.0, 128
        %1263 = vxpose.xlu0.b32.end [16/16] 0.0, 128
        %v1264 = vpop.trf.xlu0
        %v1265 = vpop.trf.xlu0
        %v1266 = vpop.trf.xlu0
        %v1267 = vpop.trf.xlu0
        %v1268 = vpop.trf.xlu0
        %v1269 = vpop.trf.xlu0
        %v1270 = vpop.trf.xlu0
        %v1271 = vpop.trf.xlu0
        %v1272 = vpop.trf.xlu0
        %v1273 = vpop.trf.xlu0
        %v1274 = vpop.trf.xlu0
        %v1275 = vpop.trf.xlu0
        %v1276 = vpop.trf.xlu0
        %v1277 = vpop.trf.xlu0
        %v1278 = vpop.trf.xlu0
        %v1279 = vpop.trf.xlu0
        %v1280 = vld [vmem:[%s4] sm:$0xff]
        %v1282 = vlaneseq
        %v1283 = vshrl.u32 %v1282, 7
        %v1284 = vsub.s32 0, %v1283
        %v1285 = vrot.slane %v879, %v1284
        %v1287 = vadd.f32 %v1280, %v1285
        %vm1288 = vcmask 130048
        %v1290 = vsel %vm1288, %v1264, 0
        %1292 = vmatprep.subr.mxu0 0.0
        %1293 = vmatpush1.msra.mxu0 %v1206
        %1294 = vmatprep.subr.mxu0 0.0
        %1295 = vmatpush1.msra.mxu0 %v1211
        %1296 = vmatprep.subr.mxu0 0.0
        %1297 = vmatpush1.msra.mxu0 0.0
        %1298 = vmatprep.subr.mxu0 0.0
        %1299 = vmatpush1.msra.mxu0 0.0
        %1300 = vmatprep.subr.mxu0 0.0
        %1301 = vmatpush1.msra.mxu0 0.0
        %1302 = vmatprep.subr.mxu0 0.0
        %1303 = vmatpush1.msra.mxu0 0.0
        %1304 = vmatprep.subr.mxu0 0.0
        %1305 = vmatpush1.msra.mxu0 0.0
        %1306 = vmatprep.subr.mxu0 0.0
        %1307 = vmatpush1.msra.mxu0 0.0
        %1308 = vmatprep.subr.mxu0 0.0
        %1309 = vmatpush1.msra.mxu0 0.0
        %1310 = vmatprep.subr.mxu0 0.0
        %1311 = vmatpush1.msra.mxu0 0.0
        %1312 = vmatprep.subr.mxu0 0.0
        %1313 = vmatpush1.msra.mxu0 0.0
        %1314 = vmatprep.subr.mxu0 0.0
        %1315 = vmatpush1.msra.mxu0 0.0
        %1316 = vmatprep.subr.mxu0 0.0
        %1317 = vmatpush1.msra.mxu0 0.0
        %1318 = vmatprep.subr.mxu0 0.0
        %1319 = vmatpush1.msra.mxu0 0.0
        %1320 = vmatprep.subr.mxu0 0.0
        %1321 = vmatpush1.msra.mxu0 0.0
        %1322 = vmatprep.subr.mxu0 0.0
        %1323 = vmatpush1.msra.mxu0 0.0
        %1324 = vmatprep.subr.mxu0 0.0
        %1325 = vmatpush1.msra.mxu0 0.0
        %1326 = vmatprep.subr.mxu0 0.0
        %1327 = vmatpush1.msra.mxu0 0.0
        %1328 = vmatprep.subr.mxu0 0.0
        %1329 = vmatpush1.msra.mxu0 0.0
        %1330 = vmatprep.subr.mxu0 0.0
        %1331 = vmatpush1.msra.mxu0 0.0
        %1332 = vmatprep.subr.mxu0 0.0
        %1333 = vmatpush1.msra.mxu0 0.0
        %1334 = vmatprep.subr.mxu0 0.0
        %1335 = vmatpush1.msra.mxu0 0.0
        %1336 = vmatprep.subr.mxu0 0.0
        %1337 = vmatpush1.msra.mxu0 0.0
        %1338 = vmatprep.subr.mxu0 0.0
        %1339 = vmatpush1.msra.mxu0 0.0
        %1340 = vmatprep.subr.mxu0 0.0
        %1341 = vmatpush1.msra.mxu0 0.0
        %1342 = vmatprep.subr.mxu0 0.0
        %1343 = vmatpush1.msra.mxu0 0.0
        %1344 = vmatprep.subr.mxu0 0.0
        %1345 = vmatpush1.msra.mxu0 0.0
        %1346 = vmatprep.subr.mxu0 0.0
        %1347 = vmatpush1.msra.mxu0 0.0
        %1348 = vmatprep.subr.mxu0 0.0
        %1349 = vmatpush1.msra.mxu0 0.0
        %1350 = vmatprep.subr.mxu0 0.0
        %1351 = vmatpush1.msra.mxu0 0.0
        %1352 = vmatprep.subr.mxu0 0.0
        %1353 = vmatpush1.msra.mxu0 0.0
        %1354 = vmatprep.subr.mxu0 0.0
        %1355 = vmatpush1.msra.mxu0 0.0
        %1356 = vmatprep.mubr.f32.mxu0 0.0
        %1357 = vmatmul.mubr.f32.gmra.mrb[0].mxu0 %v1290
        %v1358 = vpop.f32.mrb[0].mxu0
        %v1359 = vadd.f32 %v1287, %v1358
        %v1360 = vpop.f32.mrb[0].mxu0
        %1361 = vdwg.mxu0
        %vm1362 = vcmask 64512
        %v1363 = vsel %vm1362, %v1359, -inf
        %1364 = vmax.xlane.f32.xlu0 %v1363
        %v1365 = vpop.xlane.xlu0 %1364
        %v1366 = vsub.f32 %v1359, %v1365
        %v1367 = vmul.f32 %v1366, 1.442695
        %v1368 = vpow.pop %v1367
        %v1369 = vsel %vm1362, %v1368, 0.0
        %1370 = vadd.xlane.f32.xlu0 %v1369
        %v1371 = vpop.xlane.xlu0 %1370
        %v1372 = vrcp.pop %v1371
        %v1373 = vmul.f32 %v1368, %v1372
        %v1375 = vsel %vm1362, %v1373, 0
        %v1378 = vsel %vm1362, %v1226, 0
        %v1381 = vsel %vm1362, %v1231, 0
        %1383 = vmatprep.subr.mxu0 0.0
        %1384 = vmatpush1.xpose.msra.mxu0 %v1378
        %1385 = vmatprep.subr.mxu0 0.0
        %1386 = vmatpush1.xpose.msra.mxu0 %v1381
        %1387 = vmatprep.subr.mxu0 0.0
        %1388 = vmatpush1.xpose.msra.mxu0 0.0
        %1389 = vmatprep.subr.mxu0 0.0
        %1390 = vmatpush1.xpose.msra.mxu0 0.0
        %1391 = vmatprep.subr.mxu0 0.0
        %1392 = vmatpush1.xpose.msra.mxu0 0.0
        %1393 = vmatprep.subr.mxu0 0.0
        %1394 = vmatpush1.xpose.msra.mxu0 0.0
        %1395 = vmatprep.subr.mxu0 0.0
        %1396 = vmatpush1.xpose.msra.mxu0 0.0
        %1397 = vmatprep.subr.mxu0 0.0
        %1398 = vmatpush1.xpose.msra.mxu0 0.0
        %1399 = vmatprep.subr.mxu0 0.0
        %1400 = vmatpush1.xpose.msra.mxu0 0.0
        %1401 = vmatprep.subr.mxu0 0.0
        %1402 = vmatpush1.xpose.msra.mxu0 0.0
        %1403 = vmatprep.subr.mxu0 0.0
        %1404 = vmatpush1.xpose.msra.mxu0 0.0
        %1405 = vmatprep.subr.mxu0 0.0
        %1406 = vmatpush1.xpose.msra.mxu0 0.0
        %1407 = vmatprep.subr.mxu0 0.0
        %1408 = vmatpush1.xpose.msra.mxu0 0.0
        %1409 = vmatprep.subr.mxu0 0.0
        %1410 = vmatpush1.xpose.msra.mxu0 0.0
        %1411 = vmatprep.subr.mxu0 0.0
        %1412 = vmatpush1.xpose.msra.mxu0 0.0
        %1413 = vmatprep.subr.mxu0 0.0
        %1414 = vmatpush1.xpose.msra.mxu0 0.0
        %1415 = vmatprep.subr.mxu0 0.0
        %1416 = vmatpush1.xpose.msra.mxu0 0.0
        %1417 = vmatprep.subr.mxu0 0.0
        %1418 = vmatpush1.xpose.msra.mxu0 0.0
        %1419 = vmatprep.subr.mxu0 0.0
        %1420 = vmatpush1.xpose.msra.mxu0 0.0
        %1421 = vmatprep.subr.mxu0 0.0
        %1422 = vmatpush1.xpose.msra.mxu0 0.0
        %1423 = vmatprep.subr.mxu0 0.0
        %1424 = vmatpush1.xpose.msra.mxu0 0.0
        %1425 = vmatprep.subr.mxu0 0.0
        %1426 = vmatpush1.xpose.msra.mxu0 0.0
        %1427 = vmatprep.subr.mxu0 0.0
        %1428 = vmatpush1.xpose.msra.mxu0 0.0
        %1429 = vmatprep.subr.mxu0 0.0
        %1430 = vmatpush1.xpose.msra.mxu0 0.0
        %1431 = vmatprep.subr.mxu0 0.0
        %1432 = vmatpush1.xpose.msra.mxu0 0.0
        %1433 = vmatprep.subr.mxu0 0.0
        %1434 = vmatpush1.xpose.msra.mxu0 0.0
        %1435 = vmatprep.subr.mxu0 0.0
        %1436 = vmatpush1.xpose.msra.mxu0 0.0
        %1437 = vmatprep.subr.mxu0 0.0
        %1438 = vmatpush1.xpose.msra.mxu0 0.0
        %1439 = vmatprep.subr.mxu0 0.0
        %1440 = vmatpush1.xpose.msra.mxu0 0.0
        %1441 = vmatprep.subr.mxu0 0.0
        %1442 = vmatpush1.xpose.msra.mxu0 0.0
        %1443 = vmatprep.subr.mxu0 0.0
        %1444 = vmatpush1.xpose.msra.mxu0 0.0
        %1445 = vmatprep.subr.mxu0 0.0
        %1446 = vmatpush1.xpose.msra.mxu0 0.0
        %1447 = vmatprep.mubr.f32.mxu0 0.0
        %1448 = vmatmul.mubr.f32.gmra.mrb[0].mxu0 %v1375
        %v1449 = vpop.f32.mrb[0].mxu0
        %v1450 = vadd.f32 0.0, %v1449
        %v1451 = vpop.f32.mrb[0].mxu0
        %1452 = vdwg.mxu0
        %1453 = vxpose.xlu0.b32.start [1/16] %v1196, 128
        %1454 = vxpose.xlu0.b32.cont [2/16] %v1201, 128
        %1455 = vxpose.xlu0.b32.cont [3/16] 0.0, 128
        %1456 = vxpose.xlu0.b32.cont [4/16] 0.0, 128
        %1457 = vxpose.xlu0.b32.cont [5/16] 0.0, 128
        %1458 = vxpose.xlu0.b32.cont [6/16] 0.0, 128
        %1459 = vxpose.xlu0.b32.cont [7/16] 0.0, 128
        %1460 = vxpose.xlu0.b32.cont [8/16] 0.0, 128
        %1461 = vxpose.xlu0.b32.cont [9/16] 0.0, 128
        %1462 = vxpose.xlu0.b32.cont [10/16] 0.0, 128
        %1463 = vxpose.xlu0.b32.cont [11/16] 0.0, 128
        %1464 = vxpose.xlu0.b32.cont [12/16] 0.0, 128
        %1465 = vxpose.xlu0.b32.cont [13/16] 0.0, 128
        %1466 = vxpose.xlu0.b32.cont [14/16] 0.0, 128
        %1467 = vxpose.xlu0.b32.cont [15/16] 0.0, 128
        %1468 = vxpose.xlu0.b32.end [16/16] 0.0, 128
        %v1469 = vpop.trf.xlu0
        %v1470 = vpop.trf.xlu0
        %v1471 = vpop.trf.xlu0
        %v1472 = vpop.trf.xlu0
        %v1473 = vpop.trf.xlu0
        %v1474 = vpop.trf.xlu0
        %v1475 = vpop.trf.xlu0
        %v1476 = vpop.trf.xlu0
        %v1477 = vpop.trf.xlu0
        %v1478 = vpop.trf.xlu0
        %v1479 = vpop.trf.xlu0
        %v1480 = vpop.trf.xlu0
        %v1481 = vpop.trf.xlu0
        %v1482 = vpop.trf.xlu0
        %v1483 = vpop.trf.xlu0
        %v1484 = vpop.trf.xlu0
        %s1485 = scalar_lea.vmem %s4, 8
        %v1486 = vld [vmem:[%s1485] sm:$0xff]
        %v1487 = vadd.f32 %v1486, %v1285
        %v1489 = vsel %vm1288, %v1469, 0
        %1491 = vmatprep.subr.mxu0 0.0
        %1492 = vmatpush1.msra.mxu0 %v1216
        %1493 = vmatprep.subr.mxu0 0.0
        %1494 = vmatpush1.msra.mxu0 %v1221
        %1495 = vmatprep.subr.mxu0 0.0
        %1496 = vmatpush1.msra.mxu0 0.0
        %1497 = vmatprep.subr.mxu0 0.0
        %1498 = vmatpush1.msra.mxu0 0.0
        %1499 = vmatprep.subr.mxu0 0.0
        %1500 = vmatpush1.msra.mxu0 0.0
        %1501 = vmatprep.subr.mxu0 0.0
        %1502 = vmatpush1.msra.mxu0 0.0
        %1503 = vmatprep.subr.mxu0 0.0
        %1504 = vmatpush1.msra.mxu0 0.0
        %1505 = vmatprep.subr.mxu0 0.0
        %1506 = vmatpush1.msra.mxu0 0.0
        %1507 = vmatprep.subr.mxu0 0.0
        %1508 = vmatpush1.msra.mxu0 0.0
        %1509 = vmatprep.subr.mxu0 0.0
        %1510 = vmatpush1.msra.mxu0 0.0
        %1511 = vmatprep.subr.mxu0 0.0
        %1512 = vmatpush1.msra.mxu0 0.0
        %1513 = vmatprep.subr.mxu0 0.0
        %1514 = vmatpush1.msra.mxu0 0.0
        %1515 = vmatprep.subr.mxu0 0.0
        %1516 = vmatpush1.msra.mxu0 0.0
        %1517 = vmatprep.subr.mxu0 0.0
        %1518 = vmatpush1.msra.mxu0 0.0
        %1519 = vmatprep.subr.mxu0 0.0
        %1520 = vmatpush1.msra.mxu0 0.0
        %1521 = vmatprep.subr.mxu0 0.0
        %1522 = vmatpush1.msra.mxu0 0.0
        %1523 = vmatprep.subr.mxu0 0.0
        %1524 = vmatpush1.msra.mxu0 0.0
        %1525 = vmatprep.subr.mxu0 0.0
        %1526 = vmatpush1.msra.mxu0 0.0
        %1527 = vmatprep.subr.mxu0 0.0
        %1528 = vmatpush1.msra.mxu0 0.0
        %1529 = vmatprep.subr.mxu0 0.0
        %1530 = vmatpush1.msra.mxu0 0.0
        %1531 = vmatprep.subr.mxu0 0.0
        %1532 = vmatpush1.msra.mxu0 0.0
        %1533 = vmatprep.subr.mxu0 0.0
        %1534 = vmatpush1.msra.mxu0 0.0
        %1535 = vmatprep.subr.mxu0 0.0
        %1536 = vmatpush1.msra.mxu0 0.0
        %1537 = vmatprep.subr.mxu0 0.0
        %1538 = vmatpush1.msra.mxu0 0.0
        %1539 = vmatprep.subr.mxu0 0.0
        %1540 = vmatpush1.msra.mxu0 0.0
        %1541 = vmatprep.subr.mxu0 0.0
        %1542 = vmatpush1.msra.mxu0 0.0
        %1543 = vmatprep.subr.mxu0 0.0
        %1544 = vmatpush1.msra.mxu0 0.0
        %1545 = vmatprep.subr.mxu0 0.0
        %1546 = vmatpush1.msra.mxu0 0.0
        %1547 = vmatprep.subr.mxu0 0.0
        %1548 = vmatpush1.msra.mxu0 0.0
        %1549 = vmatprep.subr.mxu0 0.0
        %1550 = vmatpush1.msra.mxu0 0.0
        %1551 = vmatprep.subr.mxu0 0.0
        %1552 = vmatpush1.msra.mxu0 0.0
        %1553 = vmatprep.subr.mxu0 0.0
        %1554 = vmatpush1.msra.mxu0 0.0
        %1555 = vmatprep.mubr.f32.mxu0 0.0
        %1556 = vmatmul.mubr.f32.gmra.mrb[0].mxu0 %v1489
        %v1557 = vpop.f32.mrb[0].mxu0
        %v1558 = vadd.f32 %v1487, %v1557
        %v1559 = vpop.f32.mrb[0].mxu0
        %1560 = vdwg.mxu0
        %v1561 = vsel %vm1362, %v1558, -inf
        %1562 = vmax.xlane.f32.xlu0 %v1561
        %v1563 = vpop.xlane.xlu0 %1562
        %v1564 = vsub.f32 %v1558, %v1563
        %v1565 = vmul.f32 %v1564, 1.442695
        %v1566 = vpow.pop %v1565
        %v1567 = vsel %vm1362, %v1566, 0.0
        %1568 = vadd.xlane.f32.xlu0 %v1567
        %v1569 = vpop.xlane.xlu0 %1568
        %v1570 = vrcp.pop %v1569
        %v1571 = vmul.f32 %v1566, %v1570
        %v1573 = vsel %vm1362, %v1571, 0
        %v1576 = vsel %vm1362, %v1236, 0
        %v1579 = vsel %vm1362, %v1241, 0
        %1581 = vmatprep.subr.mxu0 0.0
        %1582 = vmatpush1.xpose.msra.mxu0 %v1576
        %1583 = vmatprep.subr.mxu0 0.0
        %1584 = vmatpush1.xpose.msra.mxu0 %v1579
        %1585 = vmatprep.subr.mxu0 0.0
        %1586 = vmatpush1.xpose.msra.mxu0 0.0
        %1587 = vmatprep.subr.mxu0 0.0
        %1588 = vmatpush1.xpose.msra.mxu0 0.0
        %1589 = vmatprep.subr.mxu0 0.0
        %1590 = vmatpush1.xpose.msra.mxu0 0.0
        %1591 = vmatprep.subr.mxu0 0.0
        %1592 = vmatpush1.xpose.msra.mxu0 0.0
        %1593 = vmatprep.subr.mxu0 0.0
        %1594 = vmatpush1.xpose.msra.mxu0 0.0
        %1595 = vmatprep.subr.mxu0 0.0
        %1596 = vmatpush1.xpose.msra.mxu0 0.0
        %1597 = vmatprep.subr.mxu0 0.0
        %1598 = vmatpush1.xpose.msra.mxu0 0.0
        %1599 = vmatprep.subr.mxu0 0.0
        %1600 = vmatpush1.xpose.msra.mxu0 0.0
        %1601 = vmatprep.subr.mxu0 0.0
        %1602 = vmatpush1.xpose.msra.mxu0 0.0
        %1603 = vmatprep.subr.mxu0 0.0
        %1604 = vmatpush1.xpose.msra.mxu0 0.0
        %1605 = vmatprep.subr.mxu0 0.0
        %1606 = vmatpush1.xpose.msra.mxu0 0.0
        %1607 = vmatprep.subr.mxu0 0.0
        %1608 = vmatpush1.xpose.msra.mxu0 0.0
        %1609 = vmatprep.subr.mxu0 0.0
        %1610 = vmatpush1.xpose.msra.mxu0 0.0
        %1611 = vmatprep.subr.mxu0 0.0
        %1612 = vmatpush1.xpose.msra.mxu0 0.0
        %1613 = vmatprep.subr.mxu0 0.0
        %1614 = vmatpush1.xpose.msra.mxu0 0.0
        %1615 = vmatprep.subr.mxu0 0.0
        %1616 = vmatpush1.xpose.msra.mxu0 0.0
        %1617 = vmatprep.subr.mxu0 0.0
        %1618 = vmatpush1.xpose.msra.mxu0 0.0
        %1619 = vmatprep.subr.mxu0 0.0
        %1620 = vmatpush1.xpose.msra.mxu0 0.0
        %1621 = vmatprep.subr.mxu0 0.0
        %1622 = vmatpush1.xpose.msra.mxu0 0.0
        %1623 = vmatprep.subr.mxu0 0.0
        %1624 = vmatpush1.xpose.msra.mxu0 0.0
        %1625 = vmatprep.subr.mxu0 0.0
        %1626 = vmatpush1.xpose.msra.mxu0 0.0
        %1627 = vmatprep.subr.mxu0 0.0
        %1628 = vmatpush1.xpose.msra.mxu0 0.0
        %1629 = vmatprep.subr.mxu0 0.0
        %1630 = vmatpush1.xpose.msra.mxu0 0.0
        %1631 = vmatprep.subr.mxu0 0.0
        %1632 = vmatpush1.xpose.msra.mxu0 0.0
        %1633 = vmatprep.subr.mxu0 0.0
        %1634 = vmatpush1.xpose.msra.mxu0 0.0
        %1635 = vmatprep.subr.mxu0 0.0
        %1636 = vmatpush1.xpose.msra.mxu0 0.0
        %1637 = vmatprep.subr.mxu0 0.0
        %1638 = vmatpush1.xpose.msra.mxu0 0.0
        %1639 = vmatprep.subr.mxu0 0.0
        %1640 = vmatpush1.xpose.msra.mxu0 0.0
        %1641 = vmatprep.subr.mxu0 0.0
        %1642 = vmatpush1.xpose.msra.mxu0 0.0
        %1643 = vmatprep.subr.mxu0 0.0
        %1644 = vmatpush1.xpose.msra.mxu0 0.0
        %1645 = vmatprep.mubr.f32.mxu0 0.0
        %1646 = vmatmul.mubr.f32.gmra.mrb[0].mxu0 %v1573
        %v1647 = vpop.f32.mrb[0].mxu0
        %v1648 = vadd.f32 0.0, %v1647
        %v1649 = vpop.f32.mrb[0].mxu0
        %1650 = vdwg.mxu0
        %v1652 = vsel %vm1288, %v1648, 0
        %1654 = vmatprep.subr.mxu0 0.0
        %1655 = vmatpush1.msra.mxu0 %v1246
        %1656 = vmatprep.subr.mxu0 0.0
        %1657 = vmatpush1.msra.mxu0 %v1247
        %1658 = vmatprep.subr.mxu0 0.0
        %1659 = vmatpush1.msra.mxu0 0.0
        %1660 = vmatprep.subr.mxu0 0.0
        %1661 = vmatpush1.msra.mxu0 0.0
        %1662 = vmatprep.subr.mxu0 0.0
        %1663 = vmatpush1.msra.mxu0 0.0
        %1664 = vmatprep.subr.mxu0 0.0
        %1665 = vmatpush1.msra.mxu0 0.0
        %1666 = vmatprep.subr.mxu0 0.0
        %1667 = vmatpush1.msra.mxu0 0.0
        %1668 = vmatprep.subr.mxu0 0.0
        %1669 = vmatpush1.msra.mxu0 0.0
        %1670 = vmatprep.subr.mxu0 0.0
        %1671 = vmatpush1.msra.mxu0 0.0
        %1672 = vmatprep.subr.mxu0 0.0
        %1673 = vmatpush1.msra.mxu0 0.0
        %1674 = vmatprep.subr.mxu0 0.0
        %1675 = vmatpush1.msra.mxu0 0.0
        %1676 = vmatprep.subr.mxu0 0.0
        %1677 = vmatpush1.msra.mxu0 0.0
        %1678 = vmatprep.subr.mxu0 0.0
        %1679 = vmatpush1.msra.mxu0 0.0
        %1680 = vmatprep.subr.mxu0 0.0
        %1681 = vmatpush1.msra.mxu0 0.0
        %1682 = vmatprep.subr.mxu0 0.0
        %1683 = vmatpush1.msra.mxu0 0.0
        %1684 = vmatprep.subr.mxu0 0.0
        %1685 = vmatpush1.msra.mxu0 0.0
        %1686 = vmatprep.subr.mxu0 0.0
        %1687 = vmatpush1.msra.mxu0 0.0
        %1688 = vmatprep.subr.mxu0 0.0
        %1689 = vmatpush1.msra.mxu0 0.0
        %1690 = vmatprep.subr.mxu0 0.0
        %1691 = vmatpush1.msra.mxu0 0.0
        %1692 = vmatprep.subr.mxu0 0.0
        %1693 = vmatpush1.msra.mxu0 0.0
        %1694 = vmatprep.subr.mxu0 0.0
        %1695 = vmatpush1.msra.mxu0 0.0
        %1696 = vmatprep.subr.mxu0 0.0
        %1697 = vmatpush1.msra.mxu0 0.0
        %1698 = vmatprep.subr.mxu0 0.0
        %1699 = vmatpush1.msra.mxu0 0.0
        %1700 = vmatprep.subr.mxu0 0.0
        %1701 = vmatpush1.msra.mxu0 0.0
        %1702 = vmatprep.subr.mxu0 0.0
        %1703 = vmatpush1.msra.mxu0 0.0
        %1704 = vmatprep.subr.mxu0 0.0
        %1705 = vmatpush1.msra.mxu0 0.0
        %1706 = vmatprep.subr.mxu0 0.0
        %1707 = vmatpush1.msra.mxu0 0.0
        %1708 = vmatprep.subr.mxu0 0.0
        %1709 = vmatpush1.msra.mxu0 0.0
        %1710 = vmatprep.subr.mxu0 0.0
        %1711 = vmatpush1.msra.mxu0 0.0
        %1712 = vmatprep.subr.mxu0 0.0
        %1713 = vmatpush1.msra.mxu0 0.0
        %1714 = vmatprep.subr.mxu0 0.0
        %1715 = vmatpush1.msra.mxu0 0.0
        %1716 = vmatprep.subr.mxu0 0.0
        %1717 = vmatpush1.msra.mxu0 0.0
        %1718 = vmatprep.mubr.f32.mxu0 0.0
        %1719 = vmatmul.mubr.f32.gmra.mrb[0].mxu0 %v1652
        %v1720 = vpop.f32.mrb[0].mxu0
        %v1721 = vadd.f32 0.0, %v1720
        %v1722 = vpop.f32.mrb[0].mxu0
        %1723 = vdwg.mxu0
        %v1725 = vsel %vm1288, %v1450, 0
        %1727 = vmatprep.subr.mxu0 0.0
        %1728 = vmatpush1.msra.mxu0 %v1244
        %1729 = vmatprep.subr.mxu0 0.0
        %1730 = vmatpush1.msra.mxu0 %v1245
        %1731 = vmatprep.subr.mxu0 0.0
        %1732 = vmatpush1.msra.mxu0 0.0
        %1733 = vmatprep.subr.mxu0 0.0
        %1734 = vmatpush1.msra.mxu0 0.0
        %1735 = vmatprep.subr.mxu0 0.0
        %1736 = vmatpush1.msra.mxu0 0.0
        %1737 = vmatprep.subr.mxu0 0.0
        %1738 = vmatpush1.msra.mxu0 0.0
        %1739 = vmatprep.subr.mxu0 0.0
        %1740 = vmatpush1.msra.mxu0 0.0
        %1741 = vmatprep.subr.mxu0 0.0
        %1742 = vmatpush1.msra.mxu0 0.0
        %1743 = vmatprep.subr.mxu0 0.0
        %1744 = vmatpush1.msra.mxu0 0.0
        %1745 = vmatprep.subr.mxu0 0.0
        %1746 = vmatpush1.msra.mxu0 0.0
        %1747 = vmatprep.subr.mxu0 0.0
        %1748 = vmatpush1.msra.mxu0 0.0
        %1749 = vmatprep.subr.mxu0 0.0
        %1750 = vmatpush1.msra.mxu0 0.0
        %1751 = vmatprep.subr.mxu0 0.0
        %1752 = vmatpush1.msra.mxu0 0.0
        %1753 = vmatprep.subr.mxu0 0.0
        %1754 = vmatpush1.msra.mxu0 0.0
        %1755 = vmatprep.subr.mxu0 0.0
        %1756 = vmatpush1.msra.mxu0 0.0
        %1757 = vmatprep.subr.mxu0 0.0
        %1758 = vmatpush1.msra.mxu0 0.0
        %1759 = vmatprep.subr.mxu0 0.0
        %1760 = vmatpush1.msra.mxu0 0.0
        %1761 = vmatprep.subr.mxu0 0.0
        %1762 = vmatpush1.msra.mxu0 0.0
        %1763 = vmatprep.subr.mxu0 0.0
        %1764 = vmatpush1.msra.mxu0 0.0
        %1765 = vmatprep.subr.mxu0 0.0
        %1766 = vmatpush1.msra.mxu0 0.0
        %1767 = vmatprep.subr.mxu0 0.0
        %1768 = vmatpush1.msra.mxu0 0.0
        %1769 = vmatprep.subr.mxu0 0.0
        %1770 = vmatpush1.msra.mxu0 0.0
        %1771 = vmatprep.subr.mxu0 0.0
        %1772 = vmatpush1.msra.mxu0 0.0
        %1773 = vmatprep.subr.mxu0 0.0
        %1774 = vmatpush1.msra.mxu0 0.0
        %1775 = vmatprep.subr.mxu0 0.0
        %1776 = vmatpush1.msra.mxu0 0.0
        %1777 = vmatprep.subr.mxu0 0.0
        %1778 = vmatpush1.msra.mxu0 0.0
        %1779 = vmatprep.subr.mxu0 0.0
        %1780 = vmatpush1.msra.mxu0 0.0
        %1781 = vmatprep.subr.mxu0 0.0
        %1782 = vmatpush1.msra.mxu0 0.0
        %1783 = vmatprep.subr.mxu0 0.0
        %1784 = vmatpush1.msra.mxu0 0.0
        %1785 = vmatprep.subr.mxu0 0.0
        %1786 = vmatpush1.msra.mxu0 0.0
        %1787 = vmatprep.subr.mxu0 0.0
        %1788 = vmatpush1.msra.mxu0 0.0
        %1789 = vmatprep.subr.mxu0 0.0
        %1790 = vmatpush1.msra.mxu0 0.0
        %1791 = vmatprep.mubr.f32.mxu0 0.0
        %1792 = vmatmul.mubr.f32.gmra.mrb[0].mxu0 %v1725
        %v1793 = vpop.f32.mrb[0].mxu0
        %v1794 = vadd.f32 %v1721, %v1793
        %v1795 = vpop.f32.mrb[0].mxu0
        %1796 = vdwg.mxu0
        %v1797 = vadd.f32 %v971, %v1794
        %v1798 = vmul.f32 %v1797, %v1797
        %v1799 = vsel %vm1051, %v1798, 0.0
        %1800 = vadd.xlane.f32.xlu0 %v1799
        %v1801 = vpop.xlane.xlu0 %1800
        %v1802 = vmul.f32 %v1801, %v1055
        %v1803 = vadd.f32 %v1802, 1e-06
        %v1804 = vrsqrt.pop %v1803
        %v1805 = vmul.f32 %v1797, %v1804
        %v1806 = vld [vmem:[%s10] sm:$0x1]
        %v1808 = vlaneseq
        %v1809 = vshrl.u32 %v1808, 7
        %v1810 = vsub.s32 0, %v1809
        %v1811 = vrot.slane %v1806, %v1810
        %v1813 = vmul.f32 %v1805, %v1811
        %v1814 = vld [vmem:[%s11] sm:$0xff]
        %v1815 = vld [vmem:[%s11 + $0x8] sm:$0xff]
        %v1816 = vld [vmem:[%s11 + $0x10] sm:$0xff]
        %v1817 = vld [vmem:[%s11 + $0x18] sm:$0xff]
        %v1818 = vld [vmem:[%s11 + $0x20] sm:$0xff]
        %v1819 = vld [vmem:[%s11 + $0x28] sm:$0xff]
        %v1820 = vld [vmem:[%s11 + $0x30] sm:$0xff]
        %v1821 = vld [vmem:[%s11 + $0x38] sm:$0xff]
        %v1822 = vld [vmem:[%s11 + $0x40] sm:$0xff]
        %v1823 = vld [vmem:[%s11 + $0x48] sm:$0xff]
        %v1824 = vld [vmem:[%s11 + $0x50] sm:$0xff]
        %v1825 = vld [vmem:[%s11 + $0x58] sm:$0xff]
        %v1826 = vld [vmem:[%s11 + $0x60] sm:$0xff]
        %v1827 = vld [vmem:[%s11 + $0x68] sm:$0xff]
        %v1828 = vld [vmem:[%s11 + $0x70] sm:$0xff]
        %v1829 = vld [vmem:[%s11 + $0x78] sm:$0xff]
        %v1831 = vsel %vm1051, %v1814, 0
        %v1834 = vsel %vm1051, %v1815, 0
        %v1837 = vsel %vm1051, %v1816, 0
        %v1840 = vsel %vm1051, %v1817, 0
        %v1843 = vsel %vm1051, %v1818, 0
        %v1846 = vsel %vm1051, %v1819, 0
        %v1849 = vsel %vm1051, %v1820, 0
        %v1852 = vsel %vm1051, %v1821, 0
        %v1855 = vsel %vm1051, %v1822, 0
        %v1858 = vsel %vm1051, %v1823, 0
        %v1861 = vsel %vm1051, %v1824, 0
        %v1864 = vsel %vm1051, %v1825, 0
        %v1867 = vsel %vm1051, %v1826, 0
        %v1870 = vsel %vm1051, %v1827, 0
        %v1873 = vsel %vm1051, %v1828, 0
        %v1876 = vsel %vm1051, %v1829, 0
        %v1879 = vsel %vm1051, %v1813, 0
        %1881 = vmatprep.subr.mxu0 0.0
        %1882 = vmatpush1.xpose.msra.mxu0 %v1879
        %1883 = vmatprep.subr.mxu0 0.0
        %1884 = vmatpush1.xpose.msra.mxu0 0.0
        %1885 = vmatprep.subr.mxu0 0.0
        %1886 = vmatpush1.xpose.msra.mxu0 0.0
        %1887 = vmatprep.subr.mxu0 0.0
        %1888 = vmatpush1.xpose.msra.mxu0 0.0
        %1889 = vmatprep.subr.mxu0 0.0
        %1890 = vmatpush1.xpose.msra.mxu0 0.0
        %1891 = vmatprep.subr.mxu0 0.0
        %1892 = vmatpush1.xpose.msra.mxu0 0.0
        %1893 = vmatprep.subr.mxu0 0.0
        %1894 = vmatpush1.xpose.msra.mxu0 0.0
        %1895 = vmatprep.subr.mxu0 0.0
        %1896 = vmatpush1.xpose.msra.mxu0 0.0
        %1897 = vmatprep.subr.mxu0 0.0
        %1898 = vmatpush1.xpose.msra.mxu0 0.0
        %1899 = vmatprep.subr.mxu0 0.0
        %1900 = vmatpush1.xpose.msra.mxu0 0.0
        %1901 = vmatprep.subr.mxu0 0.0
        %1902 = vmatpush1.xpose.msra.mxu0 0.0
        %1903 = vmatprep.subr.mxu0 0.0
        %1904 = vmatpush1.xpose.msra.mxu0 0.0
        %1905 = vmatprep.subr.mxu0 0.0
        %1906 = vmatpush1.xpose.msra.mxu0 0.0
        %1907 = vmatprep.subr.mxu0 0.0
        %1908 = vmatpush1.xpose.msra.mxu0 0.0
        %1909 = vmatprep.subr.mxu0 0.0
        %1910 = vmatpush1.xpose.msra.mxu0 0.0
        %1911 = vmatprep.subr.mxu0 0.0
        %1912 = vmatpush1.xpose.msra.mxu0 0.0
        %1913 = vmatprep.subr.mxu0 0.0
        %1914 = vmatpush1.xpose.msra.mxu0 0.0
        %1915 = vmatprep.subr.mxu0 0.0
        %1916 = vmatpush1.xpose.msra.mxu0 0.0
        %1917 = vmatprep.subr.mxu0 0.0
        %1918 = vmatpush1.xpose.msra.mxu0 0.0
        %1919 = vmatprep.subr.mxu0 0.0
        %1920 = vmatpush1.xpose.msra.mxu0 0.0
        %1921 = vmatprep.subr.mxu0 0.0
        %1922 = vmatpush1.xpose.msra.mxu0 0.0
        %1923 = vmatprep.subr.mxu0 0.0
        %1924 = vmatpush1.xpose.msra.mxu0 0.0
        %1925 = vmatprep.subr.mxu0 0.0
        %1926 = vmatpush1.xpose.msra.mxu0 0.0
        %1927 = vmatprep.subr.mxu0 0.0
        %1928 = vmatpush1.xpose.msra.mxu0 0.0
        %1929 = vmatprep.subr.mxu0 0.0
        %1930 = vmatpush1.xpose.msra.mxu0 0.0
        %1931 = vmatprep.subr.mxu0 0.0
        %1932 = vmatpush1.xpose.msra.mxu0 0.0
        %1933 = vmatprep.subr.mxu0 0.0
        %1934 = vmatpush1.xpose.msra.mxu0 0.0
        %1935 = vmatprep.subr.mxu0 0.0
        %1936 = vmatpush1.xpose.msra.mxu0 0.0
        %1937 = vmatprep.subr.mxu0 0.0
        %1938 = vmatpush1.xpose.msra.mxu0 0.0
        %1939 = vmatprep.subr.mxu0 0.0
        %1940 = vmatpush1.xpose.msra.mxu0 0.0
        %1941 = vmatprep.subr.mxu0 0.0
        %1942 = vmatpush1.xpose.msra.mxu0 0.0
        %1943 = vmatprep.subr.mxu0 0.0
        %1944 = vmatpush1.xpose.msra.mxu0 0.0
        %1945 = vmatprep.mubr.f32.mxu0 0.0
        %1946 = vmatmul.mubr.f32.gmra.mrb[0].mxu0 %v1831
        %v1947 = vpop.f32.mrb[0].mxu0
        %v1948 = vadd.f32 0.0, %v1947
        %v1949 = vpop.f32.mrb[0].mxu0
        %1950 = vmatprep.mubr.f32.mxu0 0.0
        %1951 = vmatmul.mubr.f32.gmra.mrb[0].mxu0 %v1834
        %v1952 = vpop.f32.mrb[0].mxu0
        %v1953 = vadd.f32 0.0, %v1952
        %v1954 = vpop.f32.mrb[0].mxu0
        %1955 = vmatprep.mubr.f32.mxu0 0.0
        %1956 = vmatmul.mubr.f32.gmra.mrb[0].mxu0 %v1837
        %v1957 = vpop.f32.mrb[0].mxu0
        %v1958 = vadd.f32 0.0, %v1957
        %v1959 = vpop.f32.mrb[0].mxu0
        %1960 = vmatprep.mubr.f32.mxu0 0.0
        %1961 = vmatmul.mubr.f32.gmra.mrb[0].mxu0 %v1840
        %v1962 = vpop.f32.mrb[0].mxu0
        %v1963 = vadd.f32 0.0, %v1962
        %v1964 = vpop.f32.mrb[0].mxu0
        %1965 = vmatprep.mubr.f32.mxu0 0.0
        %1966 = vmatmul.mubr.f32.gmra.mrb[0].mxu0 %v1843
        %v1967 = vpop.f32.mrb[0].mxu0
        %v1968 = vadd.f32 0.0, %v1967
        %v1969 = vpop.f32.mrb[0].mxu0
        %1970 = vmatprep.mubr.f32.mxu0 0.0
        %1971 = vmatmul.mubr.f32.gmra.mrb[0].mxu0 %v1846
        %v1972 = vpop.f32.mrb[0].mxu0
        %v1973 = vadd.f32 0.0, %v1972
        %v1974 = vpop.f32.mrb[0].mxu0
        %1975 = vmatprep.mubr.f32.mxu0 0.0
        %1976 = vmatmul.mubr.f32.gmra.mrb[0].mxu0 %v1849
        %v1977 = vpop.f32.mrb[0].mxu0
        %v1978 = vadd.f32 0.0, %v1977
        %v1979 = vpop.f32.mrb[0].mxu0
        %1980 = vmatprep.mubr.f32.mxu0 0.0
        %1981 = vmatmul.mubr.f32.gmra.mrb[0].mxu0 %v1852
        %v1982 = vpop.f32.mrb[0].mxu0
        %v1983 = vadd.f32 0.0, %v1982
        %v1984 = vpop.f32.mrb[0].mxu0
        %1985 = vmatprep.mubr.f32.mxu0 0.0
        %1986 = vmatmul.mubr.f32.gmra.mrb[0].mxu0 %v1855
        %v1987 = vpop.f32.mrb[0].mxu0
        %v1988 = vadd.f32 0.0, %v1987
        %v1989 = vpop.f32.mrb[0].mxu0
        %1990 = vmatprep.mubr.f32.mxu0 0.0
        %1991 = vmatmul.mubr.f32.gmra.mrb[0].mxu0 %v1858
        %v1992 = vpop.f32.mrb[0].mxu0
        %v1993 = vadd.f32 0.0, %v1992
        %v1994 = vpop.f32.mrb[0].mxu0
        %1995 = vmatprep.mubr.f32.mxu0 0.0
        %1996 = vmatmul.mubr.f32.gmra.mrb[0].mxu0 %v1861
        %v1997 = vpop.f32.mrb[0].mxu0
        %v1998 = vadd.f32 0.0, %v1997
        %v1999 = vpop.f32.mrb[0].mxu0
        %2000 = vmatprep.mubr.f32.mxu0 0.0
        %2001 = vmatmul.mubr.f32.gmra.mrb[0].mxu0 %v1864
        %v2002 = vpop.f32.mrb[0].mxu0
        %v2003 = vadd.f32 0.0, %v2002
        %v2004 = vpop.f32.mrb[0].mxu0
        %2005 = vmatprep.mubr.f32.mxu0 0.0
        %2006 = vmatmul.mubr.f32.gmra.mrb[0].mxu0 %v1867
        %v2007 = vpop.f32.mrb[0].mxu0
        %v2008 = vadd.f32 0.0, %v2007
        %v2009 = vpop.f32.mrb[0].mxu0
        %2010 = vmatprep.mubr.f32.mxu0 0.0
        %2011 = vmatmul.mubr.f32.gmra.mrb[0].mxu0 %v1870
        %v2012 = vpop.f32.mrb[0].mxu0
        %v2013 = vadd.f32 0.0, %v2012
        %v2014 = vpop.f32.mrb[0].mxu0
        %2015 = vmatprep.mubr.f32.mxu0 0.0
        %2016 = vmatmul.mubr.f32.gmra.mrb[0].mxu0 %v1873
        %v2017 = vpop.f32.mrb[0].mxu0
        %v2018 = vadd.f32 0.0, %v2017
        %v2019 = vpop.f32.mrb[0].mxu0
        %2020 = vmatprep.mubr.f32.mxu0 0.0
        %2021 = vmatmul.mubr.f32.gmra.mrb[0].mxu0 %v1876
        %v2022 = vpop.f32.mrb[0].mxu0
        %v2023 = vadd.f32 0.0, %v2022
        %v2024 = vpop.f32.mrb[0].mxu0
        %2025 = vdwg.mxu0
        %v2026 = vmul.f32 %v1948, %v1948
        %v2027 = vmul.f32 %v1953, %v1953
        %v2028 = vmul.f32 %v1958, %v1958
        %v2029 = vmul.f32 %v1963, %v1963
        %v2030 = vmul.f32 %v1968, %v1968
        %v2031 = vmul.f32 %v1973, %v1973
        %v2032 = vmul.f32 %v1978, %v1978
        %v2033 = vmul.f32 %v1983, %v1983
        %v2034 = vmul.f32 %v1948, %v2026
        %v2035 = vmul.f32 %v1953, %v2027
        %v2036 = vmul.f32 %v1958, %v2028
        %v2037 = vmul.f32 %v1963, %v2029
        %v2038 = vmul.f32 %v1968, %v2030
        %v2039 = vmul.f32 %v1973, %v2031
        %v2040 = vmul.f32 %v1978, %v2032
        %v2041 = vmul.f32 %v1983, %v2033
        %v2042 = vmul.f32 %v2034, 0.044715
        %v2043 = vmul.f32 %v2035, 0.044715
        %v2044 = vmul.f32 %v2036, 0.044715
        %v2045 = vmul.f32 %v2037, 0.044715
        %v2046 = vmul.f32 %v2038, 0.044715
        %v2047 = vmul.f32 %v2039, 0.044715
        %v2048 = vmul.f32 %v2040, 0.044715
        %v2049 = vmul.f32 %v2041, 0.044715
        %v2050 = vadd.f32 %v1948, %v2042
        %v2051 = vadd.f32 %v1953, %v2043
        %v2052 = vadd.f32 %v1958, %v2044
        %v2053 = vadd.f32 %v1963, %v2045
        %v2054 = vadd.f32 %v1968, %v2046
        %v2055 = vadd.f32 %v1973, %v2047
        %v2056 = vadd.f32 %v1978, %v2048
        %v2057 = vadd.f32 %v1983, %v2049
        %v2058 = vmul.f32 %v2050, 0.7978846
        %v2059 = vmul.f32 %v2051, 0.7978846
        %v2060 = vmul.f32 %v2052, 0.7978846
        %v2061 = vmul.f32 %v2053, 0.7978846
        %v2062 = vmul.f32 %v2054, 0.7978846
        %v2063 = vmul.f32 %v2055, 0.7978846
        %v2064 = vmul.f32 %v2056, 0.7978846
        %v2065 = vmul.f32 %v2057, 0.7978846
        %v2066 = vtanh.pop %v2058
        %v2067 = vtanh.pop %v2059
        %v2068 = vtanh.pop %v2060
        %v2069 = vtanh.pop %v2061
        %v2070 = vtanh.pop %v2062
        %v2071 = vtanh.pop %v2063
        %v2072 = vtanh.pop %v2064
        %v2073 = vtanh.pop %v2065
        %v2074 = vadd.f32 %v2066, 1.0
        %v2075 = vadd.f32 %v2067, 1.0
        %v2076 = vadd.f32 %v2068, 1.0
        %v2077 = vadd.f32 %v2069, 1.0
        %v2078 = vadd.f32 %v2070, 1.0
        %v2079 = vadd.f32 %v2071, 1.0
        %v2080 = vadd.f32 %v2072, 1.0
        %v2081 = vadd.f32 %v2073, 1.0
        %v2082 = vmul.f32 %v2074, 0.5
        %v2083 = vmul.f32 %v2075, 0.5
        %v2084 = vmul.f32 %v2076, 0.5
        %v2085 = vmul.f32 %v2077, 0.5
        %v2086 = vmul.f32 %v2078, 0.5
        %v2087 = vmul.f32 %v2079, 0.5
        %v2088 = vmul.f32 %v2080, 0.5
        %v2089 = vmul.f32 %v2081, 0.5
        %v2090 = vmul.f32 %v1948, %v2082
        %v2091 = vmul.f32 %v1953, %v2083
        %v2092 = vmul.f32 %v1958, %v2084
        %v2093 = vmul.f32 %v1963, %v2085
        %v2094 = vmul.f32 %v1968, %v2086
        %v2095 = vmul.f32 %v1973, %v2087
        %v2096 = vmul.f32 %v1978, %v2088
        %v2097 = vmul.f32 %v1983, %v2089
        %v2098 = vmul.f32 %v2090, %v1988
        %v2099 = vmul.f32 %v2091, %v1993
        %v2100 = vmul.f32 %v2092, %v1998
        %v2101 = vmul.f32 %v2093, %v2003
        %v2102 = vmul.f32 %v2094, %v2008
        %v2103 = vmul.f32 %v2095, %v2013
        %v2104 = vmul.f32 %v2096, %v2018
        %v2105 = vmul.f32 %v2097, %v2023
        %2106 = vxpose.xlu0.b32.start [1/16] %v2098, 128
        %2107 = vxpose.xlu0.b32.cont [2/16] %v2099, 128
        %2108 = vxpose.xlu0.b32.cont [3/16] %v2100, 128
        %2109 = vxpose.xlu0.b32.cont [4/16] %v2101, 128
        %2110 = vxpose.xlu0.b32.cont [5/16] %v2102, 128
        %2111 = vxpose.xlu0.b32.cont [6/16] %v2103, 128
        %2112 = vxpose.xlu0.b32.cont [7/16] %v2104, 128
        %2113 = vxpose.xlu0.b32.cont [8/16] %v2105, 128
        %2114 = vxpose.xlu0.b32.cont [9/16] 0.0, 128
        %2115 = vxpose.xlu0.b32.cont [10/16] 0.0, 128
        %2116 = vxpose.xlu0.b32.cont [11/16] 0.0, 128
        %2117 = vxpose.xlu0.b32.cont [12/16] 0.0, 128
        %2118 = vxpose.xlu0.b32.cont [13/16] 0.0, 128
        %2119 = vxpose.xlu0.b32.cont [14/16] 0.0, 128
        %2120 = vxpose.xlu0.b32.cont [15/16] 0.0, 128
        %2121 = vxpose.xlu0.b32.end [16/16] 0.0, 128
        %v2122 = vpop.trf.xlu0
        %v2123 = vpop.trf.xlu0
        %v2124 = vpop.trf.xlu0
        %v2125 = vpop.trf.xlu0
        %v2126 = vpop.trf.xlu0
        %v2127 = vpop.trf.xlu0
        %v2128 = vpop.trf.xlu0
        %v2129 = vpop.trf.xlu0
        %v2130 = vpop.trf.xlu0
        %v2131 = vpop.trf.xlu0
        %v2132 = vpop.trf.xlu0
        %v2133 = vpop.trf.xlu0
        %v2134 = vpop.trf.xlu0
        %v2135 = vpop.trf.xlu0
        %v2136 = vpop.trf.xlu0
        %v2137 = vpop.trf.xlu0
        %v2138 = vld [vmem:[%s12] sm:$0xff]
        %v2139 = vld [vmem:[%s12 + $0x8] sm:$0xff]
        %v2140 = vld [vmem:[%s12 + $0x10] sm:$0xff]
        %v2141 = vld [vmem:[%s12 + $0x18] sm:$0xff]
        %v2142 = vld [vmem:[%s12 + $0x20] sm:$0xff]
        %v2143 = vld [vmem:[%s12 + $0x28] sm:$0xff]
        %v2144 = vld [vmem:[%s12 + $0x30] sm:$0xff]
        %v2145 = vld [vmem:[%s12 + $0x38] sm:$0xff]
        %vm2146 = vcmask 523264
        %v2148 = vsel %vm2146, %v2122, 0
        %2150 = vmatprep.subr.mxu0 0.0
        %2151 = vmatpush1.msra.mxu0 %v2138
        %2152 = vmatprep.subr.mxu0 0.0
        %2153 = vmatpush1.msra.mxu0 %v2139
        %2154 = vmatprep.subr.mxu0 0.0
        %2155 = vmatpush1.msra.mxu0 %v2140
        %2156 = vmatprep.subr.mxu0 0.0
        %2157 = vmatpush1.msra.mxu0 %v2141
        %2158 = vmatprep.subr.mxu0 0.0
        %2159 = vmatpush1.msra.mxu0 %v2142
        %2160 = vmatprep.subr.mxu0 0.0
        %2161 = vmatpush1.msra.mxu0 %v2143
        %2162 = vmatprep.subr.mxu0 0.0
        %2163 = vmatpush1.msra.mxu0 %v2144
        %2164 = vmatprep.subr.mxu0 0.0
        %2165 = vmatpush1.msra.mxu0 %v2145
        %2166 = vmatprep.subr.mxu0 0.0
        %2167 = vmatpush1.msra.mxu0 0.0
        %2168 = vmatprep.subr.mxu0 0.0
        %2169 = vmatpush1.msra.mxu0 0.0
        %2170 = vmatprep.subr.mxu0 0.0
        %2171 = vmatpush1.msra.mxu0 0.0
        %2172 = vmatprep.subr.mxu0 0.0
        %2173 = vmatpush1.msra.mxu0 0.0
        %2174 = vmatprep.subr.mxu0 0.0
        %2175 = vmatpush1.msra.mxu0 0.0
        %2176 = vmatprep.subr.mxu0 0.0
        %2177 = vmatpush1.msra.mxu0 0.0
        %2178 = vmatprep.subr.mxu0 0.0
        %2179 = vmatpush1.msra.mxu0 0.0
        %2180 = vmatprep.subr.mxu0 0.0
        %2181 = vmatpush1.msra.mxu0 0.0
        %2182 = vmatprep.subr.mxu0 0.0
        %2183 = vmatpush1.msra.mxu0 0.0
        %2184 = vmatprep.subr.mxu0 0.0
        %2185 = vmatpush1.msra.mxu0 0.0
        %2186 = vmatprep.subr.mxu0 0.0
        %2187 = vmatpush1.msra.mxu0 0.0
        %2188 = vmatprep.subr.mxu0 0.0
        %2189 = vmatpush1.msra.mxu0 0.0
        %2190 = vmatprep.subr.mxu0 0.0
        %2191 = vmatpush1.msra.mxu0 0.0
        %2192 = vmatprep.subr.mxu0 0.0
        %2193 = vmatpush1.msra.mxu0 0.0
        %2194 = vmatprep.subr.mxu0 0.0
        %2195 = vmatpush1.msra.mxu0 0.0
        %2196 = vmatprep.subr.mxu0 0.0
        %2197 = vmatpush1.msra.mxu0 0.0
        %2198 = vmatprep.subr.mxu0 0.0
        %2199 = vmatpush1.msra.mxu0 0.0
        %2200 = vmatprep.subr.mxu0 0.0
        %2201 = vmatpush1.msra.mxu0 0.0
        %2202 = vmatprep.subr.mxu0 0.0
        %2203 = vmatpush1.msra.mxu0 0.0
        %2204 = vmatprep.subr.mxu0 0.0
        %2205 = vmatpush1.msra.mxu0 0.0
        %2206 = vmatprep.subr.mxu0 0.0
        %2207 = vmatpush1.msra.mxu0 0.0
        %2208 = vmatprep.subr.mxu0 0.0
        %2209 = vmatpush1.msra.mxu0 0.0
        %2210 = vmatprep.subr.mxu0 0.0
        %2211 = vmatpush1.msra.mxu0 0.0
        %2212 = vmatprep.subr.mxu0 0.0
        %2213 = vmatpush1.msra.mxu0 0.0
        %2214 = vmatprep.mubr.f32.mxu0 0.0
        %2215 = vmatmul.mubr.f32.gmra.mrb[0].mxu0 %v2148
        %v2216 = vpop.f32.mrb[0].mxu0
        %v2217 = vadd.f32 0.0, %v2216
        %v2218 = vpop.f32.mrb[0].mxu0
        %2219 = vdwg.mxu0
        %v2220 = vadd.f32 %v1797, %v2217
        %v2221 = vmul.f32 %v2220, %v2220
        %v2222 = vsel %vm1051, %v2221, 0.0
        %2223 = vadd.xlane.f32.xlu0 %v2222
        %v2224 = vpop.xlane.xlu0 %2223
        %v2225 = vmul.f32 %v2224, %v1055
        %v2226 = vadd.f32 %v2225, 1e-06
        %v2227 = vrsqrt.pop %v2226
        %v2228 = vmul.f32 %v2220, %v2227
        %v2229 = vld [vmem:[%s13] sm:$0x1]
        %v2231 = vlaneseq
        %v2232 = vshrl.u32 %v2231, 7
        %v2233 = vsub.s32 0, %v2232
        %v2234 = vrot.slane %v2229, %v2233
        %v2236 = vmul.f32 %v2228, %v2234
        %v2237 = vmul.f32 %v1047, %v1047
        %v2238 = vsel %vm1051, %v2237, 0.0
        %2239 = vadd.xlane.f32.xlu0 %v2238
        %v2240 = vpop.xlane.xlu0 %2239
        %v2241 = vmul.f32 %v2240, %v1055
        %v2242 = vadd.f32 %v2241, 1e-06
        %v2243 = vrsqrt.pop %v2242
        %v2244 = vmul.f32 %v1047, %v2243
        %v2245 = vld [vmem:[%s14] sm:$0x1]
        %v2247 = vlaneseq
        %v2248 = vshrl.u32 %v2247, 7
        %v2249 = vsub.s32 0, %v2248
        %v2250 = vrot.slane %v2245, %v2249
        %v2252 = vmul.f32 %v2244, %v2250
        %v2253 = vld [vmem:[%s15] sm:$0xff]
        %v2254 = vld [vmem:[%s15 + $0x8] sm:$0xff]
        %v2255 = vld [vmem:[%s15 + $0x10] sm:$0xff]
        %v2256 = vld [vmem:[%s15 + $0x18] sm:$0xff]
        %v2257 = vld [vmem:[%s15 + $0x20] sm:$0xff]
        %v2258 = vld [vmem:[%s15 + $0x28] sm:$0xff]
        %v2259 = vld [vmem:[%s15 + $0x30] sm:$0xff]
        %v2260 = vld [vmem:[%s15 + $0x38] sm:$0xff]
        %v2261 = vld [vmem:[%s15 + $0x40] sm:$0xff]
        %v2262 = vld [vmem:[%s15 + $0x48] sm:$0xff]
        %v2263 = vld [vmem:[%s15 + $0x50] sm:$0xff]
        %v2264 = vld [vmem:[%s15 + $0x58] sm:$0xff]
        %v2266 = vsel %vm1051, %v2253, 0
        %v2269 = vsel %vm1051, %v2254, 0
        %v2272 = vsel %vm1051, %v2255, 0
        %v2275 = vsel %vm1051, %v2256, 0
        %v2278 = vsel %vm1051, %v2257, 0
        %v2281 = vsel %vm1051, %v2258, 0
        %v2284 = vsel %vm1051, %v2259, 0
        %v2287 = vsel %vm1051, %v2260, 0
        %v2290 = vsel %vm1051, %v2261, 0
        %v2293 = vsel %vm1051, %v2262, 0
        %v2296 = vsel %vm1051, %v2263, 0
        %v2299 = vsel %vm1051, %v2264, 0
        %v2302 = vsel %vm1051, %v2252, 0
        %2304 = vmatprep.subr.mxu0 0.0
        %2305 = vmatpush1.xpose.msra.mxu0 %v2302
        %2306 = vmatprep.subr.mxu0 0.0
        %2307 = vmatpush1.xpose.msra.mxu0 0.0
        %2308 = vmatprep.subr.mxu0 0.0
        %2309 = vmatpush1.xpose.msra.mxu0 0.0
        %2310 = vmatprep.subr.mxu0 0.0
        %2311 = vmatpush1.xpose.msra.mxu0 0.0
        %2312 = vmatprep.subr.mxu0 0.0
        %2313 = vmatpush1.xpose.msra.mxu0 0.0
        %2314 = vmatprep.subr.mxu0 0.0
        %2315 = vmatpush1.xpose.msra.mxu0 0.0
        %2316 = vmatprep.subr.mxu0 0.0
        %2317 = vmatpush1.xpose.msra.mxu0 0.0
        %2318 = vmatprep.subr.mxu0 0.0
        %2319 = vmatpush1.xpose.msra.mxu0 0.0
        %2320 = vmatprep.subr.mxu0 0.0
        %2321 = vmatpush1.xpose.msra.mxu0 0.0
        %2322 = vmatprep.subr.mxu0 0.0
        %2323 = vmatpush1.xpose.msra.mxu0 0.0
        %2324 = vmatprep.subr.mxu0 0.0
        %2325 = vmatpush1.xpose.msra.mxu0 0.0
        %2326 = vmatprep.subr.mxu0 0.0
        %2327 = vmatpush1.xpose.msra.mxu0 0.0
        %2328 = vmatprep.subr.mxu0 0.0
        %2329 = vmatpush1.xpose.msra.mxu0 0.0
        %2330 = vmatprep.subr.mxu0 0.0
        %2331 = vmatpush1.xpose.msra.mxu0 0.0
        %2332 = vmatprep.subr.mxu0 0.0
        %2333 = vmatpush1.xpose.msra.mxu0 0.0
        %2334 = vmatprep.subr.mxu0 0.0
        %2335 = vmatpush1.xpose.msra.mxu0 0.0
        %2336 = vmatprep.subr.mxu0 0.0
        %2337 = vmatpush1.xpose.msra.mxu0 0.0
        %2338 = vmatprep.subr.mxu0 0.0
        %2339 = vmatpush1.xpose.msra.mxu0 0.0
        %2340 = vmatprep.subr.mxu0 0.0
        %2341 = vmatpush1.xpose.msra.mxu0 0.0
        %2342 = vmatprep.subr.mxu0 0.0
        %2343 = vmatpush1.xpose.msra.mxu0 0.0
        %2344 = vmatprep.subr.mxu0 0.0
        %2345 = vmatpush1.xpose.msra.mxu0 0.0
        %2346 = vmatprep.subr.mxu0 0.0
        %2347 = vmatpush1.xpose.msra.mxu0 0.0
        %2348 = vmatprep.subr.mxu0 0.0
        %2349 = vmatpush1.xpose.msra.mxu0 0.0
        %2350 = vmatprep.subr.mxu0 0.0
        %2351 = vmatpush1.xpose.msra.mxu0 0.0
        %2352 = vmatprep.subr.mxu0 0.0
        %2353 = vmatpush1.xpose.msra.mxu0 0.0
        %2354 = vmatprep.subr.mxu0 0.0
        %2355 = vmatpush1.xpose.msra.mxu0 0.0
        %2356 = vmatprep.subr.mxu0 0.0
        %2357 = vmatpush1.xpose.msra.mxu0 0.0
        %2358 = vmatprep.subr.mxu0 0.0
        %2359 = vmatpush1.xpose.msra.mxu0 0.0
        %2360 = vmatprep.subr.mxu0 0.0
        %2361 = vmatpush1.xpose.msra.mxu0 0.0
        %2362 = vmatprep.subr.mxu0 0.0
        %2363 = vmatpush1.xpose.msra.mxu0 0.0
        %2364 = vmatprep.subr.mxu0 0.0
        %2365 = vmatpush1.xpose.msra.mxu0 0.0
        %2366 = vmatprep.subr.mxu0 0.0
        %2367 = vmatpush1.xpose.msra.mxu0 0.0
        %2368 = vmatprep.mubr.f32.mxu0 0.0
        %2369 = vmatmul.mubr.f32.gmra.mrb[0].mxu0 %v2266
        %v2370 = vpop.f32.mrb[0].mxu0
        %v2371 = vadd.f32 0.0, %v2370
        %v2372 = vpop.f32.mrb[0].mxu0
        %2373 = vmatprep.mubr.f32.mxu0 0.0
        %2374 = vmatmul.mubr.f32.gmra.mrb[0].mxu0 %v2269
        %v2375 = vpop.f32.mrb[0].mxu0
        %v2376 = vadd.f32 0.0, %v2375
        %v2377 = vpop.f32.mrb[0].mxu0
        %2378 = vmatprep.mubr.f32.mxu0 0.0
        %2379 = vmatmul.mubr.f32.gmra.mrb[0].mxu0 %v2272
        %v2380 = vpop.f32.mrb[0].mxu0
        %v2381 = vadd.f32 0.0, %v2380
        %v2382 = vpop.f32.mrb[0].mxu0
        %2383 = vmatprep.mubr.f32.mxu0 0.0
        %2384 = vmatmul.mubr.f32.gmra.mrb[0].mxu0 %v2275
        %v2385 = vpop.f32.mrb[0].mxu0
        %v2386 = vadd.f32 0.0, %v2385
        %v2387 = vpop.f32.mrb[0].mxu0
        %2388 = vmatprep.mubr.f32.mxu0 0.0
        %2389 = vmatmul.mubr.f32.gmra.mrb[0].mxu0 %v2278
        %v2390 = vpop.f32.mrb[0].mxu0
        %v2391 = vadd.f32 0.0, %v2390
        %v2392 = vpop.f32.mrb[0].mxu0
        %2393 = vmatprep.mubr.f32.mxu0 0.0
        %2394 = vmatmul.mubr.f32.gmra.mrb[0].mxu0 %v2281
        %v2395 = vpop.f32.mrb[0].mxu0
        %v2396 = vadd.f32 0.0, %v2395
        %v2397 = vpop.f32.mrb[0].mxu0
        %2398 = vmatprep.mubr.f32.mxu0 0.0
        %2399 = vmatmul.mubr.f32.gmra.mrb[0].mxu0 %v2284
        %v2400 = vpop.f32.mrb[0].mxu0
        %v2401 = vadd.f32 0.0, %v2400
        %v2402 = vpop.f32.mrb[0].mxu0
        %2403 = vmatprep.mubr.f32.mxu0 0.0
        %2404 = vmatmul.mubr.f32.gmra.mrb[0].mxu0 %v2287
        %v2405 = vpop.f32.mrb[0].mxu0
        %v2406 = vadd.f32 0.0, %v2405
        %v2407 = vpop.f32.mrb[0].mxu0
        %2408 = vmatprep.mubr.f32.mxu0 0.0
        %2409 = vmatmul.mubr.f32.gmra.mrb[0].mxu0 %v2290
        %v2410 = vpop.f32.mrb[0].mxu0
        %v2411 = vadd.f32 0.0, %v2410
        %v2412 = vpop.f32.mrb[0].mxu0
        %2413 = vmatprep.mubr.f32.mxu0 0.0
        %2414 = vmatmul.mubr.f32.gmra.mrb[0].mxu0 %v2293
        %v2415 = vpop.f32.mrb[0].mxu0
        %v2416 = vadd.f32 0.0, %v2415
        %v2417 = vpop.f32.mrb[0].mxu0
        %2418 = vmatprep.mubr.f32.mxu0 0.0
        %2419 = vmatmul.mubr.f32.gmra.mrb[0].mxu0 %v2296
        %v2420 = vpop.f32.mrb[0].mxu0
        %v2421 = vadd.f32 0.0, %v2420
        %v2422 = vpop.f32.mrb[0].mxu0
        %2423 = vmatprep.mubr.f32.mxu0 0.0
        %2424 = vmatmul.mubr.f32.gmra.mrb[0].mxu0 %v2299
        %v2425 = vpop.f32.mrb[0].mxu0
        %v2426 = vadd.f32 0.0, %v2425
        %v2427 = vpop.f32.mrb[0].mxu0
        %2428 = vdwg.mxu0
        %v2429 = vld [vmem:[%s16] sm:$0xff]
        %v2430 = vld [vmem:[%s16 + $0x8] sm:$0xff]
        %v2431 = vld [vmem:[%s16 + $0x10] sm:$0xff]
        %v2432 = vld [vmem:[%s16 + $0x18] sm:$0xff]
        %2433 = vxpose.xlu0.b32.start [1/16] %v2371, 128
        %2434 = vxpose.xlu0.b32.cont [2/16] %v2376, 128
        %2435 = vxpose.xlu0.b32.cont [3/16] 0.0, 128
        %2436 = vxpose.xlu0.b32.cont [4/16] 0.0, 128
        %2437 = vxpose.xlu0.b32.cont [5/16] 0.0, 128
        %2438 = vxpose.xlu0.b32.cont [6/16] 0.0, 128
        %2439 = vxpose.xlu0.b32.cont [7/16] 0.0, 128
        %2440 = vxpose.xlu0.b32.cont [8/16] 0.0, 128
        %2441 = vxpose.xlu0.b32.cont [9/16] 0.0, 128
        %2442 = vxpose.xlu0.b32.cont [10/16] 0.0, 128
        %2443 = vxpose.xlu0.b32.cont [11/16] 0.0, 128
        %2444 = vxpose.xlu0.b32.cont [12/16] 0.0, 128
        %2445 = vxpose.xlu0.b32.cont [13/16] 0.0, 128
        %2446 = vxpose.xlu0.b32.cont [14/16] 0.0, 128
        %2447 = vxpose.xlu0.b32.cont [15/16] 0.0, 128
        %2448 = vxpose.xlu0.b32.end [16/16] 0.0, 128
        %v2449 = vpop.trf.xlu0
        %v2450 = vpop.trf.xlu0
        %v2451 = vpop.trf.xlu0
        %v2452 = vpop.trf.xlu0
        %v2453 = vpop.trf.xlu0
        %v2454 = vpop.trf.xlu0
        %v2455 = vpop.trf.xlu0
        %v2456 = vpop.trf.xlu0
        %v2457 = vpop.trf.xlu0
        %v2458 = vpop.trf.xlu0
        %v2459 = vpop.trf.xlu0
        %v2460 = vpop.trf.xlu0
        %v2461 = vpop.trf.xlu0
        %v2462 = vpop.trf.xlu0
        %v2463 = vpop.trf.xlu0
        %v2464 = vpop.trf.xlu0
        %v2465 = vld [vmem:[%s5] sm:$0xff]
        %v2467 = vsel %vm1288, %v2449, 0
        %2469 = vmatprep.subr.mxu0 0.0
        %2470 = vmatpush1.msra.mxu0 %v2391
        %2471 = vmatprep.subr.mxu0 0.0
        %2472 = vmatpush1.msra.mxu0 %v2396
        %2473 = vmatprep.subr.mxu0 0.0
        %2474 = vmatpush1.msra.mxu0 0.0
        %2475 = vmatprep.subr.mxu0 0.0
        %2476 = vmatpush1.msra.mxu0 0.0
        %2477 = vmatprep.subr.mxu0 0.0
        %2478 = vmatpush1.msra.mxu0 0.0
        %2479 = vmatprep.subr.mxu0 0.0
        %2480 = vmatpush1.msra.mxu0 0.0
        %2481 = vmatprep.subr.mxu0 0.0
        %2482 = vmatpush1.msra.mxu0 0.0
        %2483 = vmatprep.subr.mxu0 0.0
        %2484 = vmatpush1.msra.mxu0 0.0
        %2485 = vmatprep.subr.mxu0 0.0
        %2486 = vmatpush1.msra.mxu0 0.0
        %2487 = vmatprep.subr.mxu0 0.0
        %2488 = vmatpush1.msra.mxu0 0.0
        %2489 = vmatprep.subr.mxu0 0.0
        %2490 = vmatpush1.msra.mxu0 0.0
        %2491 = vmatprep.subr.mxu0 0.0
        %2492 = vmatpush1.msra.mxu0 0.0
        %2493 = vmatprep.subr.mxu0 0.0
        %2494 = vmatpush1.msra.mxu0 0.0
        %2495 = vmatprep.subr.mxu0 0.0
        %2496 = vmatpush1.msra.mxu0 0.0
        %2497 = vmatprep.subr.mxu0 0.0
        %2498 = vmatpush1.msra.mxu0 0.0
        %2499 = vmatprep.subr.mxu0 0.0
        %2500 = vmatpush1.msra.mxu0 0.0
        %2501 = vmatprep.subr.mxu0 0.0
        %2502 = vmatpush1.msra.mxu0 0.0
        %2503 = vmatprep.subr.mxu0 0.0
        %2504 = vmatpush1.msra.mxu0 0.0
        %2505 = vmatprep.subr.mxu0 0.0
        %2506 = vmatpush1.msra.mxu0 0.0
        %2507 = vmatprep.subr.mxu0 0.0
        %2508 = vmatpush1.msra.mxu0 0.0
        %2509 = vmatprep.subr.mxu0 0.0
        %2510 = vmatpush1.msra.mxu0 0.0
        %2511 = vmatprep.subr.mxu0 0.0
        %2512 = vmatpush1.msra.mxu0 0.0
        %2513 = vmatprep.subr.mxu0 0.0
        %2514 = vmatpush1.msra.mxu0 0.0
        %2515 = vmatprep.subr.mxu0 0.0
        %2516 = vmatpush1.msra.mxu0 0.0
        %2517 = vmatprep.subr.mxu0 0.0
        %2518 = vmatpush1.msra.mxu0 0.0
        %2519 = vmatprep.subr.mxu0 0.0
        %2520 = vmatpush1.msra.mxu0 0.0
        %2521 = vmatprep.subr.mxu0 0.0
        %2522 = vmatpush1.msra.mxu0 0.0
        %2523 = vmatprep.subr.mxu0 0.0
        %2524 = vmatpush1.msra.mxu0 0.0
        %2525 = vmatprep.subr.mxu0 0.0
        %2526 = vmatpush1.msra.mxu0 0.0
        %2527 = vmatprep.subr.mxu0 0.0
        %2528 = vmatpush1.msra.mxu0 0.0
        %2529 = vmatprep.subr.mxu0 0.0
        %2530 = vmatpush1.msra.mxu0 0.0
        %2531 = vmatprep.subr.mxu0 0.0
        %2532 = vmatpush1.msra.mxu0 0.0
        %2533 = vmatprep.mubr.f32.mxu0 0.0
        %2534 = vmatmul.mubr.f32.gmra.mrb[0].mxu0 %v2467
        %v2535 = vpop.f32.mrb[0].mxu0
        %v2536 = vadd.f32 %v2465, %v2535
        %v2537 = vpop.f32.mrb[0].mxu0
        %2538 = vdwg.mxu0
        %v2539 = vsel %vm1362, %v2536, -inf
        %2540 = vmax.xlane.f32.xlu0 %v2539
        %v2541 = vpop.xlane.xlu0 %2540
        %v2542 = vsub.f32 %v2536, %v2541
        %v2543 = vmul.f32 %v2542, 1.442695
        %v2544 = vpow.pop %v2543
        %v2545 = vsel %vm1362, %v2544, 0.0
        %2546 = vadd.xlane.f32.xlu0 %v2545
        %v2547 = vpop.xlane.xlu0 %2546
        %v2548 = vrcp.pop %v2547
        %v2549 = vmul.f32 %v2544, %v2548
        %v2551 = vsel %vm1362, %v2549, 0
        %v2554 = vsel %vm1362, %v2411, 0
        %v2557 = vsel %vm1362, %v2416, 0
        %2559 = vmatprep.subr.mxu0 0.0
        %2560 = vmatpush1.xpose.msra.mxu0 %v2554
        %2561 = vmatprep.subr.mxu0 0.0
        %2562 = vmatpush1.xpose.msra.mxu0 %v2557
        %2563 = vmatprep.subr.mxu0 0.0
        %2564 = vmatpush1.xpose.msra.mxu0 0.0
        %2565 = vmatprep.subr.mxu0 0.0
        %2566 = vmatpush1.xpose.msra.mxu0 0.0
        %2567 = vmatprep.subr.mxu0 0.0
        %2568 = vmatpush1.xpose.msra.mxu0 0.0
        %2569 = vmatprep.subr.mxu0 0.0
        %2570 = vmatpush1.xpose.msra.mxu0 0.0
        %2571 = vmatprep.subr.mxu0 0.0
        %2572 = vmatpush1.xpose.msra.mxu0 0.0
        %2573 = vmatprep.subr.mxu0 0.0
        %2574 = vmatpush1.xpose.msra.mxu0 0.0
        %2575 = vmatprep.subr.mxu0 0.0
        %2576 = vmatpush1.xpose.msra.mxu0 0.0
        %2577 = vmatprep.subr.mxu0 0.0
        %2578 = vmatpush1.xpose.msra.mxu0 0.0
        %2579 = vmatprep.subr.mxu0 0.0
        %2580 = vmatpush1.xpose.msra.mxu0 0.0
        %2581 = vmatprep.subr.mxu0 0.0
        %2582 = vmatpush1.xpose.msra.mxu0 0.0
        %2583 = vmatprep.subr.mxu0 0.0
        %2584 = vmatpush1.xpose.msra.mxu0 0.0
        %2585 = vmatprep.subr.mxu0 0.0
        %2586 = vmatpush1.xpose.msra.mxu0 0.0
        %2587 = vmatprep.subr.mxu0 0.0
        %2588 = vmatpush1.xpose.msra.mxu0 0.0
        %2589 = vmatprep.subr.mxu0 0.0
        %2590 = vmatpush1.xpose.msra.mxu0 0.0
        %2591 = vmatprep.subr.mxu0 0.0
        %2592 = vmatpush1.xpose.msra.mxu0 0.0
        %2593 = vmatprep.subr.mxu0 0.0
        %2594 = vmatpush1.xpose.msra.mxu0 0.0
        %2595 = vmatprep.subr.mxu0 0.0
        %2596 = vmatpush1.xpose.msra.mxu0 0.0
        %2597 = vmatprep.subr.mxu0 0.0
        %2598 = vmatpush1.xpose.msra.mxu0 0.0
        %2599 = vmatprep.subr.mxu0 0.0
        %2600 = vmatpush1.xpose.msra.mxu0 0.0
        %2601 = vmatprep.subr.mxu0 0.0
        %2602 = vmatpush1.xpose.msra.mxu0 0.0
        %2603 = vmatprep.subr.mxu0 0.0
        %2604 = vmatpush1.xpose.msra.mxu0 0.0
        %2605 = vmatprep.subr.mxu0 0.0
        %2606 = vmatpush1.xpose.msra.mxu0 0.0
        %2607 = vmatprep.subr.mxu0 0.0
        %2608 = vmatpush1.xpose.msra.mxu0 0.0
        %2609 = vmatprep.subr.mxu0 0.0
        %2610 = vmatpush1.xpose.msra.mxu0 0.0
        %2611 = vmatprep.subr.mxu0 0.0
        %2612 = vmatpush1.xpose.msra.mxu0 0.0
        %2613 = vmatprep.subr.mxu0 0.0
        %2614 = vmatpush1.xpose.msra.mxu0 0.0
        %2615 = vmatprep.subr.mxu0 0.0
        %2616 = vmatpush1.xpose.msra.mxu0 0.0
        %2617 = vmatprep.subr.mxu0 0.0
        %2618 = vmatpush1.xpose.msra.mxu0 0.0
        %2619 = vmatprep.subr.mxu0 0.0
        %2620 = vmatpush1.xpose.msra.mxu0 0.0
        %2621 = vmatprep.subr.mxu0 0.0
        %2622 = vmatpush1.xpose.msra.mxu0 0.0
        %2623 = vmatprep.mubr.f32.mxu0 0.0
        %2624 = vmatmul.mubr.f32.gmra.mrb[0].mxu0 %v2551
        %v2625 = vpop.f32.mrb[0].mxu0
        %v2626 = vadd.f32 0.0, %v2625
        %v2627 = vpop.f32.mrb[0].mxu0
        %2628 = vdwg.mxu0
        %2629 = vxpose.xlu0.b32.start [1/16] %v2381, 128
        %2630 = vxpose.xlu0.b32.cont [2/16] %v2386, 128
        %2631 = vxpose.xlu0.b32.cont [3/16] 0.0, 128
        %2632 = vxpose.xlu0.b32.cont [4/16] 0.0, 128
        %2633 = vxpose.xlu0.b32.cont [5/16] 0.0, 128
        %2634 = vxpose.xlu0.b32.cont [6/16] 0.0, 128
        %2635 = vxpose.xlu0.b32.cont [7/16] 0.0, 128
        %2636 = vxpose.xlu0.b32.cont [8/16] 0.0, 128
        %2637 = vxpose.xlu0.b32.cont [9/16] 0.0, 128
        %2638 = vxpose.xlu0.b32.cont [10/16] 0.0, 128
        %2639 = vxpose.xlu0.b32.cont [11/16] 0.0, 128
        %2640 = vxpose.xlu0.b32.cont [12/16] 0.0, 128
        %2641 = vxpose.xlu0.b32.cont [13/16] 0.0, 128
        %2642 = vxpose.xlu0.b32.cont [14/16] 0.0, 128
        %2643 = vxpose.xlu0.b32.cont [15/16] 0.0, 128
        %2644 = vxpose.xlu0.b32.end [16/16] 0.0, 128
        %v2645 = vpop.trf.xlu0
        %v2646 = vpop.trf.xlu0
        %v2647 = vpop.trf.xlu0
        %v2648 = vpop.trf.xlu0
        %v2649 = vpop.trf.xlu0
        %v2650 = vpop.trf.xlu0
        %v2651 = vpop.trf.xlu0
        %v2652 = vpop.trf.xlu0
        %v2653 = vpop.trf.xlu0
        %v2654 = vpop.trf.xlu0
        %v2655 = vpop.trf.xlu0
        %v2656 = vpop.trf.xlu0
        %v2657 = vpop.trf.xlu0
        %v2658 = vpop.trf.xlu0
        %v2659 = vpop.trf.xlu0
        %v2660 = vpop.trf.xlu0
        %s2661 = scalar_lea.vmem %s5, 8
        %v2662 = vld [vmem:[%s2661] sm:$0xff]
        %v2664 = vsel %vm1288, %v2645, 0
        %2666 = vmatprep.subr.mxu0 0.0
        %2667 = vmatpush1.msra.mxu0 %v2401
        %2668 = vmatprep.subr.mxu0 0.0
        %2669 = vmatpush1.msra.mxu0 %v2406
        %2670 = vmatprep.subr.mxu0 0.0
        %2671 = vmatpush1.msra.mxu0 0.0
        %2672 = vmatprep.subr.mxu0 0.0
        %2673 = vmatpush1.msra.mxu0 0.0
        %2674 = vmatprep.subr.mxu0 0.0
        %2675 = vmatpush1.msra.mxu0 0.0
        %2676 = vmatprep.subr.mxu0 0.0
        %2677 = vmatpush1.msra.mxu0 0.0
        %2678 = vmatprep.subr.mxu0 0.0
        %2679 = vmatpush1.msra.mxu0 0.0
        %2680 = vmatprep.subr.mxu0 0.0
        %2681 = vmatpush1.msra.mxu0 0.0
        %2682 = vmatprep.subr.mxu0 0.0
        %2683 = vmatpush1.msra.mxu0 0.0
        %2684 = vmatprep.subr.mxu0 0.0
        %2685 = vmatpush1.msra.mxu0 0.0
        %2686 = vmatprep.subr.mxu0 0.0
        %2687 = vmatpush1.msra.mxu0 0.0
        %2688 = vmatprep.subr.mxu0 0.0
        %2689 = vmatpush1.msra.mxu0 0.0
        %2690 = vmatprep.subr.mxu0 0.0
        %2691 = vmatpush1.msra.mxu0 0.0
        %2692 = vmatprep.subr.mxu0 0.0
        %2693 = vmatpush1.msra.mxu0 0.0
        %2694 = vmatprep.subr.mxu0 0.0
        %2695 = vmatpush1.msra.mxu0 0.0
        %2696 = vmatprep.subr.mxu0 0.0
        %2697 = vmatpush1.msra.mxu0 0.0
        %2698 = vmatprep.subr.mxu0 0.0
        %2699 = vmatpush1.msra.mxu0 0.0
        %2700 = vmatprep.subr.mxu0 0.0
        %2701 = vmatpush1.msra.mxu0 0.0
        %2702 = vmatprep.subr.mxu0 0.0
        %2703 = vmatpush1.msra.mxu0 0.0
        %2704 = vmatprep.subr.mxu0 0.0
        %2705 = vmatpush1.msra.mxu0 0.0
        %2706 = vmatprep.subr.mxu0 0.0
        %2707 = vmatpush1.msra.mxu0 0.0
        %2708 = vmatprep.subr.mxu0 0.0
        %2709 = vmatpush1.msra.mxu0 0.0
        %2710 = vmatprep.subr.mxu0 0.0
        %2711 = vmatpush1.msra.mxu0 0.0
        %2712 = vmatprep.subr.mxu0 0.0
        %2713 = vmatpush1.msra.mxu0 0.0
        %2714 = vmatprep.subr.mxu0 0.0
        %2715 = vmatpush1.msra.mxu0 0.0
        %2716 = vmatprep.subr.mxu0 0.0
        %2717 = vmatpush1.msra.mxu0 0.0
        %2718 = vmatprep.subr.mxu0 0.0
        %2719 = vmatpush1.msra.mxu0 0.0
        %2720 = vmatprep.subr.mxu0 0.0
        %2721 = vmatpush1.msra.mxu0 0.0
        %2722 = vmatprep.subr.mxu0 0.0
        %2723 = vmatpush1.msra.mxu0 0.0
        %2724 = vmatprep.subr.mxu0 0.0
        %2725 = vmatpush1.msra.mxu0 0.0
        %2726 = vmatprep.subr.mxu0 0.0
        %2727 = vmatpush1.msra.mxu0 0.0
        %2728 = vmatprep.subr.mxu0 0.0
        %2729 = vmatpush1.msra.mxu0 0.0
        %2730 = vmatprep.mubr.f32.mxu0 0.0
        %2731 = vmatmul.mubr.f32.gmra.mrb[0].mxu0 %v2664
        %v2732 = vpop.f32.mrb[0].mxu0
        %v2733 = vadd.f32 %v2662, %v2732
        %v2734 = vpop.f32.mrb[0].mxu0
        %2735 = vdwg.mxu0
        %v2736 = vsel %vm1362, %v2733, -inf
        %2737 = vmax.xlane.f32.xlu0 %v2736
        %v2738 = vpop.xlane.xlu0 %2737
        %v2739 = vsub.f32 %v2733, %v2738
        %v2740 = vmul.f32 %v2739, 1.442695
        %v2741 = vpow.pop %v2740
        %v2742 = vsel %vm1362, %v2741, 0.0
        %2743 = vadd.xlane.f32.xlu0 %v2742
        %v2744 = vpop.xlane.xlu0 %2743
        %v2745 = vrcp.pop %v2744
        %v2746 = vmul.f32 %v2741, %v2745
        %v2748 = vsel %vm1362, %v2746, 0
        %v2751 = vsel %vm1362, %v2421, 0
        %v2754 = vsel %vm1362, %v2426, 0
        %2756 = vmatprep.subr.mxu0 0.0
        %2757 = vmatpush1.xpose.msra.mxu0 %v2751
        %2758 = vmatprep.subr.mxu0 0.0
        %2759 = vmatpush1.xpose.msra.mxu0 %v2754
        %2760 = vmatprep.subr.mxu0 0.0
        %2761 = vmatpush1.xpose.msra.mxu0 0.0
        %2762 = vmatprep.subr.mxu0 0.0
        %2763 = vmatpush1.xpose.msra.mxu0 0.0
        %2764 = vmatprep.subr.mxu0 0.0
        %2765 = vmatpush1.xpose.msra.mxu0 0.0
        %2766 = vmatprep.subr.mxu0 0.0
        %2767 = vmatpush1.xpose.msra.mxu0 0.0
        %2768 = vmatprep.subr.mxu0 0.0
        %2769 = vmatpush1.xpose.msra.mxu0 0.0
        %2770 = vmatprep.subr.mxu0 0.0
        %2771 = vmatpush1.xpose.msra.mxu0 0.0
        %2772 = vmatprep.subr.mxu0 0.0
        %2773 = vmatpush1.xpose.msra.mxu0 0.0
        %2774 = vmatprep.subr.mxu0 0.0
        %2775 = vmatpush1.xpose.msra.mxu0 0.0
        %2776 = vmatprep.subr.mxu0 0.0
        %2777 = vmatpush1.xpose.msra.mxu0 0.0
        %2778 = vmatprep.subr.mxu0 0.0
        %2779 = vmatpush1.xpose.msra.mxu0 0.0
        %2780 = vmatprep.subr.mxu0 0.0
        %2781 = vmatpush1.xpose.msra.mxu0 0.0
        %2782 = vmatprep.subr.mxu0 0.0
        %2783 = vmatpush1.xpose.msra.mxu0 0.0
        %2784 = vmatprep.subr.mxu0 0.0
        %2785 = vmatpush1.xpose.msra.mxu0 0.0
        %2786 = vmatprep.subr.mxu0 0.0
        %2787 = vmatpush1.xpose.msra.mxu0 0.0
        %2788 = vmatprep.subr.mxu0 0.0
        %2789 = vmatpush1.xpose.msra.mxu0 0.0
        %2790 = vmatprep.subr.mxu0 0.0
        %2791 = vmatpush1.xpose.msra.mxu0 0.0
        %2792 = vmatprep.subr.mxu0 0.0
        %2793 = vmatpush1.xpose.msra.mxu0 0.0
        %2794 = vmatprep.subr.mxu0 0.0
        %2795 = vmatpush1.xpose.msra.mxu0 0.0
        %2796 = vmatprep.subr.mxu0 0.0
        %2797 = vmatpush1.xpose.msra.mxu0 0.0
        %2798 = vmatprep.subr.mxu0 0.0
        %2799 = vmatpush1.xpose.msra.mxu0 0.0
        %2800 = vmatprep.subr.mxu0 0.0
        %2801 = vmatpush1.xpose.msra.mxu0 0.0
        %2802 = vmatprep.subr.mxu0 0.0
        %2803 = vmatpush1.xpose.msra.mxu0 0.0
        %2804 = vmatprep.subr.mxu0 0.0
        %2805 = vmatpush1.xpose.msra.mxu0 0.0
        %2806 = vmatprep.subr.mxu0 0.0
        %2807 = vmatpush1.xpose.msra.mxu0 0.0
        %2808 = vmatprep.subr.mxu0 0.0
        %2809 = vmatpush1.xpose.msra.mxu0 0.0
        %2810 = vmatprep.subr.mxu0 0.0
        %2811 = vmatpush1.xpose.msra.mxu0 0.0
        %2812 = vmatprep.subr.mxu0 0.0
        %2813 = vmatpush1.xpose.msra.mxu0 0.0
        %2814 = vmatprep.subr.mxu0 0.0
        %2815 = vmatpush1.xpose.msra.mxu0 0.0
        %2816 = vmatprep.subr.mxu0 0.0
        %2817 = vmatpush1.xpose.msra.mxu0 0.0
        %2818 = vmatprep.subr.mxu0 0.0
        %2819 = vmatpush1.xpose.msra.mxu0 0.0
        %2820 = vmatprep.mubr.f32.mxu0 0.0
        %2821 = vmatmul.mubr.f32.gmra.mrb[0].mxu0 %v2748
        %v2822 = vpop.f32.mrb[0].mxu0
        %v2823 = vadd.f32 0.0, %v2822
        %v2824 = vpop.f32.mrb[0].mxu0
        %2825 = vdwg.mxu0
        %v2827 = vsel %vm1288, %v2823, 0
        %2829 = vmatprep.subr.mxu0 0.0
        %2830 = vmatpush1.msra.mxu0 %v2431
        %2831 = vmatprep.subr.mxu0 0.0
        %2832 = vmatpush1.msra.mxu0 %v2432
        %2833 = vmatprep.subr.mxu0 0.0
        %2834 = vmatpush1.msra.mxu0 0.0
        %2835 = vmatprep.subr.mxu0 0.0
        %2836 = vmatpush1.msra.mxu0 0.0
        %2837 = vmatprep.subr.mxu0 0.0
        %2838 = vmatpush1.msra.mxu0 0.0
        %2839 = vmatprep.subr.mxu0 0.0
        %2840 = vmatpush1.msra.mxu0 0.0
        %2841 = vmatprep.subr.mxu0 0.0
        %2842 = vmatpush1.msra.mxu0 0.0
        %2843 = vmatprep.subr.mxu0 0.0
        %2844 = vmatpush1.msra.mxu0 0.0
        %2845 = vmatprep.subr.mxu0 0.0
        %2846 = vmatpush1.msra.mxu0 0.0
        %2847 = vmatprep.subr.mxu0 0.0
        %2848 = vmatpush1.msra.mxu0 0.0
        %2849 = vmatprep.subr.mxu0 0.0
        %2850 = vmatpush1.msra.mxu0 0.0
        %2851 = vmatprep.subr.mxu0 0.0
        %2852 = vmatpush1.msra.mxu0 0.0
        %2853 = vmatprep.subr.mxu0 0.0
        %2854 = vmatpush1.msra.mxu0 0.0
        %2855 = vmatprep.subr.mxu0 0.0
        %2856 = vmatpush1.msra.mxu0 0.0
        %2857 = vmatprep.subr.mxu0 0.0
        %2858 = vmatpush1.msra.mxu0 0.0
        %2859 = vmatprep.subr.mxu0 0.0
        %2860 = vmatpush1.msra.mxu0 0.0
        %2861 = vmatprep.subr.mxu0 0.0
        %2862 = vmatpush1.msra.mxu0 0.0
        %2863 = vmatprep.subr.mxu0 0.0
        %2864 = vmatpush1.msra.mxu0 0.0
        %2865 = vmatprep.subr.mxu0 0.0
        %2866 = vmatpush1.msra.mxu0 0.0
        %2867 = vmatprep.subr.mxu0 0.0
        %2868 = vmatpush1.msra.mxu0 0.0
        %2869 = vmatprep.subr.mxu0 0.0
        %2870 = vmatpush1.msra.mxu0 0.0
        %2871 = vmatprep.subr.mxu0 0.0
        %2872 = vmatpush1.msra.mxu0 0.0
        %2873 = vmatprep.subr.mxu0 0.0
        %2874 = vmatpush1.msra.mxu0 0.0
        %2875 = vmatprep.subr.mxu0 0.0
        %2876 = vmatpush1.msra.mxu0 0.0
        %2877 = vmatprep.subr.mxu0 0.0
        %2878 = vmatpush1.msra.mxu0 0.0
        %2879 = vmatprep.subr.mxu0 0.0
        %2880 = vmatpush1.msra.mxu0 0.0
        %2881 = vmatprep.subr.mxu0 0.0
        %2882 = vmatpush1.msra.mxu0 0.0
        %2883 = vmatprep.subr.mxu0 0.0
        %2884 = vmatpush1.msra.mxu0 0.0
        %2885 = vmatprep.subr.mxu0 0.0
        %2886 = vmatpush1.msra.mxu0 0.0
        %2887 = vmatprep.subr.mxu0 0.0
        %2888 = vmatpush1.msra.mxu0 0.0
        %2889 = vmatprep.subr.mxu0 0.0
        %2890 = vmatpush1.msra.mxu0 0.0
        %2891 = vmatprep.subr.mxu0 0.0
        %2892 = vmatpush1.msra.mxu0 0.0
        %2893 = vmatprep.mubr.f32.mxu0 0.0
        %2894 = vmatmul.mubr.f32.gmra.mrb[0].mxu0 %v2827
        %v2895 = vpop.f32.mrb[0].mxu0
        %v2896 = vadd.f32 0.0, %v2895
        %v2897 = vpop.f32.mrb[0].mxu0
        %2898 = vdwg.mxu0
        %v2900 = vsel %vm1288, %v2626, 0
        %2902 = vmatprep.subr.mxu0 0.0
        %2903 = vmatpush1.msra.mxu0 %v2429
        %2904 = vmatprep.subr.mxu0 0.0
        %2905 = vmatpush1.msra.mxu0 %v2430
        %2906 = vmatprep.subr.mxu0 0.0
        %2907 = vmatpush1.msra.mxu0 0.0
        %2908 = vmatprep.subr.mxu0 0.0
        %2909 = vmatpush1.msra.mxu0 0.0
        %2910 = vmatprep.subr.mxu0 0.0
        %2911 = vmatpush1.msra.mxu0 0.0
        %2912 = vmatprep.subr.mxu0 0.0
        %2913 = vmatpush1.msra.mxu0 0.0
        %2914 = vmatprep.subr.mxu0 0.0
        %2915 = vmatpush1.msra.mxu0 0.0
        %2916 = vmatprep.subr.mxu0 0.0
        %2917 = vmatpush1.msra.mxu0 0.0
        %2918 = vmatprep.subr.mxu0 0.0
        %2919 = vmatpush1.msra.mxu0 0.0
        %2920 = vmatprep.subr.mxu0 0.0
        %2921 = vmatpush1.msra.mxu0 0.0
        %2922 = vmatprep.subr.mxu0 0.0
        %2923 = vmatpush1.msra.mxu0 0.0
        %2924 = vmatprep.subr.mxu0 0.0
        %2925 = vmatpush1.msra.mxu0 0.0
        %2926 = vmatprep.subr.mxu0 0.0
        %2927 = vmatpush1.msra.mxu0 0.0
        %2928 = vmatprep.subr.mxu0 0.0
        %2929 = vmatpush1.msra.mxu0 0.0
        %2930 = vmatprep.subr.mxu0 0.0
        %2931 = vmatpush1.msra.mxu0 0.0
        %2932 = vmatprep.subr.mxu0 0.0
        %2933 = vmatpush1.msra.mxu0 0.0
        %2934 = vmatprep.subr.mxu0 0.0
        %2935 = vmatpush1.msra.mxu0 0.0
        %2936 = vmatprep.subr.mxu0 0.0
        %2937 = vmatpush1.msra.mxu0 0.0
        %2938 = vmatprep.subr.mxu0 0.0
        %2939 = vmatpush1.msra.mxu0 0.0
        %2940 = vmatprep.subr.mxu0 0.0
        %2941 = vmatpush1.msra.mxu0 0.0
        %2942 = vmatprep.subr.mxu0 0.0
        %2943 = vmatpush1.msra.mxu0 0.0
        %2944 = vmatprep.subr.mxu0 0.0
        %2945 = vmatpush1.msra.mxu0 0.0
        %2946 = vmatprep.subr.mxu0 0.0
        %2947 = vmatpush1.msra.mxu0 0.0
        %2948 = vmatprep.subr.mxu0 0.0
        %2949 = vmatpush1.msra.mxu0 0.0
        %2950 = vmatprep.subr.mxu0 0.0
        %2951 = vmatpush1.msra.mxu0 0.0
        %2952 = vmatprep.subr.mxu0 0.0
        %2953 = vmatpush1.msra.mxu0 0.0
        %2954 = vmatprep.subr.mxu0 0.0
        %2955 = vmatpush1.msra.mxu0 0.0
        %2956 = vmatprep.subr.mxu0 0.0
        %2957 = vmatpush1.msra.mxu0 0.0
        %2958 = vmatprep.subr.mxu0 0.0
        %2959 = vmatpush1.msra.mxu0 0.0
        %2960 = vmatprep.subr.mxu0 0.0
        %2961 = vmatpush1.msra.mxu0 0.0
        %2962 = vmatprep.subr.mxu0 0.0
        %2963 = vmatpush1.msra.mxu0 0.0
        %2964 = vmatprep.subr.mxu0 0.0
        %2965 = vmatpush1.msra.mxu0 0.0
        %2966 = vmatprep.mubr.f32.mxu0 0.0
        %2967 = vmatmul.mubr.f32.gmra.mrb[0].mxu0 %v2900
        %v2968 = vpop.f32.mrb[0].mxu0
        %v2969 = vadd.f32 %v2896, %v2968
        %v2970 = vpop.f32.mrb[0].mxu0
        %2971 = vdwg.mxu0
        %v2972 = vadd.f32 %v1047, %v2969
        %v2973 = vmul.f32 %v2972, %v2972
        %v2974 = vsel %vm1051, %v2973, 0.0
        %2975 = vadd.xlane.f32.xlu0 %v2974
        %v2976 = vpop.xlane.xlu0 %2975
        %v2977 = vmul.f32 %v2976, %v1055
        %v2978 = vadd.f32 %v2977, 1e-06
        %v2979 = vrsqrt.pop %v2978
        %v2980 = vmul.f32 %v2972, %v2979
        %v2981 = vld [vmem:[%s17] sm:$0x1]
        %v2983 = vlaneseq
        %v2984 = vshrl.u32 %v2983, 7
        %v2985 = vsub.s32 0, %v2984
        %v2986 = vrot.slane %v2981, %v2985
        %v2988 = vmul.f32 %v2980, %v2986
        %v2989 = vld [vmem:[%s18] sm:$0xff]
        %v2990 = vld [vmem:[%s18 + $0x8] sm:$0xff]
        %v2991 = vld [vmem:[%s18 + $0x10] sm:$0xff]
        %v2992 = vld [vmem:[%s18 + $0x18] sm:$0xff]
        %v2994 = vsel %vm1051, %v2989, 0
        %v2997 = vsel %vm1051, %v2990, 0
        %v3000 = vsel %vm1051, %v2991, 0
        %v3003 = vsel %vm1051, %v2992, 0
        %v3006 = vsel %vm1051, %v2988, 0
        %3008 = vmatprep.subr.mxu0 0.0
        %3009 = vmatpush1.xpose.msra.mxu0 %v3006
        %3010 = vmatprep.subr.mxu0 0.0
        %3011 = vmatpush1.xpose.msra.mxu0 0.0
        %3012 = vmatprep.subr.mxu0 0.0
        %3013 = vmatpush1.xpose.msra.mxu0 0.0
        %3014 = vmatprep.subr.mxu0 0.0
        %3015 = vmatpush1.xpose.msra.mxu0 0.0
        %3016 = vmatprep.subr.mxu0 0.0
        %3017 = vmatpush1.xpose.msra.mxu0 0.0
        %3018 = vmatprep.subr.mxu0 0.0
        %3019 = vmatpush1.xpose.msra.mxu0 0.0
        %3020 = vmatprep.subr.mxu0 0.0
        %3021 = vmatpush1.xpose.msra.mxu0 0.0
        %3022 = vmatprep.subr.mxu0 0.0
        %3023 = vmatpush1.xpose.msra.mxu0 0.0
        %3024 = vmatprep.subr.mxu0 0.0
        %3025 = vmatpush1.xpose.msra.mxu0 0.0
        %3026 = vmatprep.subr.mxu0 0.0
        %3027 = vmatpush1.xpose.msra.mxu0 0.0
        %3028 = vmatprep.subr.mxu0 0.0
        %3029 = vmatpush1.xpose.msra.mxu0 0.0
        %3030 = vmatprep.subr.mxu0 0.0
        %3031 = vmatpush1.xpose.msra.mxu0 0.0
        %3032 = vmatprep.subr.mxu0 0.0
        %3033 = vmatpush1.xpose.msra.mxu0 0.0
        %3034 = vmatprep.subr.mxu0 0.0
        %3035 = vmatpush1.xpose.msra.mxu0 0.0
        %3036 = vmatprep.subr.mxu0 0.0
        %3037 = vmatpush1.xpose.msra.mxu0 0.0
        %3038 = vmatprep.subr.mxu0 0.0
        %3039 = vmatpush1.xpose.msra.mxu0 0.0
        %3040 = vmatprep.subr.mxu0 0.0
        %3041 = vmatpush1.xpose.msra.mxu0 0.0
        %3042 = vmatprep.subr.mxu0 0.0
        %3043 = vmatpush1.xpose.msra.mxu0 0.0
        %3044 = vmatprep.subr.mxu0 0.0
        %3045 = vmatpush1.xpose.msra.mxu0 0.0
        %3046 = vmatprep.subr.mxu0 0.0
        %3047 = vmatpush1.xpose.msra.mxu0 0.0
        %3048 = vmatprep.subr.mxu0 0.0
        %3049 = vmatpush1.xpose.msra.mxu0 0.0
        %3050 = vmatprep.subr.mxu0 0.0
        %3051 = vmatpush1.xpose.msra.mxu0 0.0
        %3052 = vmatprep.subr.mxu0 0.0
        %3053 = vmatpush1.xpose.msra.mxu0 0.0
        %3054 = vmatprep.subr.mxu0 0.0
        %3055 = vmatpush1.xpose.msra.mxu0 0.0
        %3056 = vmatprep.subr.mxu0 0.0
        %3057 = vmatpush1.xpose.msra.mxu0 0.0
        %3058 = vmatprep.subr.mxu0 0.0
        %3059 = vmatpush1.xpose.msra.mxu0 0.0
        %3060 = vmatprep.subr.mxu0 0.0
        %3061 = vmatpush1.xpose.msra.mxu0 0.0
        %3062 = vmatprep.subr.mxu0 0.0
        %3063 = vmatpush1.xpose.msra.mxu0 0.0
        %3064 = vmatprep.subr.mxu0 0.0
        %3065 = vmatpush1.xpose.msra.mxu0 0.0
        %3066 = vmatprep.subr.mxu0 0.0
        %3067 = vmatpush1.xpose.msra.mxu0 0.0
        %3068 = vmatprep.subr.mxu0 0.0
        %3069 = vmatpush1.xpose.msra.mxu0 0.0
        %3070 = vmatprep.subr.mxu0 0.0
        %3071 = vmatpush1.xpose.msra.mxu0 0.0
        %3072 = vmatprep.mubr.f32.mxu0 0.0
        %3073 = vmatmul.mubr.f32.gmra.mrb[0].mxu0 %v2994
        %v3074 = vpop.f32.mrb[0].mxu0
        %v3075 = vadd.f32 0.0, %v3074
        %v3076 = vpop.f32.mrb[0].mxu0
        %3077 = vmatprep.mubr.f32.mxu0 0.0
        %3078 = vmatmul.mubr.f32.gmra.mrb[0].mxu0 %v2997
        %v3079 = vpop.f32.mrb[0].mxu0
        %v3080 = vadd.f32 0.0, %v3079
        %v3081 = vpop.f32.mrb[0].mxu0
        %3082 = vmatprep.mubr.f32.mxu0 0.0
        %3083 = vmatmul.mubr.f32.gmra.mrb[0].mxu0 %v3000
        %v3084 = vpop.f32.mrb[0].mxu0
        %v3085 = vadd.f32 0.0, %v3084
        %v3086 = vpop.f32.mrb[0].mxu0
        %3087 = vmatprep.mubr.f32.mxu0 0.0
        %3088 = vmatmul.mubr.f32.gmra.mrb[0].mxu0 %v3003
        %v3089 = vpop.f32.mrb[0].mxu0
        %v3090 = vadd.f32 0.0, %v3089
        %v3091 = vpop.f32.mrb[0].mxu0
        %3092 = vdwg.mxu0
        %v3093 = vld [vmem:[%s19] sm:$0xff]
        %v3094 = vld [vmem:[%s19 + $0x8] sm:$0xff]
        %v3095 = vld [vmem:[%s19 + $0x10] sm:$0xff]
        %v3096 = vld [vmem:[%s19 + $0x18] sm:$0xff]
        %v3097 = vld [vmem:[%s19 + $0x20] sm:$0xff]
        %v3098 = vld [vmem:[%s19 + $0x28] sm:$0xff]
        %v3099 = vld [vmem:[%s19 + $0x30] sm:$0xff]
        %v3100 = vld [vmem:[%s19 + $0x38] sm:$0xff]
        %v3102 = vsel %vm1051, %v3093, 0
        %v3105 = vsel %vm1051, %v3094, 0
        %v3108 = vsel %vm1051, %v3095, 0
        %v3111 = vsel %vm1051, %v3096, 0
        %v3114 = vsel %vm1051, %v3097, 0
        %v3117 = vsel %vm1051, %v3098, 0
        %v3120 = vsel %vm1051, %v3099, 0
        %v3123 = vsel %vm1051, %v3100, 0
        %v3126 = vsel %vm1051, %v2236, 0
        %3128 = vmatprep.subr.mxu0 0.0
        %3129 = vmatpush1.xpose.msra.mxu0 %v3126
        %3130 = vmatprep.subr.mxu0 0.0
        %3131 = vmatpush1.xpose.msra.mxu0 0.0
        %3132 = vmatprep.subr.mxu0 0.0
        %3133 = vmatpush1.xpose.msra.mxu0 0.0
        %3134 = vmatprep.subr.mxu0 0.0
        %3135 = vmatpush1.xpose.msra.mxu0 0.0
        %3136 = vmatprep.subr.mxu0 0.0
        %3137 = vmatpush1.xpose.msra.mxu0 0.0
        %3138 = vmatprep.subr.mxu0 0.0
        %3139 = vmatpush1.xpose.msra.mxu0 0.0
        %3140 = vmatprep.subr.mxu0 0.0
        %3141 = vmatpush1.xpose.msra.mxu0 0.0
        %3142 = vmatprep.subr.mxu0 0.0
        %3143 = vmatpush1.xpose.msra.mxu0 0.0
        %3144 = vmatprep.subr.mxu0 0.0
        %3145 = vmatpush1.xpose.msra.mxu0 0.0
        %3146 = vmatprep.subr.mxu0 0.0
        %3147 = vmatpush1.xpose.msra.mxu0 0.0
        %3148 = vmatprep.subr.mxu0 0.0
        %3149 = vmatpush1.xpose.msra.mxu0 0.0
        %3150 = vmatprep.subr.mxu0 0.0
        %3151 = vmatpush1.xpose.msra.mxu0 0.0
        %3152 = vmatprep.subr.mxu0 0.0
        %3153 = vmatpush1.xpose.msra.mxu0 0.0
        %3154 = vmatprep.subr.mxu0 0.0
        %3155 = vmatpush1.xpose.msra.mxu0 0.0
        %3156 = vmatprep.subr.mxu0 0.0
        %3157 = vmatpush1.xpose.msra.mxu0 0.0
        %3158 = vmatprep.subr.mxu0 0.0
        %3159 = vmatpush1.xpose.msra.mxu0 0.0
        %3160 = vmatprep.subr.mxu0 0.0
        %3161 = vmatpush1.xpose.msra.mxu0 0.0
        %3162 = vmatprep.subr.mxu0 0.0
        %3163 = vmatpush1.xpose.msra.mxu0 0.0
        %3164 = vmatprep.subr.mxu0 0.0
        %3165 = vmatpush1.xpose.msra.mxu0 0.0
        %3166 = vmatprep.subr.mxu0 0.0
        %3167 = vmatpush1.xpose.msra.mxu0 0.0
        %3168 = vmatprep.subr.mxu0 0.0
        %3169 = vmatpush1.xpose.msra.mxu0 0.0
        %3170 = vmatprep.subr.mxu0 0.0
        %3171 = vmatpush1.xpose.msra.mxu0 0.0
        %3172 = vmatprep.subr.mxu0 0.0
        %3173 = vmatpush1.xpose.msra.mxu0 0.0
        %3174 = vmatprep.subr.mxu0 0.0
        %3175 = vmatpush1.xpose.msra.mxu0 0.0
        %3176 = vmatprep.subr.mxu0 0.0
        %3177 = vmatpush1.xpose.msra.mxu0 0.0
        %3178 = vmatprep.subr.mxu0 0.0
        %3179 = vmatpush1.xpose.msra.mxu0 0.0
        %3180 = vmatprep.subr.mxu0 0.0
        %3181 = vmatpush1.xpose.msra.mxu0 0.0
        %3182 = vmatprep.subr.mxu0 0.0
        %3183 = vmatpush1.xpose.msra.mxu0 0.0
        %3184 = vmatprep.subr.mxu0 0.0
        %3185 = vmatpush1.xpose.msra.mxu0 0.0
        %3186 = vmatprep.subr.mxu0 0.0
        %3187 = vmatpush1.xpose.msra.mxu0 0.0
        %3188 = vmatprep.subr.mxu0 0.0
        %3189 = vmatpush1.xpose.msra.mxu0 0.0
        %3190 = vmatprep.subr.mxu0 0.0
        %3191 = vmatpush1.xpose.msra.mxu0 0.0
        %3192 = vmatprep.mubr.f32.mxu0 0.0
        %3193 = vmatmul.mubr.f32.gmra.mrb[0].mxu0 %v3102
        %v3194 = vpop.f32.mrb[0].mxu0
        %v3195 = vadd.f32 0.0, %v3194
        %v3196 = vpop.f32.mrb[0].mxu0
        %3197 = vmatprep.mubr.f32.mxu0 0.0
        %3198 = vmatmul.mubr.f32.gmra.mrb[0].mxu0 %v3105
        %v3199 = vpop.f32.mrb[0].mxu0
        %v3200 = vadd.f32 0.0, %v3199
        %v3201 = vpop.f32.mrb[0].mxu0
        %3202 = vmatprep.mubr.f32.mxu0 0.0
        %3203 = vmatmul.mubr.f32.gmra.mrb[0].mxu0 %v3108
        %v3204 = vpop.f32.mrb[0].mxu0
        %v3205 = vadd.f32 0.0, %v3204
        %v3206 = vpop.f32.mrb[0].mxu0
        %3207 = vmatprep.mubr.f32.mxu0 0.0
        %3208 = vmatmul.mubr.f32.gmra.mrb[0].mxu0 %v3111
        %v3209 = vpop.f32.mrb[0].mxu0
        %v3210 = vadd.f32 0.0, %v3209
        %v3211 = vpop.f32.mrb[0].mxu0
        %3212 = vmatprep.mubr.f32.mxu0 0.0
        %3213 = vmatmul.mubr.f32.gmra.mrb[0].mxu0 %v3114
        %v3214 = vpop.f32.mrb[0].mxu0
        %v3215 = vadd.f32 0.0, %v3214
        %v3216 = vpop.f32.mrb[0].mxu0
        %3217 = vmatprep.mubr.f32.mxu0 0.0
        %3218 = vmatmul.mubr.f32.gmra.mrb[0].mxu0 %v3117
        %v3219 = vpop.f32.mrb[0].mxu0
        %v3220 = vadd.f32 0.0, %v3219
        %v3221 = vpop.f32.mrb[0].mxu0
        %3222 = vmatprep.mubr.f32.mxu0 0.0
        %3223 = vmatmul.mubr.f32.gmra.mrb[0].mxu0 %v3120
        %v3224 = vpop.f32.mrb[0].mxu0
        %v3225 = vadd.f32 0.0, %v3224
        %v3226 = vpop.f32.mrb[0].mxu0
        %3227 = vmatprep.mubr.f32.mxu0 0.0
        %3228 = vmatmul.mubr.f32.gmra.mrb[0].mxu0 %v3123
        %v3229 = vpop.f32.mrb[0].mxu0
        %v3230 = vadd.f32 0.0, %v3229
        %v3231 = vpop.f32.mrb[0].mxu0
        %3232 = vdwg.mxu0
        %v3233 = vld [vmem:[%s20] sm:$0xff]
        %v3234 = vld [vmem:[%s20 + $0x8] sm:$0xff]
        %v3235 = vld [vmem:[%s20 + $0x10] sm:$0xff]
        %v3236 = vld [vmem:[%s20 + $0x18] sm:$0xff]
        %3237 = vxpose.xlu0.b32.start [1/16] %v3075, 128
        %3238 = vxpose.xlu0.b32.cont [2/16] %v3080, 128
        %3239 = vxpose.xlu0.b32.cont [3/16] 0.0, 128
        %3240 = vxpose.xlu0.b32.cont [4/16] 0.0, 128
        %3241 = vxpose.xlu0.b32.cont [5/16] 0.0, 128
        %3242 = vxpose.xlu0.b32.cont [6/16] 0.0, 128
        %3243 = vxpose.xlu0.b32.cont [7/16] 0.0, 128
        %3244 = vxpose.xlu0.b32.cont [8/16] 0.0, 128
        %3245 = vxpose.xlu0.b32.cont [9/16] 0.0, 128
        %3246 = vxpose.xlu0.b32.cont [10/16] 0.0, 128
        %3247 = vxpose.xlu0.b32.cont [11/16] 0.0, 128
        %3248 = vxpose.xlu0.b32.cont [12/16] 0.0, 128
        %3249 = vxpose.xlu0.b32.cont [13/16] 0.0, 128
        %3250 = vxpose.xlu0.b32.cont [14/16] 0.0, 128
        %3251 = vxpose.xlu0.b32.cont [15/16] 0.0, 128
        %3252 = vxpose.xlu0.b32.end [16/16] 0.0, 128
        %v3253 = vpop.trf.xlu0
        %v3254 = vpop.trf.xlu0
        %v3255 = vpop.trf.xlu0
        %v3256 = vpop.trf.xlu0
        %v3257 = vpop.trf.xlu0
        %v3258 = vpop.trf.xlu0
        %v3259 = vpop.trf.xlu0
        %v3260 = vpop.trf.xlu0
        %v3261 = vpop.trf.xlu0
        %v3262 = vpop.trf.xlu0
        %v3263 = vpop.trf.xlu0
        %v3264 = vpop.trf.xlu0
        %v3265 = vpop.trf.xlu0
        %v3266 = vpop.trf.xlu0
        %v3267 = vpop.trf.xlu0
        %v3268 = vpop.trf.xlu0
        %v3270 = vsel %vm1288, %v3253, 0
        %3272 = vmatprep.subr.mxu0 0.0
        %3273 = vmatpush1.msra.mxu0 %v3195
        %3274 = vmatprep.subr.mxu0 0.0
        %3275 = vmatpush1.msra.mxu0 %v3200
        %3276 = vmatprep.subr.mxu0 0.0
        %3277 = vmatpush1.msra.mxu0 0.0
        %3278 = vmatprep.subr.mxu0 0.0
        %3279 = vmatpush1.msra.mxu0 0.0
        %3280 = vmatprep.subr.mxu0 0.0
        %3281 = vmatpush1.msra.mxu0 0.0
        %3282 = vmatprep.subr.mxu0 0.0
        %3283 = vmatpush1.msra.mxu0 0.0
        %3284 = vmatprep.subr.mxu0 0.0
        %3285 = vmatpush1.msra.mxu0 0.0
        %3286 = vmatprep.subr.mxu0 0.0
        %3287 = vmatpush1.msra.mxu0 0.0
        %3288 = vmatprep.subr.mxu0 0.0
        %3289 = vmatpush1.msra.mxu0 0.0
        %3290 = vmatprep.subr.mxu0 0.0
        %3291 = vmatpush1.msra.mxu0 0.0
        %3292 = vmatprep.subr.mxu0 0.0
        %3293 = vmatpush1.msra.mxu0 0.0
        %3294 = vmatprep.subr.mxu0 0.0
        %3295 = vmatpush1.msra.mxu0 0.0
        %3296 = vmatprep.subr.mxu0 0.0
        %3297 = vmatpush1.msra.mxu0 0.0
        %3298 = vmatprep.subr.mxu0 0.0
        %3299 = vmatpush1.msra.mxu0 0.0
        %3300 = vmatprep.subr.mxu0 0.0
        %3301 = vmatpush1.msra.mxu0 0.0
        %3302 = vmatprep.subr.mxu0 0.0
        %3303 = vmatpush1.msra.mxu0 0.0
        %3304 = vmatprep.subr.mxu0 0.0
        %3305 = vmatpush1.msra.mxu0 0.0
        %3306 = vmatprep.subr.mxu0 0.0
        %3307 = vmatpush1.msra.mxu0 0.0
        %3308 = vmatprep.subr.mxu0 0.0
        %3309 = vmatpush1.msra.mxu0 0.0
        %3310 = vmatprep.subr.mxu0 0.0
        %3311 = vmatpush1.msra.mxu0 0.0
        %3312 = vmatprep.subr.mxu0 0.0
        %3313 = vmatpush1.msra.mxu0 0.0
        %3314 = vmatprep.subr.mxu0 0.0
        %3315 = vmatpush1.msra.mxu0 0.0
        %3316 = vmatprep.subr.mxu0 0.0
        %3317 = vmatpush1.msra.mxu0 0.0
        %3318 = vmatprep.subr.mxu0 0.0
        %3319 = vmatpush1.msra.mxu0 0.0
        %3320 = vmatprep.subr.mxu0 0.0
        %3321 = vmatpush1.msra.mxu0 0.0
        %3322 = vmatprep.subr.mxu0 0.0
        %3323 = vmatpush1.msra.mxu0 0.0
        %3324 = vmatprep.subr.mxu0 0.0
        %3325 = vmatpush1.msra.mxu0 0.0
        %3326 = vmatprep.subr.mxu0 0.0
        %3327 = vmatpush1.msra.mxu0 0.0
        %3328 = vmatprep.subr.mxu0 0.0
        %3329 = vmatpush1.msra.mxu0 0.0
        %3330 = vmatprep.subr.mxu0 0.0
        %3331 = vmatpush1.msra.mxu0 0.0
        %3332 = vmatprep.subr.mxu0 0.0
        %3333 = vmatpush1.msra.mxu0 0.0
        %3334 = vmatprep.subr.mxu0 0.0
        %3335 = vmatpush1.msra.mxu0 0.0
        %3336 = vmatprep.mubr.f32.mxu0 0.0
        %3337 = vmatmul.mubr.f32.gmra.mrb[0].mxu0 %v3270
        %v3338 = vpop.f32.mrb[0].mxu0
        %v3339 = vadd.f32 %v1285, %v3338
        %v3340 = vpop.f32.mrb[0].mxu0
        %3341 = vdwg.mxu0
        %v3342 = vsel %vm1362, %v3339, -inf
        %3343 = vmax.xlane.f32.xlu0 %v3342
        %v3344 = vpop.xlane.xlu0 %3343
        %v3345 = vsub.f32 %v3339, %v3344
        %v3346 = vmul.f32 %v3345, 1.442695
        %v3347 = vpow.pop %v3346
        %v3348 = vsel %vm1362, %v3347, 0.0
        %3349 = vadd.xlane.f32.xlu0 %v3348
        %v3350 = vpop.xlane.xlu0 %3349
        %v3351 = vrcp.pop %v3350
        %v3352 = vmul.f32 %v3347, %v3351
        %v3354 = vsel %vm1362, %v3352, 0
        %v3357 = vsel %vm1362, %v3215, 0
        %v3360 = vsel %vm1362, %v3220, 0
        %3362 = vmatprep.subr.mxu0 0.0
        %3363 = vmatpush1.xpose.msra.mxu0 %v3357
        %3364 = vmatprep.subr.mxu0 0.0
        %3365 = vmatpush1.xpose.msra.mxu0 %v3360
        %3366 = vmatprep.subr.mxu0 0.0
        %3367 = vmatpush1.xpose.msra.mxu0 0.0
        %3368 = vmatprep.subr.mxu0 0.0
        %3369 = vmatpush1.xpose.msra.mxu0 0.0
        %3370 = vmatprep.subr.mxu0 0.0
        %3371 = vmatpush1.xpose.msra.mxu0 0.0
        %3372 = vmatprep.subr.mxu0 0.0
        %3373 = vmatpush1.xpose.msra.mxu0 0.0
        %3374 = vmatprep.subr.mxu0 0.0
        %3375 = vmatpush1.xpose.msra.mxu0 0.0
        %3376 = vmatprep.subr.mxu0 0.0
        %3377 = vmatpush1.xpose.msra.mxu0 0.0
        %3378 = vmatprep.subr.mxu0 0.0
        %3379 = vmatpush1.xpose.msra.mxu0 0.0
        %3380 = vmatprep.subr.mxu0 0.0
        %3381 = vmatpush1.xpose.msra.mxu0 0.0
        %3382 = vmatprep.subr.mxu0 0.0
        %3383 = vmatpush1.xpose.msra.mxu0 0.0
        %3384 = vmatprep.subr.mxu0 0.0
        %3385 = vmatpush1.xpose.msra.mxu0 0.0
        %3386 = vmatprep.subr.mxu0 0.0
        %3387 = vmatpush1.xpose.msra.mxu0 0.0
        %3388 = vmatprep.subr.mxu0 0.0
        %3389 = vmatpush1.xpose.msra.mxu0 0.0
        %3390 = vmatprep.subr.mxu0 0.0
        %3391 = vmatpush1.xpose.msra.mxu0 0.0
        %3392 = vmatprep.subr.mxu0 0.0
        %3393 = vmatpush1.xpose.msra.mxu0 0.0
        %3394 = vmatprep.subr.mxu0 0.0
        %3395 = vmatpush1.xpose.msra.mxu0 0.0
        %3396 = vmatprep.subr.mxu0 0.0
        %3397 = vmatpush1.xpose.msra.mxu0 0.0
        %3398 = vmatprep.subr.mxu0 0.0
        %3399 = vmatpush1.xpose.msra.mxu0 0.0
        %3400 = vmatprep.subr.mxu0 0.0
        %3401 = vmatpush1.xpose.msra.mxu0 0.0
        %3402 = vmatprep.subr.mxu0 0.0
        %3403 = vmatpush1.xpose.msra.mxu0 0.0
        %3404 = vmatprep.subr.mxu0 0.0
        %3405 = vmatpush1.xpose.msra.mxu0 0.0
        %3406 = vmatprep.subr.mxu0 0.0
        %3407 = vmatpush1.xpose.msra.mxu0 0.0
        %3408 = vmatprep.subr.mxu0 0.0
        %3409 = vmatpush1.xpose.msra.mxu0 0.0
        %3410 = vmatprep.subr.mxu0 0.0
        %3411 = vmatpush1.xpose.msra.mxu0 0.0
        %3412 = vmatprep.subr.mxu0 0.0
        %3413 = vmatpush1.xpose.msra.mxu0 0.0
        %3414 = vmatprep.subr.mxu0 0.0
        %3415 = vmatpush1.xpose.msra.mxu0 0.0
        %3416 = vmatprep.subr.mxu0 0.0
        %3417 = vmatpush1.xpose.msra.mxu0 0.0
        %3418 = vmatprep.subr.mxu0 0.0
        %3419 = vmatpush1.xpose.msra.mxu0 0.0
        %3420 = vmatprep.subr.mxu0 0.0
        %3421 = vmatpush1.xpose.msra.mxu0 0.0
        %3422 = vmatprep.subr.mxu0 0.0
        %3423 = vmatpush1.xpose.msra.mxu0 0.0
        %3424 = vmatprep.subr.mxu0 0.0
        %3425 = vmatpush1.xpose.msra.mxu0 0.0
        %3426 = vmatprep.mubr.f32.mxu0 0.0
        %3427 = vmatmul.mubr.f32.gmra.mrb[0].mxu0 %v3354
        %v3428 = vpop.f32.mrb[0].mxu0
        %v3429 = vadd.f32 0.0, %v3428
        %v3430 = vpop.f32.mrb[0].mxu0
        %3431 = vdwg.mxu0
        %3432 = vxpose.xlu0.b32.start [1/16] %v3085, 128
        %3433 = vxpose.xlu0.b32.cont [2/16] %v3090, 128
        %3434 = vxpose.xlu0.b32.cont [3/16] 0.0, 128
        %3435 = vxpose.xlu0.b32.cont [4/16] 0.0, 128
        %3436 = vxpose.xlu0.b32.cont [5/16] 0.0, 128
        %3437 = vxpose.xlu0.b32.cont [6/16] 0.0, 128
        %3438 = vxpose.xlu0.b32.cont [7/16] 0.0, 128
        %3439 = vxpose.xlu0.b32.cont [8/16] 0.0, 128
        %3440 = vxpose.xlu0.b32.cont [9/16] 0.0, 128
        %3441 = vxpose.xlu0.b32.cont [10/16] 0.0, 128
        %3442 = vxpose.xlu0.b32.cont [11/16] 0.0, 128
        %3443 = vxpose.xlu0.b32.cont [12/16] 0.0, 128
        %3444 = vxpose.xlu0.b32.cont [13/16] 0.0, 128
        %3445 = vxpose.xlu0.b32.cont [14/16] 0.0, 128
        %3446 = vxpose.xlu0.b32.cont [15/16] 0.0, 128
        %3447 = vxpose.xlu0.b32.end [16/16] 0.0, 128
        %v3448 = vpop.trf.xlu0
        %v3449 = vpop.trf.xlu0
        %v3450 = vpop.trf.xlu0
        %v3451 = vpop.trf.xlu0
        %v3452 = vpop.trf.xlu0
        %v3453 = vpop.trf.xlu0
        %v3454 = vpop.trf.xlu0
        %v3455 = vpop.trf.xlu0
        %v3456 = vpop.trf.xlu0
        %v3457 = vpop.trf.xlu0
        %v3458 = vpop.trf.xlu0
        %v3459 = vpop.trf.xlu0
        %v3460 = vpop.trf.xlu0
        %v3461 = vpop.trf.xlu0
        %v3462 = vpop.trf.xlu0
        %v3463 = vpop.trf.xlu0
        %v3465 = vsel %vm1288, %v3448, 0
        %3467 = vmatprep.subr.mxu0 0.0
        %3468 = vmatpush1.msra.mxu0 %v3205
        %3469 = vmatprep.subr.mxu0 0.0
        %3470 = vmatpush1.msra.mxu0 %v3210
        %3471 = vmatprep.subr.mxu0 0.0
        %3472 = vmatpush1.msra.mxu0 0.0
        %3473 = vmatprep.subr.mxu0 0.0
        %3474 = vmatpush1.msra.mxu0 0.0
        %3475 = vmatprep.subr.mxu0 0.0
        %3476 = vmatpush1.msra.mxu0 0.0
        %3477 = vmatprep.subr.mxu0 0.0
        %3478 = vmatpush1.msra.mxu0 0.0
        %3479 = vmatprep.subr.mxu0 0.0
        %3480 = vmatpush1.msra.mxu0 0.0
        %3481 = vmatprep.subr.mxu0 0.0
        %3482 = vmatpush1.msra.mxu0 0.0
        %3483 = vmatprep.subr.mxu0 0.0
        %3484 = vmatpush1.msra.mxu0 0.0
        %3485 = vmatprep.subr.mxu0 0.0
        %3486 = vmatpush1.msra.mxu0 0.0
        %3487 = vmatprep.subr.mxu0 0.0
        %3488 = vmatpush1.msra.mxu0 0.0
        %3489 = vmatprep.subr.mxu0 0.0
        %3490 = vmatpush1.msra.mxu0 0.0
        %3491 = vmatprep.subr.mxu0 0.0
        %3492 = vmatpush1.msra.mxu0 0.0
        %3493 = vmatprep.subr.mxu0 0.0
        %3494 = vmatpush1.msra.mxu0 0.0
        %3495 = vmatprep.subr.mxu0 0.0
        %3496 = vmatpush1.msra.mxu0 0.0
        %3497 = vmatprep.subr.mxu0 0.0
        %3498 = vmatpush1.msra.mxu0 0.0
        %3499 = vmatprep.subr.mxu0 0.0
        %3500 = vmatpush1.msra.mxu0 0.0
        %3501 = vmatprep.subr.mxu0 0.0
        %3502 = vmatpush1.msra.mxu0 0.0
        %3503 = vmatprep.subr.mxu0 0.0
        %3504 = vmatpush1.msra.mxu0 0.0
        %3505 = vmatprep.subr.mxu0 0.0
        %3506 = vmatpush1.msra.mxu0 0.0
        %3507 = vmatprep.subr.mxu0 0.0
        %3508 = vmatpush1.msra.mxu0 0.0
        %3509 = vmatprep.subr.mxu0 0.0
        %3510 = vmatpush1.msra.mxu0 0.0
        %3511 = vmatprep.subr.mxu0 0.0
        %3512 = vmatpush1.msra.mxu0 0.0
        %3513 = vmatprep.subr.mxu0 0.0
        %3514 = vmatpush1.msra.mxu0 0.0
        %3515 = vmatprep.subr.mxu0 0.0
        %3516 = vmatpush1.msra.mxu0 0.0
        %3517 = vmatprep.subr.mxu0 0.0
        %3518 = vmatpush1.msra.mxu0 0.0
        %3519 = vmatprep.subr.mxu0 0.0
        %3520 = vmatpush1.msra.mxu0 0.0
        %3521 = vmatprep.subr.mxu0 0.0
        %3522 = vmatpush1.msra.mxu0 0.0
        %3523 = vmatprep.subr.mxu0 0.0
        %3524 = vmatpush1.msra.mxu0 0.0
        %3525 = vmatprep.subr.mxu0 0.0
        %3526 = vmatpush1.msra.mxu0 0.0
        %3527 = vmatprep.subr.mxu0 0.0
        %3528 = vmatpush1.msra.mxu0 0.0
        %3529 = vmatprep.subr.mxu0 0.0
        %3530 = vmatpush1.msra.mxu0 0.0
        %3531 = vmatprep.mubr.f32.mxu0 0.0
        %3532 = vmatmul.mubr.f32.gmra.mrb[0].mxu0 %v3465
        %v3533 = vpop.f32.mrb[0].mxu0
        %v3534 = vadd.f32 %v1285, %v3533
        %v3535 = vpop.f32.mrb[0].mxu0
        %3536 = vdwg.mxu0
        %v3537 = vsel %vm1362, %v3534, -inf
        %3538 = vmax.xlane.f32.xlu0 %v3537
        %v3539 = vpop.xlane.xlu0 %3538
        %v3540 = vsub.f32 %v3534, %v3539
        %v3541 = vmul.f32 %v3540, 1.442695
        %v3542 = vpow.pop %v3541
        %v3543 = vsel %vm1362, %v3542, 0.0
        %3544 = vadd.xlane.f32.xlu0 %v3543
        %v3545 = vpop.xlane.xlu0 %3544
        %v3546 = vrcp.pop %v3545
        %v3547 = vmul.f32 %v3542, %v3546
        %v3549 = vsel %vm1362, %v3547, 0
        %v3552 = vsel %vm1362, %v3225, 0
        %v3555 = vsel %vm1362, %v3230, 0
        %3557 = vmatprep.subr.mxu0 0.0
        %3558 = vmatpush1.xpose.msra.mxu0 %v3552
        %3559 = vmatprep.subr.mxu0 0.0
        %3560 = vmatpush1.xpose.msra.mxu0 %v3555
        %3561 = vmatprep.subr.mxu0 0.0
        %3562 = vmatpush1.xpose.msra.mxu0 0.0
        %3563 = vmatprep.subr.mxu0 0.0
        %3564 = vmatpush1.xpose.msra.mxu0 0.0
        %3565 = vmatprep.subr.mxu0 0.0
        %3566 = vmatpush1.xpose.msra.mxu0 0.0
        %3567 = vmatprep.subr.mxu0 0.0
        %3568 = vmatpush1.xpose.msra.mxu0 0.0
        %3569 = vmatprep.subr.mxu0 0.0
        %3570 = vmatpush1.xpose.msra.mxu0 0.0
        %3571 = vmatprep.subr.mxu0 0.0
        %3572 = vmatpush1.xpose.msra.mxu0 0.0
        %3573 = vmatprep.subr.mxu0 0.0
        %3574 = vmatpush1.xpose.msra.mxu0 0.0
        %3575 = vmatprep.subr.mxu0 0.0
        %3576 = vmatpush1.xpose.msra.mxu0 0.0
        %3577 = vmatprep.subr.mxu0 0.0
        %3578 = vmatpush1.xpose.msra.mxu0 0.0
        %3579 = vmatprep.subr.mxu0 0.0
        %3580 = vmatpush1.xpose.msra.mxu0 0.0
        %3581 = vmatprep.subr.mxu0 0.0
        %3582 = vmatpush1.xpose.msra.mxu0 0.0
        %3583 = vmatprep.subr.mxu0 0.0
        %3584 = vmatpush1.xpose.msra.mxu0 0.0
        %3585 = vmatprep.subr.mxu0 0.0
        %3586 = vmatpush1.xpose.msra.mxu0 0.0
        %3587 = vmatprep.subr.mxu0 0.0
        %3588 = vmatpush1.xpose.msra.mxu0 0.0
        %3589 = vmatprep.subr.mxu0 0.0
        %3590 = vmatpush1.xpose.msra.mxu0 0.0
        %3591 = vmatprep.subr.mxu0 0.0
        %3592 = vmatpush1.xpose.msra.mxu0 0.0
        %3593 = vmatprep.subr.mxu0 0.0
        %3594 = vmatpush1.xpose.msra.mxu0 0.0
        %3595 = vmatprep.subr.mxu0 0.0
        %3596 = vmatpush1.xpose.msra.mxu0 0.0
        %3597 = vmatprep.subr.mxu0 0.0
        %3598 = vmatpush1.xpose.msra.mxu0 0.0
        %3599 = vmatprep.subr.mxu0 0.0
        %3600 = vmatpush1.xpose.msra.mxu0 0.0
        %3601 = vmatprep.subr.mxu0 0.0
        %3602 = vmatpush1.xpose.msra.mxu0 0.0
        %3603 = vmatprep.subr.mxu0 0.0
        %3604 = vmatpush1.xpose.msra.mxu0 0.0
        %3605 = vmatprep.subr.mxu0 0.0
        %3606 = vmatpush1.xpose.msra.mxu0 0.0
        %3607 = vmatprep.subr.mxu0 0.0
        %3608 = vmatpush1.xpose.msra.mxu0 0.0
        %3609 = vmatprep.subr.mxu0 0.0
        %3610 = vmatpush1.xpose.msra.mxu0 0.0
        %3611 = vmatprep.subr.mxu0 0.0
        %3612 = vmatpush1.xpose.msra.mxu0 0.0
        %3613 = vmatprep.subr.mxu0 0.0
        %3614 = vmatpush1.xpose.msra.mxu0 0.0
        %3615 = vmatprep.subr.mxu0 0.0
        %3616 = vmatpush1.xpose.msra.mxu0 0.0
        %3617 = vmatprep.subr.mxu0 0.0
        %3618 = vmatpush1.xpose.msra.mxu0 0.0
        %3619 = vmatprep.subr.mxu0 0.0
        %3620 = vmatpush1.xpose.msra.mxu0 0.0
        %3621 = vmatprep.mubr.f32.mxu0 0.0
        %3622 = vmatmul.mubr.f32.gmra.mrb[0].mxu0 %v3549
        %v3623 = vpop.f32.mrb[0].mxu0
        %v3624 = vadd.f32 0.0, %v3623
        %v3625 = vpop.f32.mrb[0].mxu0
        %3626 = vdwg.mxu0
        %v3628 = vsel %vm1288, %v3624, 0
        %3630 = vmatprep.subr.mxu0 0.0
        %3631 = vmatpush1.msra.mxu0 %v3235
        %3632 = vmatprep.subr.mxu0 0.0
        %3633 = vmatpush1.msra.mxu0 %v3236
        %3634 = vmatprep.subr.mxu0 0.0
        %3635 = vmatpush1.msra.mxu0 0.0
        %3636 = vmatprep.subr.mxu0 0.0
        %3637 = vmatpush1.msra.mxu0 0.0
        %3638 = vmatprep.subr.mxu0 0.0
        %3639 = vmatpush1.msra.mxu0 0.0
        %3640 = vmatprep.subr.mxu0 0.0
        %3641 = vmatpush1.msra.mxu0 0.0
        %3642 = vmatprep.subr.mxu0 0.0
        %3643 = vmatpush1.msra.mxu0 0.0
        %3644 = vmatprep.subr.mxu0 0.0
        %3645 = vmatpush1.msra.mxu0 0.0
        %3646 = vmatprep.subr.mxu0 0.0
        %3647 = vmatpush1.msra.mxu0 0.0
        %3648 = vmatprep.subr.mxu0 0.0
        %3649 = vmatpush1.msra.mxu0 0.0
        %3650 = vmatprep.subr.mxu0 0.0
        %3651 = vmatpush1.msra.mxu0 0.0
        %3652 = vmatprep.subr.mxu0 0.0
        %3653 = vmatpush1.msra.mxu0 0.0
        %3654 = vmatprep.subr.mxu0 0.0
        %3655 = vmatpush1.msra.mxu0 0.0
        %3656 = vmatprep.subr.mxu0 0.0
        %3657 = vmatpush1.msra.mxu0 0.0
        %3658 = vmatprep.subr.mxu0 0.0
        %3659 = vmatpush1.msra.mxu0 0.0
        %3660 = vmatprep.subr.mxu0 0.0
        %3661 = vmatpush1.msra.mxu0 0.0
        %3662 = vmatprep.subr.mxu0 0.0
        %3663 = vmatpush1.msra.mxu0 0.0
        %3664 = vmatprep.subr.mxu0 0.0
        %3665 = vmatpush1.msra.mxu0 0.0
        %3666 = vmatprep.subr.mxu0 0.0
        %3667 = vmatpush1.msra.mxu0 0.0
        %3668 = vmatprep.subr.mxu0 0.0
        %3669 = vmatpush1.msra.mxu0 0.0
        %3670 = vmatprep.subr.mxu0 0.0
        %3671 = vmatpush1.msra.mxu0 0.0
        %3672 = vmatprep.subr.mxu0 0.0
        %3673 = vmatpush1.msra.mxu0 0.0
        %3674 = vmatprep.subr.mxu0 0.0
        %3675 = vmatpush1.msra.mxu0 0.0
        %3676 = vmatprep.subr.mxu0 0.0
        %3677 = vmatpush1.msra.mxu0 0.0
        %3678 = vmatprep.subr.mxu0 0.0
        %3679 = vmatpush1.msra.mxu0 0.0
        %3680 = vmatprep.subr.mxu0 0.0
        %3681 = vmatpush1.msra.mxu0 0.0
        %3682 = vmatprep.subr.mxu0 0.0
        %3683 = vmatpush1.msra.mxu0 0.0
        %3684 = vmatprep.subr.mxu0 0.0
        %3685 = vmatpush1.msra.mxu0 0.0
        %3686 = vmatprep.subr.mxu0 0.0
        %3687 = vmatpush1.msra.mxu0 0.0
        %3688 = vmatprep.subr.mxu0 0.0
        %3689 = vmatpush1.msra.mxu0 0.0
        %3690 = vmatprep.subr.mxu0 0.0
        %3691 = vmatpush1.msra.mxu0 0.0
        %3692 = vmatprep.subr.mxu0 0.0
        %3693 = vmatpush1.msra.mxu0 0.0
        %3694 = vmatprep.mubr.f32.mxu0 0.0
        %3695 = vmatmul.mubr.f32.gmra.mrb[0].mxu0 %v3628
        %v3696 = vpop.f32.mrb[0].mxu0
        %v3697 = vadd.f32 0.0, %v3696
        %v3698 = vpop.f32.mrb[0].mxu0
        %3699 = vdwg.mxu0
        %v3701 = vsel %vm1288, %v3429, 0
        %3703 = vmatprep.subr.mxu0 0.0
        %3704 = vmatpush1.msra.mxu0 %v3233
        %3705 = vmatprep.subr.mxu0 0.0
        %3706 = vmatpush1.msra.mxu0 %v3234
        %3707 = vmatprep.subr.mxu0 0.0
        %3708 = vmatpush1.msra.mxu0 0.0
        %3709 = vmatprep.subr.mxu0 0.0
        %3710 = vmatpush1.msra.mxu0 0.0
        %3711 = vmatprep.subr.mxu0 0.0
        %3712 = vmatpush1.msra.mxu0 0.0
        %3713 = vmatprep.subr.mxu0 0.0
        %3714 = vmatpush1.msra.mxu0 0.0
        %3715 = vmatprep.subr.mxu0 0.0
        %3716 = vmatpush1.msra.mxu0 0.0
        %3717 = vmatprep.subr.mxu0 0.0
        %3718 = vmatpush1.msra.mxu0 0.0
        %3719 = vmatprep.subr.mxu0 0.0
        %3720 = vmatpush1.msra.mxu0 0.0
        %3721 = vmatprep.subr.mxu0 0.0
        %3722 = vmatpush1.msra.mxu0 0.0
        %3723 = vmatprep.subr.mxu0 0.0
        %3724 = vmatpush1.msra.mxu0 0.0
        %3725 = vmatprep.subr.mxu0 0.0
        %3726 = vmatpush1.msra.mxu0 0.0
        %3727 = vmatprep.subr.mxu0 0.0
        %3728 = vmatpush1.msra.mxu0 0.0
        %3729 = vmatprep.subr.mxu0 0.0
        %3730 = vmatpush1.msra.mxu0 0.0
        %3731 = vmatprep.subr.mxu0 0.0
        %3732 = vmatpush1.msra.mxu0 0.0
        %3733 = vmatprep.subr.mxu0 0.0
        %3734 = vmatpush1.msra.mxu0 0.0
        %3735 = vmatprep.subr.mxu0 0.0
        %3736 = vmatpush1.msra.mxu0 0.0
        %3737 = vmatprep.subr.mxu0 0.0
        %3738 = vmatpush1.msra.mxu0 0.0
        %3739 = vmatprep.subr.mxu0 0.0
        %3740 = vmatpush1.msra.mxu0 0.0
        %3741 = vmatprep.subr.mxu0 0.0
        %3742 = vmatpush1.msra.mxu0 0.0
        %3743 = vmatprep.subr.mxu0 0.0
        %3744 = vmatpush1.msra.mxu0 0.0
        %3745 = vmatprep.subr.mxu0 0.0
        %3746 = vmatpush1.msra.mxu0 0.0
        %3747 = vmatprep.subr.mxu0 0.0
        %3748 = vmatpush1.msra.mxu0 0.0
        %3749 = vmatprep.subr.mxu0 0.0
        %3750 = vmatpush1.msra.mxu0 0.0
        %3751 = vmatprep.subr.mxu0 0.0
        %3752 = vmatpush1.msra.mxu0 0.0
        %3753 = vmatprep.subr.mxu0 0.0
        %3754 = vmatpush1.msra.mxu0 0.0
        %3755 = vmatprep.subr.mxu0 0.0
        %3756 = vmatpush1.msra.mxu0 0.0
        %3757 = vmatprep.subr.mxu0 0.0
        %3758 = vmatpush1.msra.mxu0 0.0
        %3759 = vmatprep.subr.mxu0 0.0
        %3760 = vmatpush1.msra.mxu0 0.0
        %3761 = vmatprep.subr.mxu0 0.0
        %3762 = vmatpush1.msra.mxu0 0.0
        %3763 = vmatprep.subr.mxu0 0.0
        %3764 = vmatpush1.msra.mxu0 0.0
        %3765 = vmatprep.subr.mxu0 0.0
        %3766 = vmatpush1.msra.mxu0 0.0
        %3767 = vmatprep.mubr.f32.mxu0 0.0
        %3768 = vmatmul.mubr.f32.gmra.mrb[0].mxu0 %v3701
        %v3769 = vpop.f32.mrb[0].mxu0
        %v3770 = vadd.f32 %v3697, %v3769
        %v3771 = vpop.f32.mrb[0].mxu0
        %3772 = vdwg.mxu0
        %v3773 = vadd.f32 %v2972, %v3770
        %v3774 = vmul.f32 %v3773, %v3773
        %v3775 = vsel %vm1051, %v3774, 0.0
        %3776 = vadd.xlane.f32.xlu0 %v3775
        %v3777 = vpop.xlane.xlu0 %3776
        %v3778 = vmul.f32 %v3777, %v1055
        %v3779 = vadd.f32 %v3778, 1e-06
        %v3780 = vrsqrt.pop %v3779
        %v3781 = vmul.f32 %v3773, %v3780
        %v3782 = vld [vmem:[%s21] sm:$0x1]
        %v3784 = vlaneseq
        %v3785 = vshrl.u32 %v3784, 7
        %v3786 = vsub.s32 0, %v3785
        %v3787 = vrot.slane %v3782, %v3786
        %v3789 = vmul.f32 %v3781, %v3787
        %v3790 = vld [vmem:[%s22] sm:$0xff]
        %v3791 = vld [vmem:[%s22 + $0x8] sm:$0xff]
        %v3792 = vld [vmem:[%s22 + $0x10] sm:$0xff]
        %v3793 = vld [vmem:[%s22 + $0x18] sm:$0xff]
        %v3794 = vld [vmem:[%s22 + $0x20] sm:$0xff]
        %v3795 = vld [vmem:[%s22 + $0x28] sm:$0xff]
        %v3796 = vld [vmem:[%s22 + $0x30] sm:$0xff]
        %v3797 = vld [vmem:[%s22 + $0x38] sm:$0xff]
        %v3798 = vld [vmem:[%s22 + $0x40] sm:$0xff]
        %v3799 = vld [vmem:[%s22 + $0x48] sm:$0xff]
        %v3800 = vld [vmem:[%s22 + $0x50] sm:$0xff]
        %v3801 = vld [vmem:[%s22 + $0x58] sm:$0xff]
        %v3802 = vld [vmem:[%s22 + $0x60] sm:$0xff]
        %v3803 = vld [vmem:[%s22 + $0x68] sm:$0xff]
        %v3804 = vld [vmem:[%s22 + $0x70] sm:$0xff]
        %v3805 = vld [vmem:[%s22 + $0x78] sm:$0xff]
        %v3807 = vsel %vm1051, %v3790, 0
        %v3810 = vsel %vm1051, %v3791, 0
        %v3813 = vsel %vm1051, %v3792, 0
        %v3816 = vsel %vm1051, %v3793, 0
        %v3819 = vsel %vm1051, %v3794, 0
        %v3822 = vsel %vm1051, %v3795, 0
        %v3825 = vsel %vm1051, %v3796, 0
        %v3828 = vsel %vm1051, %v3797, 0
        %v3831 = vsel %vm1051, %v3798, 0
        %v3834 = vsel %vm1051, %v3799, 0
        %v3837 = vsel %vm1051, %v3800, 0
        %v3840 = vsel %vm1051, %v3801, 0
        %v3843 = vsel %vm1051, %v3802, 0
        %v3846 = vsel %vm1051, %v3803, 0
        %v3849 = vsel %vm1051, %v3804, 0
        %v3852 = vsel %vm1051, %v3805, 0
        %v3855 = vsel %vm1051, %v3789, 0
        %3857 = vmatprep.subr.mxu0 0.0
        %3858 = vmatpush1.xpose.msra.mxu0 %v3855
        %3859 = vmatprep.subr.mxu0 0.0
        %3860 = vmatpush1.xpose.msra.mxu0 0.0
        %3861 = vmatprep.subr.mxu0 0.0
        %3862 = vmatpush1.xpose.msra.mxu0 0.0
        %3863 = vmatprep.subr.mxu0 0.0
        %3864 = vmatpush1.xpose.msra.mxu0 0.0
        %3865 = vmatprep.subr.mxu0 0.0
        %3866 = vmatpush1.xpose.msra.mxu0 0.0
        %3867 = vmatprep.subr.mxu0 0.0
        %3868 = vmatpush1.xpose.msra.mxu0 0.0
        %3869 = vmatprep.subr.mxu0 0.0
        %3870 = vmatpush1.xpose.msra.mxu0 0.0
        %3871 = vmatprep.subr.mxu0 0.0
        %3872 = vmatpush1.xpose.msra.mxu0 0.0
        %3873 = vmatprep.subr.mxu0 0.0
        %3874 = vmatpush1.xpose.msra.mxu0 0.0
        %3875 = vmatprep.subr.mxu0 0.0
        %3876 = vmatpush1.xpose.msra.mxu0 0.0
        %3877 = vmatprep.subr.mxu0 0.0
        %3878 = vmatpush1.xpose.msra.mxu0 0.0
        %3879 = vmatprep.subr.mxu0 0.0
        %3880 = vmatpush1.xpose.msra.mxu0 0.0
        %3881 = vmatprep.subr.mxu0 0.0
        %3882 = vmatpush1.xpose.msra.mxu0 0.0
        %3883 = vmatprep.subr.mxu0 0.0
        %3884 = vmatpush1.xpose.msra.mxu0 0.0
        %3885 = vmatprep.subr.mxu0 0.0
        %3886 = vmatpush1.xpose.msra.mxu0 0.0
        %3887 = vmatprep.subr.mxu0 0.0
        %3888 = vmatpush1.xpose.msra.mxu0 0.0
        %3889 = vmatprep.subr.mxu0 0.0
        %3890 = vmatpush1.xpose.msra.mxu0 0.0
        %3891 = vmatprep.subr.mxu0 0.0
        %3892 = vmatpush1.xpose.msra.mxu0 0.0
        %3893 = vmatprep.subr.mxu0 0.0
        %3894 = vmatpush1.xpose.msra.mxu0 0.0
        %3895 = vmatprep.subr.mxu0 0.0
        %3896 = vmatpush1.xpose.msra.mxu0 0.0
        %3897 = vmatprep.subr.mxu0 0.0
        %3898 = vmatpush1.xpose.msra.mxu0 0.0
        %3899 = vmatprep.subr.mxu0 0.0
        %3900 = vmatpush1.xpose.msra.mxu0 0.0
        %3901 = vmatprep.subr.mxu0 0.0
        %3902 = vmatpush1.xpose.msra.mxu0 0.0
        %3903 = vmatprep.subr.mxu0 0.0
        %3904 = vmatpush1.xpose.msra.mxu0 0.0
        %3905 = vmatprep.subr.mxu0 0.0
        %3906 = vmatpush1.xpose.msra.mxu0 0.0
        %3907 = vmatprep.subr.mxu0 0.0
        %3908 = vmatpush1.xpose.msra.mxu0 0.0
        %3909 = vmatprep.subr.mxu0 0.0
        %3910 = vmatpush1.xpose.msra.mxu0 0.0
        %3911 = vmatprep.subr.mxu0 0.0
        %3912 = vmatpush1.xpose.msra.mxu0 0.0
        %3913 = vmatprep.subr.mxu0 0.0
        %3914 = vmatpush1.xpose.msra.mxu0 0.0
        %3915 = vmatprep.subr.mxu0 0.0
        %3916 = vmatpush1.xpose.msra.mxu0 0.0
        %3917 = vmatprep.subr.mxu0 0.0
        %3918 = vmatpush1.xpose.msra.mxu0 0.0
        %3919 = vmatprep.subr.mxu0 0.0
        %3920 = vmatpush1.xpose.msra.mxu0 0.0
        %3921 = vmatprep.mubr.f32.mxu0 0.0
        %3922 = vmatmul.mubr.f32.gmra.mrb[0].mxu0 %v3807
        %v3923 = vpop.f32.mrb[0].mxu0
        %v3924 = vadd.f32 0.0, %v3923
        %v3925 = vpop.f32.mrb[0].mxu0
        %3926 = vmatprep.mubr.f32.mxu0 0.0
        %3927 = vmatmul.mubr.f32.gmra.mrb[0].mxu0 %v3810
        %v3928 = vpop.f32.mrb[0].mxu0
        %v3929 = vadd.f32 0.0, %v3928
        %v3930 = vpop.f32.mrb[0].mxu0
        %3931 = vmatprep.mubr.f32.mxu0 0.0
        %3932 = vmatmul.mubr.f32.gmra.mrb[0].mxu0 %v3813
        %v3933 = vpop.f32.mrb[0].mxu0
        %v3934 = vadd.f32 0.0, %v3933
        %v3935 = vpop.f32.mrb[0].mxu0
        %3936 = vmatprep.mubr.f32.mxu0 0.0
        %3937 = vmatmul.mubr.f32.gmra.mrb[0].mxu0 %v3816
        %v3938 = vpop.f32.mrb[0].mxu0
        %v3939 = vadd.f32 0.0, %v3938
        %v3940 = vpop.f32.mrb[0].mxu0
        %3941 = vmatprep.mubr.f32.mxu0 0.0
        %3942 = vmatmul.mubr.f32.gmra.mrb[0].mxu0 %v3819
        %v3943 = vpop.f32.mrb[0].mxu0
        %v3944 = vadd.f32 0.0, %v3943
        %v3945 = vpop.f32.mrb[0].mxu0
        %3946 = vmatprep.mubr.f32.mxu0 0.0
        %3947 = vmatmul.mubr.f32.gmra.mrb[0].mxu0 %v3822
        %v3948 = vpop.f32.mrb[0].mxu0
        %v3949 = vadd.f32 0.0, %v3948
        %v3950 = vpop.f32.mrb[0].mxu0
        %3951 = vmatprep.mubr.f32.mxu0 0.0
        %3952 = vmatmul.mubr.f32.gmra.mrb[0].mxu0 %v3825
        %v3953 = vpop.f32.mrb[0].mxu0
        %v3954 = vadd.f32 0.0, %v3953
        %v3955 = vpop.f32.mrb[0].mxu0
        %3956 = vmatprep.mubr.f32.mxu0 0.0
        %3957 = vmatmul.mubr.f32.gmra.mrb[0].mxu0 %v3828
        %v3958 = vpop.f32.mrb[0].mxu0
        %v3959 = vadd.f32 0.0, %v3958
        %v3960 = vpop.f32.mrb[0].mxu0
        %3961 = vmatprep.mubr.f32.mxu0 0.0
        %3962 = vmatmul.mubr.f32.gmra.mrb[0].mxu0 %v3831
        %v3963 = vpop.f32.mrb[0].mxu0
        %v3964 = vadd.f32 0.0, %v3963
        %v3965 = vpop.f32.mrb[0].mxu0
        %3966 = vmatprep.mubr.f32.mxu0 0.0
        %3967 = vmatmul.mubr.f32.gmra.mrb[0].mxu0 %v3834
        %v3968 = vpop.f32.mrb[0].mxu0
        %v3969 = vadd.f32 0.0, %v3968
        %v3970 = vpop.f32.mrb[0].mxu0
        %3971 = vmatprep.mubr.f32.mxu0 0.0
        %3972 = vmatmul.mubr.f32.gmra.mrb[0].mxu0 %v3837
        %v3973 = vpop.f32.mrb[0].mxu0
        %v3974 = vadd.f32 0.0, %v3973
        %v3975 = vpop.f32.mrb[0].mxu0
        %3976 = vmatprep.mubr.f32.mxu0 0.0
        %3977 = vmatmul.mubr.f32.gmra.mrb[0].mxu0 %v3840
        %v3978 = vpop.f32.mrb[0].mxu0
        %v3979 = vadd.f32 0.0, %v3978
        %v3980 = vpop.f32.mrb[0].mxu0
        %3981 = vmatprep.mubr.f32.mxu0 0.0
        %3982 = vmatmul.mubr.f32.gmra.mrb[0].mxu0 %v3843
        %v3983 = vpop.f32.mrb[0].mxu0
        %v3984 = vadd.f32 0.0, %v3983
        %v3985 = vpop.f32.mrb[0].mxu0
        %3986 = vmatprep.mubr.f32.mxu0 0.0
        %3987 = vmatmul.mubr.f32.gmra.mrb[0].mxu0 %v3846
        %v3988 = vpop.f32.mrb[0].mxu0
        %v3989 = vadd.f32 0.0, %v3988
        %v3990 = vpop.f32.mrb[0].mxu0
        %3991 = vmatprep.mubr.f32.mxu0 0.0
        %3992 = vmatmul.mubr.f32.gmra.mrb[0].mxu0 %v3849
        %v3993 = vpop.f32.mrb[0].mxu0
        %v3994 = vadd.f32 0.0, %v3993
        %v3995 = vpop.f32.mrb[0].mxu0
        %3996 = vmatprep.mubr.f32.mxu0 0.0
        %3997 = vmatmul.mubr.f32.gmra.mrb[0].mxu0 %v3852
        %v3998 = vpop.f32.mrb[0].mxu0
        %v3999 = vadd.f32 0.0, %v3998
        %v4000 = vpop.f32.mrb[0].mxu0
        %4001 = vdwg.mxu0
        %v4002 = vmul.f32 %v3924, %v3924
        %v4003 = vmul.f32 %v3929, %v3929
        %v4004 = vmul.f32 %v3934, %v3934
        %v4005 = vmul.f32 %v3939, %v3939
        %v4006 = vmul.f32 %v3944, %v3944
        %v4007 = vmul.f32 %v3949, %v3949
        %v4008 = vmul.f32 %v3954, %v3954
        %v4009 = vmul.f32 %v3959, %v3959
        %v4010 = vmul.f32 %v3924, %v4002
        %v4011 = vmul.f32 %v3929, %v4003
        %v4012 = vmul.f32 %v3934, %v4004
        %v4013 = vmul.f32 %v3939, %v4005
        %v4014 = vmul.f32 %v3944, %v4006
        %v4015 = vmul.f32 %v3949, %v4007
        %v4016 = vmul.f32 %v3954, %v4008
        %v4017 = vmul.f32 %v3959, %v4009
        %v4018 = vmul.f32 %v4010, 0.044715
        %v4019 = vmul.f32 %v4011, 0.044715
        %v4020 = vmul.f32 %v4012, 0.044715
        %v4021 = vmul.f32 %v4013, 0.044715
        %v4022 = vmul.f32 %v4014, 0.044715
        %v4023 = vmul.f32 %v4015, 0.044715
        %v4024 = vmul.f32 %v4016, 0.044715
        %v4025 = vmul.f32 %v4017, 0.044715
        %v4026 = vadd.f32 %v3924, %v4018
        %v4027 = vadd.f32 %v3929, %v4019
        %v4028 = vadd.f32 %v3934, %v4020
        %v4029 = vadd.f32 %v3939, %v4021
        %v4030 = vadd.f32 %v3944, %v4022
        %v4031 = vadd.f32 %v3949, %v4023
        %v4032 = vadd.f32 %v3954, %v4024
        %v4033 = vadd.f32 %v3959, %v4025
        %v4034 = vmul.f32 %v4026, 0.7978846
        %v4035 = vmul.f32 %v4027, 0.7978846
        %v4036 = vmul.f32 %v4028, 0.7978846
        %v4037 = vmul.f32 %v4029, 0.7978846
        %v4038 = vmul.f32 %v4030, 0.7978846
        %v4039 = vmul.f32 %v4031, 0.7978846
        %v4040 = vmul.f32 %v4032, 0.7978846
        %v4041 = vmul.f32 %v4033, 0.7978846
        %v4042 = vtanh.pop %v4034
        %v4043 = vtanh.pop %v4035
        %v4044 = vtanh.pop %v4036
        %v4045 = vtanh.pop %v4037
        %v4046 = vtanh.pop %v4038
        %v4047 = vtanh.pop %v4039
        %v4048 = vtanh.pop %v4040
        %v4049 = vtanh.pop %v4041
        %v4050 = vadd.f32 %v4042, 1.0
        %v4051 = vadd.f32 %v4043, 1.0
        %v4052 = vadd.f32 %v4044, 1.0
        %v4053 = vadd.f32 %v4045, 1.0
        %v4054 = vadd.f32 %v4046, 1.0
        %v4055 = vadd.f32 %v4047, 1.0
        %v4056 = vadd.f32 %v4048, 1.0
        %v4057 = vadd.f32 %v4049, 1.0
        %v4058 = vmul.f32 %v4050, 0.5
        %v4059 = vmul.f32 %v4051, 0.5
        %v4060 = vmul.f32 %v4052, 0.5
        %v4061 = vmul.f32 %v4053, 0.5
        %v4062 = vmul.f32 %v4054, 0.5
        %v4063 = vmul.f32 %v4055, 0.5
        %v4064 = vmul.f32 %v4056, 0.5
        %v4065 = vmul.f32 %v4057, 0.5
        %v4066 = vmul.f32 %v3924, %v4058
        %v4067 = vmul.f32 %v3929, %v4059
        %v4068 = vmul.f32 %v3934, %v4060
        %v4069 = vmul.f32 %v3939, %v4061
        %v4070 = vmul.f32 %v3944, %v4062
        %v4071 = vmul.f32 %v3949, %v4063
        %v4072 = vmul.f32 %v3954, %v4064
        %v4073 = vmul.f32 %v3959, %v4065
        %v4074 = vmul.f32 %v4066, %v3964
        %v4075 = vmul.f32 %v4067, %v3969
        %v4076 = vmul.f32 %v4068, %v3974
        %v4077 = vmul.f32 %v4069, %v3979
        %v4078 = vmul.f32 %v4070, %v3984
        %v4079 = vmul.f32 %v4071, %v3989
        %v4080 = vmul.f32 %v4072, %v3994
        %v4081 = vmul.f32 %v4073, %v3999
        %4082 = vxpose.xlu0.b32.start [1/16] %v4074, 128
        %4083 = vxpose.xlu0.b32.cont [2/16] %v4075, 128
        %4084 = vxpose.xlu0.b32.cont [3/16] %v4076, 128
        %4085 = vxpose.xlu0.b32.cont [4/16] %v4077, 128
        %4086 = vxpose.xlu0.b32.cont [5/16] %v4078, 128
        %4087 = vxpose.xlu0.b32.cont [6/16] %v4079, 128
        %4088 = vxpose.xlu0.b32.cont [7/16] %v4080, 128
        %4089 = vxpose.xlu0.b32.cont [8/16] %v4081, 128
        %4090 = vxpose.xlu0.b32.cont [9/16] 0.0, 128
        %4091 = vxpose.xlu0.b32.cont [10/16] 0.0, 128
        %4092 = vxpose.xlu0.b32.cont [11/16] 0.0, 128
        %4093 = vxpose.xlu0.b32.cont [12/16] 0.0, 128
        %4094 = vxpose.xlu0.b32.cont [13/16] 0.0, 128
        %4095 = vxpose.xlu0.b32.cont [14/16] 0.0, 128
        %4096 = vxpose.xlu0.b32.cont [15/16] 0.0, 128
        %4097 = vxpose.xlu0.b32.end [16/16] 0.0, 128
        %v4098 = vpop.trf.xlu0
        %v4099 = vpop.trf.xlu0
        %v4100 = vpop.trf.xlu0
        %v4101 = vpop.trf.xlu0
        %v4102 = vpop.trf.xlu0
        %v4103 = vpop.trf.xlu0
        %v4104 = vpop.trf.xlu0
        %v4105 = vpop.trf.xlu0
        %v4106 = vpop.trf.xlu0
        %v4107 = vpop.trf.xlu0
        %v4108 = vpop.trf.xlu0
        %v4109 = vpop.trf.xlu0
        %v4110 = vpop.trf.xlu0
        %v4111 = vpop.trf.xlu0
        %v4112 = vpop.trf.xlu0
        %v4113 = vpop.trf.xlu0
        %v4114 = vld [vmem:[%s23] sm:$0xff]
        %v4115 = vld [vmem:[%s23 + $0x8] sm:$0xff]
        %v4116 = vld [vmem:[%s23 + $0x10] sm:$0xff]
        %v4117 = vld [vmem:[%s23 + $0x18] sm:$0xff]
        %v4118 = vld [vmem:[%s23 + $0x20] sm:$0xff]
        %v4119 = vld [vmem:[%s23 + $0x28] sm:$0xff]
        %v4120 = vld [vmem:[%s23 + $0x30] sm:$0xff]
        %v4121 = vld [vmem:[%s23 + $0x38] sm:$0xff]
        %v4123 = vsel %vm2146, %v4098, 0
        %4125 = vmatprep.subr.mxu0 0.0
        %4126 = vmatpush1.msra.mxu0 %v4114
        %4127 = vmatprep.subr.mxu0 0.0
        %4128 = vmatpush1.msra.mxu0 %v4115
        %4129 = vmatprep.subr.mxu0 0.0
        %4130 = vmatpush1.msra.mxu0 %v4116
        %4131 = vmatprep.subr.mxu0 0.0
        %4132 = vmatpush1.msra.mxu0 %v4117
        %4133 = vmatprep.subr.mxu0 0.0
        %4134 = vmatpush1.msra.mxu0 %v4118
        %4135 = vmatprep.subr.mxu0 0.0
        %4136 = vmatpush1.msra.mxu0 %v4119
        %4137 = vmatprep.subr.mxu0 0.0
        %4138 = vmatpush1.msra.mxu0 %v4120
        %4139 = vmatprep.subr.mxu0 0.0
        %4140 = vmatpush1.msra.mxu0 %v4121
        %4141 = vmatprep.subr.mxu0 0.0
        %4142 = vmatpush1.msra.mxu0 0.0
        %4143 = vmatprep.subr.mxu0 0.0
        %4144 = vmatpush1.msra.mxu0 0.0
        %4145 = vmatprep.subr.mxu0 0.0
        %4146 = vmatpush1.msra.mxu0 0.0
        %4147 = vmatprep.subr.mxu0 0.0
        %4148 = vmatpush1.msra.mxu0 0.0
        %4149 = vmatprep.subr.mxu0 0.0
        %4150 = vmatpush1.msra.mxu0 0.0
        %4151 = vmatprep.subr.mxu0 0.0
        %4152 = vmatpush1.msra.mxu0 0.0
        %4153 = vmatprep.subr.mxu0 0.0
        %4154 = vmatpush1.msra.mxu0 0.0
        %4155 = vmatprep.subr.mxu0 0.0
        %4156 = vmatpush1.msra.mxu0 0.0
        %4157 = vmatprep.subr.mxu0 0.0
        %4158 = vmatpush1.msra.mxu0 0.0
        %4159 = vmatprep.subr.mxu0 0.0
        %4160 = vmatpush1.msra.mxu0 0.0
        %4161 = vmatprep.subr.mxu0 0.0
        %4162 = vmatpush1.msra.mxu0 0.0
        %4163 = vmatprep.subr.mxu0 0.0
        %4164 = vmatpush1.msra.mxu0 0.0
        %4165 = vmatprep.subr.mxu0 0.0
        %4166 = vmatpush1.msra.mxu0 0.0
        %4167 = vmatprep.subr.mxu0 0.0
        %4168 = vmatpush1.msra.mxu0 0.0
        %4169 = vmatprep.subr.mxu0 0.0
        %4170 = vmatpush1.msra.mxu0 0.0
        %4171 = vmatprep.subr.mxu0 0.0
        %4172 = vmatpush1.msra.mxu0 0.0
        %4173 = vmatprep.subr.mxu0 0.0
        %4174 = vmatpush1.msra.mxu0 0.0
        %4175 = vmatprep.subr.mxu0 0.0
        %4176 = vmatpush1.msra.mxu0 0.0
        %4177 = vmatprep.subr.mxu0 0.0
        %4178 = vmatpush1.msra.mxu0 0.0
        %4179 = vmatprep.subr.mxu0 0.0
        %4180 = vmatpush1.msra.mxu0 0.0
        %4181 = vmatprep.subr.mxu0 0.0
        %4182 = vmatpush1.msra.mxu0 0.0
        %4183 = vmatprep.subr.mxu0 0.0
        %4184 = vmatpush1.msra.mxu0 0.0
        %4185 = vmatprep.subr.mxu0 0.0
        %4186 = vmatpush1.msra.mxu0 0.0
        %4187 = vmatprep.subr.mxu0 0.0
        %4188 = vmatpush1.msra.mxu0 0.0
        %4189 = vmatprep.mubr.f32.mxu0 0.0
        %4190 = vmatmul.mubr.f32.gmra.mrb[0].mxu0 %v4123
        %v4191 = vpop.f32.mrb[0].mxu0
        %v4192 = vadd.f32 0.0, %v4191
        %v4193 = vpop.f32.mrb[0].mxu0
        %4194 = vdwg.mxu0
        %v4195 = vadd.f32 %v3773, %v4192
        %v4196 = vmul.f32 %v4195, %v4195
        %v4197 = vsel %vm1051, %v4196, 0.0
        %4198 = vadd.xlane.f32.xlu0 %v4197
        %v4199 = vpop.xlane.xlu0 %4198
        %v4200 = vmul.f32 %v4199, %v1055
        %v4201 = vadd.f32 %v4200, 1e-06
        %v4202 = vrsqrt.pop %v4201
        %v4203 = vmul.f32 %v4195, %v4202
        %v4204 = vld [vmem:[%s24] sm:$0x1]
        %v4206 = vlaneseq
        %v4207 = vshrl.u32 %v4206, 7
        %v4208 = vsub.s32 0, %v4207
        %v4209 = vrot.slane %v4204, %v4208
        %v4211 = vmul.f32 %v4203, %v4209
        %v4212 = vld [vmem:[%s25] sm:$0xff]
        %v4213 = vld [vmem:[%s25 + $0x8] sm:$0xff]
        %v4214 = vld [vmem:[%s25 + $0x10] sm:$0xff]
        %v4215 = vld [vmem:[%s25 + $0x18] sm:$0xff]
        %v4217 = vsel %vm1051, %v4211, 0
        %4219 = vmatprep.subr.mxu0 0.0
        %4220 = vmatpush1.msra.mxu0 %v4212
        %4221 = vmatprep.subr.mxu0 0.0
        %4222 = vmatpush1.msra.mxu0 %v4213
        %4223 = vmatprep.subr.mxu0 0.0
        %4224 = vmatpush1.msra.mxu0 %v4214
        %4225 = vmatprep.subr.mxu0 0.0
        %4226 = vmatpush1.msra.mxu0 %v4215
        %4227 = vmatprep.subr.mxu0 0.0
        %4228 = vmatpush1.msra.mxu0 0.0
        %4229 = vmatprep.subr.mxu0 0.0
        %4230 = vmatpush1.msra.mxu0 0.0
        %4231 = vmatprep.subr.mxu0 0.0
        %4232 = vmatpush1.msra.mxu0 0.0
        %4233 = vmatprep.subr.mxu0 0.0
        %4234 = vmatpush1.msra.mxu0 0.0
        %4235 = vmatprep.subr.mxu0 0.0
        %4236 = vmatpush1.msra.mxu0 0.0
        %4237 = vmatprep.subr.mxu0 0.0
        %4238 = vmatpush1.msra.mxu0 0.0
        %4239 = vmatprep.subr.mxu0 0.0
        %4240 = vmatpush1.msra.mxu0 0.0
        %4241 = vmatprep.subr.mxu0 0.0
        %4242 = vmatpush1.msra.mxu0 0.0
        %4243 = vmatprep.subr.mxu0 0.0
        %4244 = vmatpush1.msra.mxu0 0.0
        %4245 = vmatprep.subr.mxu0 0.0
        %4246 = vmatpush1.msra.mxu0 0.0
        %4247 = vmatprep.subr.mxu0 0.0
        %4248 = vmatpush1.msra.mxu0 0.0
        %4249 = vmatprep.subr.mxu0 0.0
        %4250 = vmatpush1.msra.mxu0 0.0
        %4251 = vmatprep.subr.mxu0 0.0
        %4252 = vmatpush1.msra.mxu0 0.0
        %4253 = vmatprep.subr.mxu0 0.0
        %4254 = vmatpush1.msra.mxu0 0.0
        %4255 = vmatprep.subr.mxu0 0.0
        %4256 = vmatpush1.msra.mxu0 0.0
        %4257 = vmatprep.subr.mxu0 0.0
        %4258 = vmatpush1.msra.mxu0 0.0
        %4259 = vmatprep.subr.mxu0 0.0
        %4260 = vmatpush1.msra.mxu0 0.0
        %4261 = vmatprep.subr.mxu0 0.0
        %4262 = vmatpush1.msra.mxu0 0.0
        %4263 = vmatprep.subr.mxu0 0.0
        %4264 = vmatpush1.msra.mxu0 0.0
        %4265 = vmatprep.subr.mxu0 0.0
        %4266 = vmatpush1.msra.mxu0 0.0
        %4267 = vmatprep.subr.mxu0 0.0
        %4268 = vmatpush1.msra.mxu0 0.0
        %4269 = vmatprep.subr.mxu0 0.0
        %4270 = vmatpush1.msra.mxu0 0.0
        %4271 = vmatprep.subr.mxu0 0.0
        %4272 = vmatpush1.msra.mxu0 0.0
        %4273 = vmatprep.subr.mxu0 0.0
        %4274 = vmatpush1.msra.mxu0 0.0
        %4275 = vmatprep.subr.mxu0 0.0
        %4276 = vmatpush1.msra.mxu0 0.0
        %4277 = vmatprep.subr.mxu0 0.0
        %4278 = vmatpush1.msra.mxu0 0.0
        %4279 = vmatprep.subr.mxu0 0.0
        %4280 = vmatpush1.msra.mxu0 0.0
        %4281 = vmatprep.subr.mxu0 0.0
        %4282 = vmatpush1.msra.mxu0 0.0
        %4283 = vmatprep.mubr.f32.mxu0 0.0
        %4284 = vmatmul.mubr.f32.gmra.mrb[0].mxu0 %v4217
        %v4285 = vpop.f32.mrb[0].mxu0
        %v4286 = vadd.f32 0.0, %v4285
        %v4287 = vpop.f32.mrb[0].mxu0
        %4288 = vdwg.mxu0
        %4289 = vst [vmem:[%s847] sm:$0xff] %v4286
        %4290 = vmax.xlane.f32.xlu0 %v4286
        %v4291 = vpop.xlane.xlu0 %4290
        %v4292 = vsub.f32 %v4286, %v4291
        %v4293 = vmul.f32 %v4292, 1.442695
        %v4294 = vpow.pop %v4293
        %4295 = vadd.xlane.f32.xlu0 %v4294
        %v4296 = vpop.xlane.xlu0 %4295
        %v4297 = vlog2.pop %v4296
        %v4298 = vmul.f32 %v4297, 0.6931472
        %v4299 = vadd.f32 %v4298, %v4291
        %4300 = vset.pattern.permute.xlu0 0
        %4301 = vperm.xlu0 %4300, %v875
        %v4302 = vpop.permute.xlu0 %4301
        %vm4303 = vcmp.eq.s32.totalorder %v897, %v4302
        %v4304 = vsel %vm4303, 1, 0
        %v4305 = vcvt.s32.f32 %v4304
        %v4306 = vmul.f32 %v4286, %v4305
        %4307 = vadd.xlane.f32.xlu0 %v4306
        %v4308 = vpop.xlane.xlu0 %4307
        %vm4309 = vcmp.ne.s32.totalorder %v875, 4294967196
        %v4310 = vsel %vm4309, 1, 0
        %v4311 = vcvt.s32.f32 %v4310
        %v4312 = vsub.f32 %v4299, %v4308
        %v4313 = vmul.f32 %v4312, %v4311
        %vm4314 = vcmask 7168
        %4315 = vst.msk [vmem:[%s872] sm:$0xff] %vm4314, %v4313
        %s4316 = sand.u32 %s616, 1
        %s4317 = scalar_lea.sflag [#allocation3], %s4316
        %s4318 = sand.u32 %s616, 1
        %s4319 = smul.addr %s4318, 8
        %s4320 = scalar_lea.vmem [#allocation2], %s4319
        %p4321 = scmp.lt.s32.totalorder %s42, 1
        %s4322 = scalar_select %p4321, %s42, 1
        %s4323 = smul.addr %s4322, 8
        %s4324 = scalar_lea.vmem %s27, %s4323
        // Predicated region
        $region125: #{flan_t5_forward.1} parent=123 // pred_check
          %p4325 = pneg %p626
        $region126: #{flan_t5_forward.1} parent=123 // pred_check_branch
          %4327 = sbr.rel (%p4325) target = $region128
        $region127: #{flan_t5_forward.1} parent=123 // pred_region
          %s4329 = ssub.s32 128, 128
          %4330 = vsyncadd %s4317, %s4329
          %s4331 = smul.addr %s42, 128
          %s4332 = scalar_lea.hbm %s26, %s4331
          %s4334 = sshll.u32 %s4320, 4
          %s4335 = int_to_ptr.vmem [resolvable:$true] %s4334
          %4337 = dma.vmem_to_hbm [thread:$0]  %s4335, 128, %s4332, %s4317
        $region128: #{flan_t5_forward.1} parent=123 // pred_fallthru
          _
        // Predicated region
        $region129: #{flan_t5_forward.1} parent=123 // pred_check
          %p4338 = pneg %p652
        $region130: #{flan_t5_forward.1} parent=123 // pred_check_branch
          %4340 = sbr.rel (%p4338) target = $region132
        $region131: #{flan_t5_forward.1} parent=123 // pred_region
          _
        $region132: #{flan_t5_forward.1} parent=123 // pred_fallthru
          _
      $region124: #{flan_t5_forward.1} parent=5 // pred_fallthru
        _
      %p4341 = scmp.le.s32.totalorder 2, %s37
      // Predicated region
      $region133: #{flan_t5_forward.1} parent=5 // pred_check
        %p4342 = pneg %p4341
      $region134: #{flan_t5_forward.1} parent=5 // pred_check_branch
        %4344 = sbr.rel (%p4342) target = $region136
      $region135: #{flan_t5_forward.1} parent=5 // pred_region
        %s4345 = ssub.s32 %s37, 2
        // Predicated region
        $region137: #{flan_t5_forward.1} parent=135 // pred_check
          %p4346 = pneg %p632
        $region138: #{flan_t5_forward.1} parent=135 // pred_check_branch
          %4348 = sbr.rel (%p4346) target = $region140
        $region139: #{flan_t5_forward.1} parent=135 // pred_region
          %s4349 = sand.u32 %s617, 1
          %s4350 = scalar_lea.sflag [#allocation3], %s4349
          %s4351 = sand.u32 %s617, 1
          %s4352 = smul.addr %s4351, 8
          %s4353 = scalar_lea.vmem [#allocation2], %s4352
          %4354 = dma.done %s4350, 128
        $region140: #{flan_t5_forward.1} parent=135 // pred_fallthru
          _
        // Predicated region
        $region141: #{flan_t5_forward.1} parent=135 // pred_check
          %p4355 = pneg %p658
        $region142: #{flan_t5_forward.1} parent=135 // pred_check_branch
          %4357 = sbr.rel (%p4355) target = $region144
        $region143: #{flan_t5_forward.1} parent=135 // pred_region
          %p4358 = scmp.lt.s32.totalorder %s43, 1
          %s4359 = scalar_select %p4358, %s43, 1
          %s4360 = smul.addr %s4359, 8
          %s4361 = scalar_lea.vmem %s27, %s4360
        $region144: #{flan_t5_forward.1} parent=135 // pred_fallthru
          _
      $region136: #{flan_t5_forward.1} parent=5 // pred_fallthru
        _
    $region6: #{flan_t5_forward.1} parent=1 // loop_footer
      %s41 = sadd.s32 1, %s37
    $region7: #{flan_t5_forward.1} parent=1 // loop_footer_branch
      %36 = sbr.rel target = $region3
    $region8: #{flan_t5_forward.1} parent=1 // loop_exit
      _
    %4362 = vsyncpa [#allocation3], 1
    %s4363 = scalar_lea.sflag [#allocation3], 1
    %4364 = vsyncpa %s4363, 1

</llo_original>
